<compile_context>
chip_gen: v6e
topology: v6e:2x2x1
jax: 0.10.0
libtpu: 0.0.40
codegen_flags: <defaults>
</compile_context>

<pallas_src>
import functools

import jax
import jax.numpy as jnp
from jax.experimental import pallas as pl
from jax.experimental.pallas import tpu as pltpu


def _bpr_fused_kernel(ut_ref, it_ref, uix_ref, iix_ref, jix_ref, o_ref):
    """Fused gather + BPR score.

    ut_ref : (D, Nu)  user table (transposed), whole table resident in VMEM.
    it_ref : (D, Ni)  item table (transposed), whole table resident in VMEM.
    *ix_ref: (1, block_b) int32 index blocks (batch on the lane axis).
    o_ref  : (2, block_b) f32 — row 0 = pred_i, row 1 = pred_j.
    """
    ut = ut_ref[...]
    it = it_ref[...]
    nu = ut.shape[1]
    ni = it.shape[1]
    blk = uix_ref.shape[1]
    cdt = ut.dtype  # keep the (possibly narrow, e.g. bf16) table dtype on MXU inputs

    def one_hot_t(idx_2d, n_rows):
        # (1, blk) int32 -> (n_rows, blk) transposed one-hot in table dtype.
        rows = jax.lax.broadcasted_iota(jnp.int32, (n_rows, blk), 0)
        return (rows == idx_2d).astype(cdt)

    # In-kernel row gather via one-hot matmul on the MXU (tables are tiny and
    # VMEM-resident).  Output is directly lane-dense (D, blk); f32 accumulate.
    gu = jnp.dot(ut, one_hot_t(uix_ref[...], nu), preferred_element_type=jnp.float32)
    gi = jnp.dot(it, one_hot_t(iix_ref[...], ni), preferred_element_type=jnp.float32)
    gj = jnp.dot(it, one_hot_t(jix_ref[...], ni), preferred_element_type=jnp.float32)

    # Score on the VPU: elementwise multiply + sublane reduce (NOT the diagonal
    # of an MXU matmul).  Direct row writes — no concatenate/interleave.
    o_ref[0:1, :] = jnp.sum(gu * gi, axis=0, keepdims=True)
    o_ref[1:2, :] = jnp.sum(gu * gj, axis=0, keepdims=True)


@functools.partial(jax.jit, static_argnames=("block_b",))
def mf_bpr_forward(user_table, item_table, user, item_i, item_j, *, block_b=1024):
    """Returns (pred_i, pred_j), each shape (B,) float32."""
    nu, d = user_table.shape
    ni, _ = item_table.shape
    b = user.shape[0]

    # Tiny O(table) relayout so the in-kernel gather emits lane-dense tiles
    # (table rows land on the 128-wide lane axis of the one-hot matmul).
    ut = user_table.T   # (D, Nu)
    it = item_table.T   # (D, Ni)

    # Pad the batch to a lane-aligned size; pick block_b so the parallel grid
    # has >=2 steps when the batch allows it (dual v7x TensorCores), else one
    # fat step (v5e/v6e single-TC: the extra step costs only ~0.35 us).
    b_pad = max(128, -(-b // 128) * 128)
    blk = block_b
    if b_pad >= 256:
        blk = min(blk, (b_pad // 2 // 128) * 128)
    blk = max(128, min(blk, b_pad))
    b_pad = -(-b_pad // blk) * blk
    grid = (b_pad // blk,)

    def prep_idx(idx):
        idx = idx.astype(jnp.int32).reshape(1, b)
        return jnp.pad(idx, ((0, 0), (0, b_pad - b)))   # padded cols are trimmed below

    u_idx, i_idx, j_idx = prep_idx(user), prep_idx(item_i), prep_idx(item_j)

    # Whole-table blocks with a constant index_map: DMA'd into VMEM once and
    # kept resident across the batch grid (block index never changes).
    # TODO(synk): for tables too large for VMEM, keep them in HBM
    # (memory_space=pl.ANY) and gather rows with scalar-prefetched indices +
    # manual double-buffered pltpu.make_async_copy instead of one-hot matmul.
    u_table_spec = pl.BlockSpec((d, nu), lambda bb: (0, 0))
    i_table_spec = pl.BlockSpec((d, ni), lambda bb: (0, 0))
    idx_spec = pl.BlockSpec((1, blk), lambda bb: (0, bb))
    out_spec = pl.BlockSpec((2, blk), lambda bb: (0, bb))

    # VMEM per step: tables ~96 KiB (resident) + one-hot intermediates
    # (Nu + 2*Ni) * blk * 4 B (~2.5 MiB at blk=512) + a few KiB of index /
    # output blocks — far below the scoped-VMEM default on v5e/v6e/v7x, so no
    # vmem_limit_bytes override is needed at these table sizes.
    out = pl.pallas_call(
        _bpr_fused_kernel,
        out_shape=jax.ShapeDtypeStruct((2, b_pad), jnp.float32),
        grid_spec=pltpu.PrefetchScalarGridSpec(
            num_scalar_prefetch=0,
            grid=grid,
            in_specs=[u_table_spec, i_table_spec, idx_spec, idx_spec, idx_spec],
            out_specs=out_spec,
        ),
        compiler_params=pltpu.CompilerParams(
            dimension_semantics=("parallel",),
        ),
    )(ut, it, u_idx, i_idx, j_idx)

    return out[0, :b], out[1, :b]


if __name__ == "__main__":
    # Deterministic synthetic parameters (module __init__: normal std=0.01).
    user_num, item_num, factor_num = 256, 512, 32
    batch = 1000  # deliberately not lane-aligned: exercises the pad/trim path

    key = jax.random.PRNGKey(0)
    k_u, k_i, k_uu, k_ii, k_jj = jax.random.split(key, 5)

    embed_user = 0.01 * jax.random.normal(k_u, (user_num, factor_num), jnp.float32)
    embed_item = 0.01 * jax.random.normal(k_i, (item_num, factor_num), jnp.float32)

    user = jax.random.randint(k_uu, (batch,), 0, user_num, dtype=jnp.int32)
    item_i = jax.random.randint(k_ii, (batch,), 0, item_num, dtype=jnp.int32)
    item_j = jax.random.randint(k_jj, (batch,), 0, item_num, dtype=jnp.int32)

    pred_i, pred_j = mf_bpr_forward(embed_user, embed_item, user, item_i, item_j)
    jax.block_until_ready((pred_i, pred_j))

    # Pure-JAX reference (exact f32 gather + reduce).
    eu = embed_user[user]
    ref_i = jnp.sum(eu * embed_item[item_i], axis=1)
    ref_j = jnp.sum(eu * embed_item[item_j], axis=1)

    assert pred_i.shape == (batch,) and pred_j.shape == (batch,)
    # Tolerance leaves headroom for the MXU's f32-matmul pass numerics in the
    # one-hot gather; values are O(1e-3), a wrong gather would be ~100% off.
    assert jnp.allclose(pred_i, ref_i, atol=5e-5, rtol=1e-3), float(jnp.max(jnp.abs(pred_i - ref_i)))
    assert jnp.allclose(pred_j, ref_j, atol=5e-5, rtol=1e-3), float(jnp.max(jnp.abs(pred_j - ref_j)))

    print("KERNEL_OK")
</pallas_src>

<mosaic_0001>
module attributes {stable_mosaic.version = 11 : i64} {
  func.func @_bpr_fused_kernel(%arg0: i32, %arg1: memref<32x256xf32, #tpu.memory_space<vmem>>, %arg2: memref<32x512xf32, #tpu.memory_space<vmem>>, %arg3: memref<1x512xi32, #tpu.memory_space<vmem>>, %arg4: memref<1x512xi32, #tpu.memory_space<vmem>>, %arg5: memref<1x512xi32, #tpu.memory_space<vmem>>, %arg6: memref<2x512xf32, #tpu.memory_space<vmem>>) attributes {dimension_semantics = [#tpu.dimension_semantics<parallel>], iteration_bounds = array<i64: 2>, scalar_prefetch = 0 : i64, scratch_operands = 0 : i64, tpu.core_type = #tpu.core_type<tc>, window_params = [{pipeline_mode = #tpu.pipeline_mode<synchronous>, transform_indices = @transform_0, window_bounds = array<i64: 32, 256>}, {pipeline_mode = #tpu.pipeline_mode<synchronous>, transform_indices = @transform_1, window_bounds = array<i64: 32, 512>}, {transform_indices = @transform_2, window_bounds = array<i64: 1, 512>}, {transform_indices = @transform_3, window_bounds = array<i64: 1, 512>}, {transform_indices = @transform_4, window_bounds = array<i64: 1, 512>}, {transform_indices = @transform_5, window_bounds = array<i64: 2, 512>}]} {
    %c0 = arith.constant 0 : index
    %c0_0 = arith.constant 0 : index
    %0 = vector.load %arg1[%c0, %c0_0] : memref<32x256xf32, #tpu.memory_space<vmem>>, vector<32x256xf32>
    %c0_1 = arith.constant 0 : index
    %c0_2 = arith.constant 0 : index
    %1 = vector.load %arg2[%c0_1, %c0_2] : memref<32x512xf32, #tpu.memory_space<vmem>>, vector<32x512xf32>
    %c0_3 = arith.constant 0 : index
    %c0_4 = arith.constant 0 : index
    %2 = vector.load %arg3[%c0_3, %c0_4] : memref<1x512xi32, #tpu.memory_space<vmem>>, vector<1x512xi32>
    %3 = tpu.iota {dimensions = array<i32: 0>} : vector<256x512xi32>
    %4 = vector.broadcast %2 : vector<1x512xi32> to vector<256x512xi32>
    %5 = arith.cmpi eq, %3, %4 : vector<256x512xi32>
    %6 = arith.extui %5 : vector<256x512xi1> to vector<256x512xi32>
    %7 = arith.sitofp %6 : vector<256x512xi32> to vector<256x512xf32>
    %cst = arith.constant dense<0.000000e+00> : vector<32x512xf32>
    %8 = tpu.matmul %0, %7, %cst {dimension_numbers = #tpu.dot_dimension_numbers<[1], [0], [0], [1], [0, 0, 1, 1], [], []>} : vector<32x256xf32>, vector<256x512xf32>, vector<32x512xf32> -> vector<32x512xf32>
    %c0_5 = arith.constant 0 : index
    %c0_6 = arith.constant 0 : index
    %9 = vector.load %arg4[%c0_5, %c0_6] : memref<1x512xi32, #tpu.memory_space<vmem>>, vector<1x512xi32>
    %10 = tpu.iota {dimensions = array<i32: 0>} : vector<512x512xi32>
    %11 = vector.broadcast %9 : vector<1x512xi32> to vector<512x512xi32>
    %12 = arith.cmpi eq, %10, %11 : vector<512x512xi32>
    %13 = arith.extui %12 : vector<512x512xi1> to vector<512x512xi32>
    %14 = arith.sitofp %13 : vector<512x512xi32> to vector<512x512xf32>
    %cst_7 = arith.constant dense<0.000000e+00> : vector<32x512xf32>
    %15 = tpu.matmul %1, %14, %cst_7 {dimension_numbers = #tpu.dot_dimension_numbers<[1], [0], [0], [1], [0, 0, 1, 1], [], []>} : vector<32x512xf32>, vector<512x512xf32>, vector<32x512xf32> -> vector<32x512xf32>
    %c0_8 = arith.constant 0 : index
    %c0_9 = arith.constant 0 : index
    %16 = vector.load %arg5[%c0_8, %c0_9] : memref<1x512xi32, #tpu.memory_space<vmem>>, vector<1x512xi32>
    %17 = tpu.iota {dimensions = array<i32: 0>} : vector<512x512xi32>
    %18 = vector.broadcast %16 : vector<1x512xi32> to vector<512x512xi32>
    %19 = arith.cmpi eq, %17, %18 : vector<512x512xi32>
    %20 = arith.extui %19 : vector<512x512xi1> to vector<512x512xi32>
    %21 = arith.sitofp %20 : vector<512x512xi32> to vector<512x512xf32>
    %cst_10 = arith.constant dense<0.000000e+00> : vector<32x512xf32>
    %22 = tpu.matmul %1, %21, %cst_10 {dimension_numbers = #tpu.dot_dimension_numbers<[1], [0], [0], [1], [0, 0, 1, 1], [], []>} : vector<32x512xf32>, vector<512x512xf32>, vector<32x512xf32> -> vector<32x512xf32>
    %23 = arith.mulf %8, %15 : vector<32x512xf32>
    %cst_11 = arith.constant dense<0.000000e+00> : vector<512xf32>
    %24 = vector.multi_reduction <add>, %23, %cst_11 [0] : vector<32x512xf32> to vector<512xf32>
    %25 = vector.shape_cast %24 : vector<512xf32> to vector<1x512xf32>
    %c0_12 = arith.constant 0 : index
    %c0_13 = arith.constant 0 : index
    %26 = vector.load %arg6[%c0_12, %c0_13] : memref<2x512xf32, #tpu.memory_space<vmem>>, vector<1x512xf32>
    tpu.vector_store %arg6[%c0_12, %c0_13], %25 {strides = array<i32>} : memref<2x512xf32, #tpu.memory_space<vmem>>, vector<1x512xf32>,
    %27 = arith.mulf %8, %22 : vector<32x512xf32>
    %cst_14 = arith.constant dense<0.000000e+00> : vector<512xf32>
    %28 = vector.multi_reduction <add>, %27, %cst_14 [0] : vector<32x512xf32> to vector<512xf32>
    %29 = vector.shape_cast %28 : vector<512xf32> to vector<1x512xf32>
    %c1 = arith.constant 1 : index
    %c0_15 = arith.constant 0 : index
    %30 = vector.load %arg6[%c1, %c0_15] : memref<2x512xf32, #tpu.memory_space<vmem>>, vector<1x512xf32>
    tpu.vector_store %arg6[%c1, %c0_15], %29 {strides = array<i32>} : memref<2x512xf32, #tpu.memory_space<vmem>>, vector<1x512xf32>,
    return
  }
  func.func @transform_0(%arg0: i32) -> (i32, i32) {
    %c0_i32 = arith.constant 0 : i32
    %c0_i32_0 = arith.constant 0 : i32
    %c0_i32_1 = arith.constant 0 : i32
    return %c0_i32, %c0_i32_0 : i32, i32
  }
  func.func @transform_1(%arg0: i32) -> (i32, i32) {
    %c0_i32 = arith.constant 0 : i32
    %c0_i32_0 = arith.constant 0 : i32
    %c0_i32_1 = arith.constant 0 : i32
    return %c0_i32, %c0_i32_0 : i32, i32
  }
  func.func @transform_2(%arg0: i32) -> (i32, i32) {
    %c0_i32 = arith.constant 0 : i32
    %c0_i32_0 = arith.constant 0 : i32
    return %c0_i32, %arg0 : i32, i32
  }
  func.func @transform_3(%arg0: i32) -> (i32, i32) {
    %c0_i32 = arith.constant 0 : i32
    %c0_i32_0 = arith.constant 0 : i32
    return %c0_i32, %arg0 : i32, i32
  }
  func.func @transform_4(%arg0: i32) -> (i32, i32) {
    %c0_i32 = arith.constant 0 : i32
    %c0_i32_0 = arith.constant 0 : i32
    return %c0_i32, %arg0 : i32, i32
  }
  func.func @transform_5(%arg0: i32) -> (i32, i32) {
    %c0_i32 = arith.constant 0 : i32
    %c0_i32_0 = arith.constant 0 : i32
    return %c0_i32, %arg0 : i32, i32
  }
}

</mosaic_0001>

<llo_original>
// kernel: mf_bpr_forward.1
$region0: #{mf_bpr_forward.1}
  #allocation0 [shape = 'u32[]', space=smem, size = 0x4, offset = 0x4, fixed_abs, tag = 'smem constant byte address 0x4 - core index']
  #allocation1 [shape = 'u32[144,128]{1,0:T(1,128)}', space=vmem, size = 0x12000, scoped, tag = 'internal scratch']
  %s0 = inlined_call_operand.hbm [shape: f32[32,256], index: 0, kind: input, shape index: {}]
  %s1 = inlined_call_operand.hbm [shape: f32[32,512], index: 1, kind: input, shape index: {}]
  %s2 = inlined_call_operand.vmem [shape: s32[1,1024], index: 2, kind: input, shape index: {}]
  %s3 = inlined_call_operand.vmem [shape: s32[1,1024], index: 3, kind: input, shape index: {}]
  %s4 = inlined_call_operand.vmem [shape: s32[1,1024], index: 4, kind: input, shape index: {}]
  %s5 = inlined_call_operand.vmem [shape: f32[2,1024], index: 5, kind: output, shape index: {}]
  %s6 = sld [smem:[#allocation0]]
  $region61: #{mf_bpr_forward.1} parent=0
    _
  %s8 = ssub.s32 1, %s6
  %s9 = scalar_select 0, %s8, %s6
  $region1: #{mf_bpr_forward.1} parent=0
    #allocation2 [shape = 'u8[32768]{0}', space=vmem, size = 0x8000, scoped, tag = 'input window, operand 0, single buffered']
    #allocation3 [shape = 's32[2]{0}', space=sflag, size = 0x8, scoped, tag = 'scoped memory for mf_bpr_forward.1']
    #allocation4 [shape = 'u8[65536]{0}', space=vmem, size = 0x10000, scoped, tag = 'input window, operand 1, single buffered']
    #allocation5 [shape = 's32[1]{0}', space=sflag, size = 0x4, scoped, tag = 'scoped memory for mf_bpr_forward.1']
    %10 = vsyncpa [#allocation3], 0
    %11 = vsyncpa [#allocation5], 0
    loop: start=0, step=1, limit=4
    $region2: #{mf_bpr_forward.1} parent=1 // loop_pre_header
      _
    $region3: #{mf_bpr_forward.1} parent=1 // loop_header
      %s13 = sphi 0, %s17
      %p14 = scmp.ge.s32.totalorder %s13, 4
      %s21 = sphi 0, %s21
      %s23 = sphi 0, %s21
      %s24 = sphi 0, %s23
      %s38 = sphi 0, %s24
      %s42 = sphi 0, %s42
      %s44 = sphi 0, %s42
      %s45 = sphi 0, %s44
      %s59 = sphi 0, %s45
      %s65 = sphi 0, %s67
      %s68 = sphi 0, %s65
      %s69 = sphi 0, %s68
      %s85 = sphi 0, %s69
      %s91 = sphi 0, %s93
      %s94 = sphi 0, %s91
      %s95 = sphi 0, %s94
      %s111 = sphi 0, %s95
      %s117 = sphi 0, %s119
      %s120 = sphi 0, %s117
      %s121 = sphi 0, %s120
      %s137 = sphi 0, %s121
      %s143 = sphi 0, %s145
      %s146 = sphi 0, %s143
      %s147 = sphi 0, %s146
      %s163 = sphi 0, %s147
    $region4: #{mf_bpr_forward.1} parent=1 // loop_header_branch
      %16 = sbr.rel (%p14) target = $region8
    $region5: #{mf_bpr_forward.1} parent=1 // loop_body
      %s18 = ssub.s32 %s13, 1
      %s19 = ssub.s32 %s13, 2
      %s20 = sadd.s32 %s13, 1
      %s22 = sadd.s32 %s21, 1
      %p25 = scmp.eq.s32.totalorder %s13, 1
      %p26 = scmp.ne.s32.totalorder %s21, %s23
      %p27 = scmp.eq.s32.totalorder %s13, 0
      %p28 = por %p26, %p27
      %p29 = scmp.ne.s32.totalorder %s21, %s23
      %p30 = scmp.eq.s32.totalorder %s18, 1
      %p31 = por %p29, %p30
      %p32 = scmp.ne.s32.totalorder %s23, %s24
      %p33 = scmp.eq.s32.totalorder %s18, 0
      %p34 = por %p32, %p33
      %p35 = scmp.ne.s32.totalorder %s23, %s24
      %p36 = scmp.eq.s32.totalorder %s19, 1
      %p37 = por %p35, %p36
      %p39 = scmp.ne.s32.totalorder %s24, %s38
      %p40 = scmp.eq.s32.totalorder %s19, 0
      %p41 = por %p39, %p40
      %s43 = sadd.s32 %s42, 1
      %p46 = scmp.eq.s32.totalorder %s13, 1
      %p47 = scmp.ne.s32.totalorder %s42, %s44
      %p48 = scmp.eq.s32.totalorder %s13, 0
      %p49 = por %p47, %p48
      %p50 = scmp.ne.s32.totalorder %s42, %s44
      %p51 = scmp.eq.s32.totalorder %s18, 1
      %p52 = por %p50, %p51
      %p53 = scmp.ne.s32.totalorder %s44, %s45
      %p54 = scmp.eq.s32.totalorder %s18, 0
      %p55 = por %p53, %p54
      %p56 = scmp.ne.s32.totalorder %s44, %s45
      %p57 = scmp.eq.s32.totalorder %s19, 1
      %p58 = por %p56, %p57
      %p60 = scmp.ne.s32.totalorder %s45, %s59
      %p61 = scmp.eq.s32.totalorder %s19, 0
      %p62 = por %p60, %p61
      %s63 = ssub.s32 %s13, %s20
      %p64 = scmp.eq.s32.totalorder %s63, 0
      %s66 = sadd.s32 %s65, 1
      %s67 = scalar_select %p64, %s65, %s66
      %p70 = pneg %p64
      %p71 = scmp.eq.s32.totalorder %s13, 1
      %p72 = por %p70, %p71
      %p73 = scmp.ne.s32.totalorder %s65, %s68
      %p74 = scmp.eq.s32.totalorder %s13, 0
      %p75 = por %p73, %p74
      %p76 = scmp.ne.s32.totalorder %s65, %s68
      %p77 = scmp.eq.s32.totalorder %s18, 1
      %p78 = por %p76, %p77
      %p79 = scmp.ne.s32.totalorder %s68, %s69
      %p80 = scmp.eq.s32.totalorder %s18, 0
      %p81 = por %p79, %p80
      %p82 = scmp.ne.s32.totalorder %s68, %s69
      %p83 = scmp.eq.s32.totalorder %s19, 1
      %p84 = por %p82, %p83
      %p86 = scmp.ne.s32.totalorder %s69, %s85
      %p87 = scmp.eq.s32.totalorder %s19, 0
      %p88 = por %p86, %p87
      %s89 = ssub.s32 %s13, %s20
      %p90 = scmp.eq.s32.totalorder %s89, 0
      %s92 = sadd.s32 %s91, 1
      %s93 = scalar_select %p90, %s91, %s92
      %p96 = pneg %p90
      %p97 = scmp.eq.s32.totalorder %s13, 1
      %p98 = por %p96, %p97
      %p99 = scmp.ne.s32.totalorder %s91, %s94
      %p100 = scmp.eq.s32.totalorder %s13, 0
      %p101 = por %p99, %p100
      %p102 = scmp.ne.s32.totalorder %s91, %s94
      %p103 = scmp.eq.s32.totalorder %s18, 1
      %p104 = por %p102, %p103
      %p105 = scmp.ne.s32.totalorder %s94, %s95
      %p106 = scmp.eq.s32.totalorder %s18, 0
      %p107 = por %p105, %p106
      %p108 = scmp.ne.s32.totalorder %s94, %s95
      %p109 = scmp.eq.s32.totalorder %s19, 1
      %p110 = por %p108, %p109
      %p112 = scmp.ne.s32.totalorder %s95, %s111
      %p113 = scmp.eq.s32.totalorder %s19, 0
      %p114 = por %p112, %p113
      %s115 = ssub.s32 %s13, %s20
      %p116 = scmp.eq.s32.totalorder %s115, 0
      %s118 = sadd.s32 %s117, 1
      %s119 = scalar_select %p116, %s117, %s118
      %p122 = pneg %p116
      %p123 = scmp.eq.s32.totalorder %s13, 1
      %p124 = por %p122, %p123
      %p125 = scmp.ne.s32.totalorder %s117, %s120
      %p126 = scmp.eq.s32.totalorder %s13, 0
      %p127 = por %p125, %p126
      %p128 = scmp.ne.s32.totalorder %s117, %s120
      %p129 = scmp.eq.s32.totalorder %s18, 1
      %p130 = por %p128, %p129
      %p131 = scmp.ne.s32.totalorder %s120, %s121
      %p132 = scmp.eq.s32.totalorder %s18, 0
      %p133 = por %p131, %p132
      %p134 = scmp.ne.s32.totalorder %s120, %s121
      %p135 = scmp.eq.s32.totalorder %s19, 1
      %p136 = por %p134, %p135
      %p138 = scmp.ne.s32.totalorder %s121, %s137
      %p139 = scmp.eq.s32.totalorder %s19, 0
      %p140 = por %p138, %p139
      %s141 = ssub.s32 %s13, %s20
      %p142 = scmp.eq.s32.totalorder %s141, 0
      %s144 = sadd.s32 %s143, 1
      %s145 = scalar_select %p142, %s143, %s144
      %p148 = pneg %p142
      %p149 = scmp.eq.s32.totalorder %s13, 1
      %p150 = por %p148, %p149
      %p151 = scmp.ne.s32.totalorder %s143, %s146
      %p152 = scmp.eq.s32.totalorder %s13, 0
      %p153 = por %p151, %p152
      %p154 = scmp.ne.s32.totalorder %s143, %s146
      %p155 = scmp.eq.s32.totalorder %s18, 1
      %p156 = por %p154, %p155
      %p157 = scmp.ne.s32.totalorder %s146, %s147
      %p158 = scmp.eq.s32.totalorder %s18, 0
      %p159 = por %p157, %p158
      %p160 = scmp.ne.s32.totalorder %s146, %s147
      %p161 = scmp.eq.s32.totalorder %s19, 1
      %p162 = por %p160, %p161
      %p164 = scmp.ne.s32.totalorder %s147, %s163
      %p165 = scmp.eq.s32.totalorder %s19, 0
      %p166 = por %p164, %p165
      %p167 = scmp.le.s32.totalorder 1, %s13
      %p168 = scmp.lt.s32.totalorder %s13, 3
      %p169 = pnand %p167, %p168
      %p170 = pneg %p169
      // Predicated region
      $region9: #{mf_bpr_forward.1} parent=5 // pred_check
        _
      $region10: #{mf_bpr_forward.1} parent=5 // pred_check_branch
        %172 = sbr.rel (%p169) target = $region12
      $region11: #{mf_bpr_forward.1} parent=5 // pred_region
        %s173 = ssub.s32 %s13, 1
        // Predicated region
        $region13: #{mf_bpr_forward.1} parent=11 // pred_check
          %p174 = pneg %p34
        $region14: #{mf_bpr_forward.1} parent=11 // pred_check_branch
          %176 = sbr.rel (%p174) target = $region16
        $region15: #{mf_bpr_forward.1} parent=11 // pred_region
          %s178 = ssub.s32 1024, 1024
          %179 = vsyncadd [#allocation3], %s178
          %s180 = sshll.u32 [#allocation2], 4
          %s181 = int_to_ptr.vmem [resolvable:$true] %s180
          %186 = dma.hbm_to_vmem [thread:$0]  %s0, 1024, %s181, [#allocation3], 256, 256, 16
        $region16: #{mf_bpr_forward.1} parent=11 // pred_fallthru
          _
        // Predicated region
        $region17: #{mf_bpr_forward.1} parent=11 // pred_check
          %p187 = pneg %p55
        $region18: #{mf_bpr_forward.1} parent=11 // pred_check_branch
          %189 = sbr.rel (%p187) target = $region20
        $region19: #{mf_bpr_forward.1} parent=11 // pred_region
          %s191 = ssub.s32 2048, 2048
          %192 = vsyncadd [#allocation5], %s191
          %s193 = sshll.u32 [#allocation4], 4
          %s194 = int_to_ptr.vmem [resolvable:$true] %s193
          %199 = dma.hbm_to_vmem [thread:$0]  %s1, 2048, %s194, [#allocation5], 512, 512, 32
        $region20: #{mf_bpr_forward.1} parent=11 // pred_fallthru
          _
      $region12: #{mf_bpr_forward.1} parent=5 // pred_fallthru
        _
      %p200 = scmp.lt.s32.totalorder %s13, 2
      // Predicated region
      $region21: #{mf_bpr_forward.1} parent=5 // pred_check
        %p201 = pneg %p200
      $region22: #{mf_bpr_forward.1} parent=5 // pred_check_branch
        %203 = sbr.rel (%p201) target = $region24
      $region23: #{mf_bpr_forward.1} parent=5 // pred_region
        // Predicated region
        $region25: #{mf_bpr_forward.1} parent=23 // pred_check
          %p204 = pneg %p75
        $region26: #{mf_bpr_forward.1} parent=23 // pred_check_branch
          %206 = sbr.rel (%p204) target = $region28
        $region27: #{mf_bpr_forward.1} parent=23 // pred_region
          %s207 = smul.u32 4, %s13
          %p208 = scmp.lt.s32.totalorder %s207, 7
          %s209 = scalar_select %p208, %s207, 7
          %s210 = scalar_lea.vmem %s2, %s209
          %s211 = smul.u32 4, %s13
        $region28: #{mf_bpr_forward.1} parent=23 // pred_fallthru
          _
        // Predicated region
        $region29: #{mf_bpr_forward.1} parent=23 // pred_check
          %p212 = pneg %p101
        $region30: #{mf_bpr_forward.1} parent=23 // pred_check_branch
          %214 = sbr.rel (%p212) target = $region32
        $region31: #{mf_bpr_forward.1} parent=23 // pred_region
          %s215 = smul.u32 4, %s13
          %p216 = scmp.lt.s32.totalorder %s215, 7
          %s217 = scalar_select %p216, %s215, 7
          %s218 = scalar_lea.vmem %s3, %s217
          %s219 = smul.u32 4, %s13
        $region32: #{mf_bpr_forward.1} parent=23 // pred_fallthru
          _
        // Predicated region
        $region33: #{mf_bpr_forward.1} parent=23 // pred_check
          %p220 = pneg %p127
        $region34: #{mf_bpr_forward.1} parent=23 // pred_check_branch
          %222 = sbr.rel (%p220) target = $region36
        $region35: #{mf_bpr_forward.1} parent=23 // pred_region
          %s223 = smul.u32 4, %s13
          %p224 = scmp.lt.s32.totalorder %s223, 7
          %s225 = scalar_select %p224, %s223, 7
          %s226 = scalar_lea.vmem %s4, %s225
          %s227 = smul.u32 4, %s13
        $region36: #{mf_bpr_forward.1} parent=23 // pred_fallthru
          _
      $region24: #{mf_bpr_forward.1} parent=5 // pred_fallthru
        _
      %p228 = scmp.le.s32.totalorder 1, %s13
      %p229 = scmp.lt.s32.totalorder %s13, 3
      %p230 = pnand %p228, %p229
      %p231 = pneg %p230
      // Predicated region
      $region37: #{mf_bpr_forward.1} parent=5 // pred_check
        _
      $region38: #{mf_bpr_forward.1} parent=5 // pred_check_branch
        %233 = sbr.rel (%p230) target = $region40
      $region39: #{mf_bpr_forward.1} parent=5 // pred_region
        %s234 = ssub.s32 %s13, 1
        // Predicated region
        $region41: #{mf_bpr_forward.1} parent=39 // pred_check
          %p235 = pneg %p34
        $region42: #{mf_bpr_forward.1} parent=39 // pred_check_branch
          %237 = sbr.rel (%p235) target = $region44
        $region43: #{mf_bpr_forward.1} parent=39 // pred_region
          %238 = dma.done [#allocation3], 1024
        $region44: #{mf_bpr_forward.1} parent=39 // pred_fallthru
          _
        // Predicated region
        $region45: #{mf_bpr_forward.1} parent=39 // pred_check
          %p239 = pneg %p55
        $region46: #{mf_bpr_forward.1} parent=39 // pred_check_branch
          %241 = sbr.rel (%p239) target = $region48
        $region47: #{mf_bpr_forward.1} parent=39 // pred_region
          %242 = dma.done [#allocation5], 2048
        $region48: #{mf_bpr_forward.1} parent=39 // pred_fallthru
          _
        %p243 = pneg %p34
        %p244 = pneg %p31
        %p245 = pneg %p55
        %p246 = pneg %p52
        %s247 = smul.u32 4, %s18
        %p248 = scmp.lt.s32.totalorder %s247, 7
        %s249 = scalar_select %p248, %s247, 7
        %s250 = scalar_lea.vmem %s2, %s249
        %p251 = pneg %p81
        %p252 = pneg %p78
        %s253 = smul.u32 4, %s18
        %p254 = scmp.lt.s32.totalorder %s253, 7
        %s255 = scalar_select %p254, %s253, 7
        %s256 = scalar_lea.vmem %s3, %s255
        %p257 = pneg %p107
        %p258 = pneg %p104
        %s259 = smul.u32 4, %s18
        %p260 = scmp.lt.s32.totalorder %s259, 7
        %s261 = scalar_select %p260, %s259, 7
        %s262 = scalar_lea.vmem %s4, %s261
        %p263 = pneg %p133
        %p264 = pneg %p130
        %p265 = pneg %p159
        %p266 = pneg %p156
        %s267 = smul.u32 4, %s18
        %p268 = scmp.lt.s32.totalorder %s267, 7
        %s269 = scalar_select %p268, %s267, 7
        %s270 = smul.addr %s269, 2
        %s271 = scalar_lea.vmem %s5, %s270
        %s272 = smul.u32 4, %s18
        %p273 = scmp.lt.s32.totalorder %s272, 7
        %s274 = scalar_select %p273, %s272, 7
        %s275 = scalar_lea.vmem %s2, %s274
        %s276 = smul.u32 4, %s18
        %s277 = smul.u32 4, %s18
        %p278 = scmp.lt.s32.totalorder %s277, 7
        %s279 = scalar_select %p278, %s277, 7
        %s280 = scalar_lea.vmem %s3, %s279
        %s281 = smul.u32 4, %s18
        %s282 = smul.u32 4, %s18
        %p283 = scmp.lt.s32.totalorder %s282, 7
        %s284 = scalar_select %p283, %s282, 7
        %s285 = scalar_lea.vmem %s4, %s284
        %s286 = smul.u32 4, %s18
        %s287 = smul.u32 4, %s18
        %p288 = scmp.lt.s32.totalorder %s287, 7
        %s289 = scalar_select %p288, %s287, 7
        %s290 = smul.addr %s289, 2
        %s291 = scalar_lea.vmem %s5, %s290
        %s292 = smul.u32 4, %s18
        %v293 = vld [vmem:[#allocation2] sm:$0xff]
        %v294 = vld [vmem:[#allocation2 + $0x8] sm:$0xff]
        %v295 = vld [vmem:[#allocation2 + $0x10] sm:$0xff]
        %v296 = vld [vmem:[#allocation2 + $0x18] sm:$0xff]
        %v297 = vld [vmem:[#allocation2 + $0x20] sm:$0xff]
        %v298 = vld [vmem:[#allocation2 + $0x28] sm:$0xff]
        %v299 = vld [vmem:[#allocation2 + $0x30] sm:$0xff]
        %v300 = vld [vmem:[#allocation2 + $0x38] sm:$0xff]
        %v301 = vld [vmem:[#allocation4] sm:$0xff]
        %v302 = vld [vmem:[#allocation4 + $0x8] sm:$0xff]
        %v303 = vld [vmem:[#allocation4 + $0x10] sm:$0xff]
        %v304 = vld [vmem:[#allocation4 + $0x18] sm:$0xff]
        %v305 = vld [vmem:[#allocation4 + $0x20] sm:$0xff]
        %v306 = vld [vmem:[#allocation4 + $0x28] sm:$0xff]
        %v307 = vld [vmem:[#allocation4 + $0x30] sm:$0xff]
        %v308 = vld [vmem:[#allocation4 + $0x38] sm:$0xff]
        %v309 = vld [vmem:[#allocation4 + $0x40] sm:$0xff]
        %v310 = vld [vmem:[#allocation4 + $0x48] sm:$0xff]
        %v311 = vld [vmem:[#allocation4 + $0x50] sm:$0xff]
        %v312 = vld [vmem:[#allocation4 + $0x58] sm:$0xff]
        %v313 = vld [vmem:[#allocation4 + $0x60] sm:$0xff]
        %v314 = vld [vmem:[#allocation4 + $0x68] sm:$0xff]
        %v315 = vld [vmem:[#allocation4 + $0x70] sm:$0xff]
        %v316 = vld [vmem:[#allocation4 + $0x78] sm:$0xff]
        %v317 = vld [vmem:[%s275] sm:$0xf]
        %v318 = vlaneseq
        %v319 = vshrl.u32 %v318, 7
        %v320 = vadd.s32 %v319, 8
        %v321 = vadd.s32 %v319, 16
        %v322 = vadd.s32 %v319, 24
        %v323 = vadd.s32 %v319, 32
        %v324 = vadd.s32 %v319, 40
        %v325 = vadd.s32 %v319, 48
        %v326 = vadd.s32 %v319, 56
        %v327 = vadd.s32 %v319, 64
        %v328 = vadd.s32 %v319, 72
        %v329 = vadd.s32 %v319, 80
        %v330 = vadd.s32 %v319, 88
        %v331 = vadd.s32 %v319, 96
        %v332 = vadd.s32 %v319, 104
        %v333 = vadd.s32 %v319, 112
        %v334 = vadd.s32 %v319, 120
        %v335 = vadd.s32 %v319, 128
        %v336 = vadd.s32 %v319, 136
        %v337 = vadd.s32 %v319, 144
        %v338 = vadd.s32 %v319, 152
        %v339 = vadd.s32 %v319, 160
        %v340 = vadd.s32 %v319, 168
        %v341 = vadd.s32 %v319, 176
        %v342 = vadd.s32 %v319, 184
        %v343 = vadd.s32 %v319, 192
        %v344 = vadd.s32 %v319, 200
        %v345 = vadd.s32 %v319, 208
        %v346 = vadd.s32 %v319, 216
        %v347 = vadd.s32 %v319, 224
        %v348 = vadd.s32 %v319, 232
        %v349 = vadd.s32 %v319, 240
        %v350 = vadd.s32 %v319, 248
        %v351 = vlaneseq
        %v352 = vshrl.u32 %v351, 7
        %v353 = vsub.s32 0, %v352
        %v354 = vrot.slane %v317, %v353
        %v355 = vlaneseq
        %v356 = vshrl.u32 %v355, 7
        %v357 = vsub.s32 1, %v356
        %v358 = vrot.slane %v317, %v357
        %v359 = vlaneseq
        %v360 = vshrl.u32 %v359, 7
        %v361 = vsub.s32 2, %v360
        %v362 = vrot.slane %v317, %v361
        %v363 = vlaneseq
        %v364 = vshrl.u32 %v363, 7
        %v365 = vsub.s32 3, %v364
        %v366 = vrot.slane %v317, %v365
        %vm367 = vcmp.eq.s32.totalorder %v319, %v354
        %vm368 = vcmp.eq.s32.totalorder %v319, %v358
        %vm369 = vcmp.eq.s32.totalorder %v319, %v362
        %vm370 = vcmp.eq.s32.totalorder %v319, %v366
        %vm371 = vcmp.eq.s32.totalorder %v320, %v354
        %vm372 = vcmp.eq.s32.totalorder %v320, %v358
        %vm373 = vcmp.eq.s32.totalorder %v320, %v362
        %vm374 = vcmp.eq.s32.totalorder %v320, %v366
        %vm375 = vcmp.eq.s32.totalorder %v321, %v354
        %vm376 = vcmp.eq.s32.totalorder %v321, %v358
        %vm377 = vcmp.eq.s32.totalorder %v321, %v362
        %vm378 = vcmp.eq.s32.totalorder %v321, %v366
        %vm379 = vcmp.eq.s32.totalorder %v322, %v354
        %vm380 = vcmp.eq.s32.totalorder %v322, %v358
        %vm381 = vcmp.eq.s32.totalorder %v322, %v362
        %vm382 = vcmp.eq.s32.totalorder %v322, %v366
        %vm383 = vcmp.eq.s32.totalorder %v323, %v354
        %vm384 = vcmp.eq.s32.totalorder %v323, %v358
        %vm385 = vcmp.eq.s32.totalorder %v323, %v362
        %vm386 = vcmp.eq.s32.totalorder %v323, %v366
        %vm387 = vcmp.eq.s32.totalorder %v324, %v354
        %vm388 = vcmp.eq.s32.totalorder %v324, %v358
        %vm389 = vcmp.eq.s32.totalorder %v324, %v362
        %vm390 = vcmp.eq.s32.totalorder %v324, %v366
        %vm391 = vcmp.eq.s32.totalorder %v325, %v354
        %vm392 = vcmp.eq.s32.totalorder %v325, %v358
        %vm393 = vcmp.eq.s32.totalorder %v325, %v362
        %vm394 = vcmp.eq.s32.totalorder %v325, %v366
        %vm395 = vcmp.eq.s32.totalorder %v326, %v354
        %vm396 = vcmp.eq.s32.totalorder %v326, %v358
        %vm397 = vcmp.eq.s32.totalorder %v326, %v362
        %vm398 = vcmp.eq.s32.totalorder %v326, %v366
        %vm399 = vcmp.eq.s32.totalorder %v327, %v354
        %vm400 = vcmp.eq.s32.totalorder %v327, %v358
        %vm401 = vcmp.eq.s32.totalorder %v327, %v362
        %vm402 = vcmp.eq.s32.totalorder %v327, %v366
        %vm403 = vcmp.eq.s32.totalorder %v328, %v354
        %vm404 = vcmp.eq.s32.totalorder %v328, %v358
        %vm405 = vcmp.eq.s32.totalorder %v328, %v362
        %vm406 = vcmp.eq.s32.totalorder %v328, %v366
        %vm407 = vcmp.eq.s32.totalorder %v329, %v354
        %vm408 = vcmp.eq.s32.totalorder %v329, %v358
        %vm409 = vcmp.eq.s32.totalorder %v329, %v362
        %vm410 = vcmp.eq.s32.totalorder %v329, %v366
        %vm411 = vcmp.eq.s32.totalorder %v330, %v354
        %vm412 = vcmp.eq.s32.totalorder %v330, %v358
        %vm413 = vcmp.eq.s32.totalorder %v330, %v362
        %vm414 = vcmp.eq.s32.totalorder %v330, %v366
        %vm415 = vcmp.eq.s32.totalorder %v331, %v354
        %vm416 = vcmp.eq.s32.totalorder %v331, %v358
        %vm417 = vcmp.eq.s32.totalorder %v331, %v362
        %vm418 = vcmp.eq.s32.totalorder %v331, %v366
        %vm419 = vcmp.eq.s32.totalorder %v332, %v354
        %vm420 = vcmp.eq.s32.totalorder %v332, %v358
        %vm421 = vcmp.eq.s32.totalorder %v332, %v362
        %vm422 = vcmp.eq.s32.totalorder %v332, %v366
        %vm423 = vcmp.eq.s32.totalorder %v333, %v354
        %vm424 = vcmp.eq.s32.totalorder %v333, %v358
        %vm425 = vcmp.eq.s32.totalorder %v333, %v362
        %vm426 = vcmp.eq.s32.totalorder %v333, %v366
        %vm427 = vcmp.eq.s32.totalorder %v334, %v354
        %vm428 = vcmp.eq.s32.totalorder %v334, %v358
        %vm429 = vcmp.eq.s32.totalorder %v334, %v362
        %vm430 = vcmp.eq.s32.totalorder %v334, %v366
        %vm431 = vcmp.eq.s32.totalorder %v335, %v354
        %vm432 = vcmp.eq.s32.totalorder %v335, %v358
        %vm433 = vcmp.eq.s32.totalorder %v335, %v362
        %vm434 = vcmp.eq.s32.totalorder %v335, %v366
        %vm435 = vcmp.eq.s32.totalorder %v336, %v354
        %vm436 = vcmp.eq.s32.totalorder %v336, %v358
        %vm437 = vcmp.eq.s32.totalorder %v336, %v362
        %vm438 = vcmp.eq.s32.totalorder %v336, %v366
        %vm439 = vcmp.eq.s32.totalorder %v337, %v354
        %vm440 = vcmp.eq.s32.totalorder %v337, %v358
        %vm441 = vcmp.eq.s32.totalorder %v337, %v362
        %vm442 = vcmp.eq.s32.totalorder %v337, %v366
        %vm443 = vcmp.eq.s32.totalorder %v338, %v354
        %vm444 = vcmp.eq.s32.totalorder %v338, %v358
        %vm445 = vcmp.eq.s32.totalorder %v338, %v362
        %vm446 = vcmp.eq.s32.totalorder %v338, %v366
        %vm447 = vcmp.eq.s32.totalorder %v339, %v354
        %vm448 = vcmp.eq.s32.totalorder %v339, %v358
        %vm449 = vcmp.eq.s32.totalorder %v339, %v362
        %vm450 = vcmp.eq.s32.totalorder %v339, %v366
        %vm451 = vcmp.eq.s32.totalorder %v340, %v354
        %vm452 = vcmp.eq.s32.totalorder %v340, %v358
        %vm453 = vcmp.eq.s32.totalorder %v340, %v362
        %vm454 = vcmp.eq.s32.totalorder %v340, %v366
        %vm455 = vcmp.eq.s32.totalorder %v341, %v354
        %vm456 = vcmp.eq.s32.totalorder %v341, %v358
        %vm457 = vcmp.eq.s32.totalorder %v341, %v362
        %vm458 = vcmp.eq.s32.totalorder %v341, %v366
        %vm459 = vcmp.eq.s32.totalorder %v342, %v354
        %vm460 = vcmp.eq.s32.totalorder %v342, %v358
        %vm461 = vcmp.eq.s32.totalorder %v342, %v362
        %vm462 = vcmp.eq.s32.totalorder %v342, %v366
        %vm463 = vcmp.eq.s32.totalorder %v343, %v354
        %vm464 = vcmp.eq.s32.totalorder %v343, %v358
        %vm465 = vcmp.eq.s32.totalorder %v343, %v362
        %vm466 = vcmp.eq.s32.totalorder %v343, %v366
        %vm467 = vcmp.eq.s32.totalorder %v344, %v354
        %vm468 = vcmp.eq.s32.totalorder %v344, %v358
        %vm469 = vcmp.eq.s32.totalorder %v344, %v362
        %vm470 = vcmp.eq.s32.totalorder %v344, %v366
        %vm471 = vcmp.eq.s32.totalorder %v345, %v354
        %vm472 = vcmp.eq.s32.totalorder %v345, %v358
        %vm473 = vcmp.eq.s32.totalorder %v345, %v362
        %vm474 = vcmp.eq.s32.totalorder %v345, %v366
        %vm475 = vcmp.eq.s32.totalorder %v346, %v354
        %vm476 = vcmp.eq.s32.totalorder %v346, %v358
        %vm477 = vcmp.eq.s32.totalorder %v346, %v362
        %vm478 = vcmp.eq.s32.totalorder %v346, %v366
        %vm479 = vcmp.eq.s32.totalorder %v347, %v354
        %vm480 = vcmp.eq.s32.totalorder %v347, %v358
        %vm481 = vcmp.eq.s32.totalorder %v347, %v362
        %vm482 = vcmp.eq.s32.totalorder %v347, %v366
        %vm483 = vcmp.eq.s32.totalorder %v348, %v354
        %vm484 = vcmp.eq.s32.totalorder %v348, %v358
        %vm485 = vcmp.eq.s32.totalorder %v348, %v362
        %vm486 = vcmp.eq.s32.totalorder %v348, %v366
        %vm487 = vcmp.eq.s32.totalorder %v349, %v354
        %vm488 = vcmp.eq.s32.totalorder %v349, %v358
        %vm489 = vcmp.eq.s32.totalorder %v349, %v362
        %vm490 = vcmp.eq.s32.totalorder %v349, %v366
        %vm491 = vcmp.eq.s32.totalorder %v350, %v354
        %vm492 = vcmp.eq.s32.totalorder %v350, %v358
        %vm493 = vcmp.eq.s32.totalorder %v350, %v362
        %vm494 = vcmp.eq.s32.totalorder %v350, %v366
        %v495 = vsel %vm367, 1, 0
        %v496 = vsel %vm368, 1, 0
        %v497 = vsel %vm369, 1, 0
        %v498 = vsel %vm370, 1, 0
        %v499 = vsel %vm371, 1, 0
        %v500 = vsel %vm372, 1, 0
        %v501 = vsel %vm373, 1, 0
        %v502 = vsel %vm374, 1, 0
        %v503 = vsel %vm375, 1, 0
        %v504 = vsel %vm376, 1, 0
        %v505 = vsel %vm377, 1, 0
        %v506 = vsel %vm378, 1, 0
        %v507 = vsel %vm379, 1, 0
        %v508 = vsel %vm380, 1, 0
        %v509 = vsel %vm381, 1, 0
        %v510 = vsel %vm382, 1, 0
        %v511 = vsel %vm383, 1, 0
        %v512 = vsel %vm384, 1, 0
        %v513 = vsel %vm385, 1, 0
        %v514 = vsel %vm386, 1, 0
        %v515 = vsel %vm387, 1, 0
        %v516 = vsel %vm388, 1, 0
        %v517 = vsel %vm389, 1, 0
        %v518 = vsel %vm390, 1, 0
        %v519 = vsel %vm391, 1, 0
        %v520 = vsel %vm392, 1, 0
        %v521 = vsel %vm393, 1, 0
        %v522 = vsel %vm394, 1, 0
        %v523 = vsel %vm395, 1, 0
        %v524 = vsel %vm396, 1, 0
        %v525 = vsel %vm397, 1, 0
        %v526 = vsel %vm398, 1, 0
        %v527 = vsel %vm399, 1, 0
        %v528 = vsel %vm400, 1, 0
        %v529 = vsel %vm401, 1, 0
        %v530 = vsel %vm402, 1, 0
        %v531 = vsel %vm403, 1, 0
        %v532 = vsel %vm404, 1, 0
        %v533 = vsel %vm405, 1, 0
        %v534 = vsel %vm406, 1, 0
        %v535 = vsel %vm407, 1, 0
        %v536 = vsel %vm408, 1, 0
        %v537 = vsel %vm409, 1, 0
        %v538 = vsel %vm410, 1, 0
        %v539 = vsel %vm411, 1, 0
        %v540 = vsel %vm412, 1, 0
        %v541 = vsel %vm413, 1, 0
        %v542 = vsel %vm414, 1, 0
        %v543 = vsel %vm415, 1, 0
        %v544 = vsel %vm416, 1, 0
        %v545 = vsel %vm417, 1, 0
        %v546 = vsel %vm418, 1, 0
        %v547 = vsel %vm419, 1, 0
        %v548 = vsel %vm420, 1, 0
        %v549 = vsel %vm421, 1, 0
        %v550 = vsel %vm422, 1, 0
        %v551 = vsel %vm423, 1, 0
        %v552 = vsel %vm424, 1, 0
        %v553 = vsel %vm425, 1, 0
        %v554 = vsel %vm426, 1, 0
        %v555 = vsel %vm427, 1, 0
        %v556 = vsel %vm428, 1, 0
        %v557 = vsel %vm429, 1, 0
        %v558 = vsel %vm430, 1, 0
        %v559 = vsel %vm431, 1, 0
        %v560 = vsel %vm432, 1, 0
        %v561 = vsel %vm433, 1, 0
        %v562 = vsel %vm434, 1, 0
        %v563 = vsel %vm435, 1, 0
        %v564 = vsel %vm436, 1, 0
        %v565 = vsel %vm437, 1, 0
        %v566 = vsel %vm438, 1, 0
        %v567 = vsel %vm439, 1, 0
        %v568 = vsel %vm440, 1, 0
        %v569 = vsel %vm441, 1, 0
        %v570 = vsel %vm442, 1, 0
        %v571 = vsel %vm443, 1, 0
        %v572 = vsel %vm444, 1, 0
        %v573 = vsel %vm445, 1, 0
        %v574 = vsel %vm446, 1, 0
        %v575 = vsel %vm447, 1, 0
        %v576 = vsel %vm448, 1, 0
        %v577 = vsel %vm449, 1, 0
        %v578 = vsel %vm450, 1, 0
        %v579 = vsel %vm451, 1, 0
        %v580 = vsel %vm452, 1, 0
        %v581 = vsel %vm453, 1, 0
        %v582 = vsel %vm454, 1, 0
        %v583 = vsel %vm455, 1, 0
        %v584 = vsel %vm456, 1, 0
        %v585 = vsel %vm457, 1, 0
        %v586 = vsel %vm458, 1, 0
        %v587 = vsel %vm459, 1, 0
        %v588 = vsel %vm460, 1, 0
        %v589 = vsel %vm461, 1, 0
        %v590 = vsel %vm462, 1, 0
        %v591 = vsel %vm463, 1, 0
        %v592 = vsel %vm464, 1, 0
        %v593 = vsel %vm465, 1, 0
        %v594 = vsel %vm466, 1, 0
        %v595 = vsel %vm467, 1, 0
        %v596 = vsel %vm468, 1, 0
        %v597 = vsel %vm469, 1, 0
        %v598 = vsel %vm470, 1, 0
        %v599 = vsel %vm471, 1, 0
        %v600 = vsel %vm472, 1, 0
        %v601 = vsel %vm473, 1, 0
        %v602 = vsel %vm474, 1, 0
        %v603 = vsel %vm475, 1, 0
        %v604 = vsel %vm476, 1, 0
        %v605 = vsel %vm477, 1, 0
        %v606 = vsel %vm478, 1, 0
        %v607 = vsel %vm479, 1, 0
        %v608 = vsel %vm480, 1, 0
        %v609 = vsel %vm481, 1, 0
        %v610 = vsel %vm482, 1, 0
        %v611 = vsel %vm483, 1, 0
        %v612 = vsel %vm484, 1, 0
        %v613 = vsel %vm485, 1, 0
        %v614 = vsel %vm486, 1, 0
        %v615 = vsel %vm487, 1, 0
        %v616 = vsel %vm488, 1, 0
        %v617 = vsel %vm489, 1, 0
        %v618 = vsel %vm490, 1, 0
        %v619 = vsel %vm491, 1, 0
        %v620 = vsel %vm492, 1, 0
        %v621 = vsel %vm493, 1, 0
        %v622 = vsel %vm494, 1, 0
        %v623 = vcvt.s32.f32 %v495
        %v624 = vcvt.s32.f32 %v496
        %v625 = vcvt.s32.f32 %v497
        %v626 = vcvt.s32.f32 %v498
        %v627 = vcvt.s32.f32 %v499
        %v628 = vcvt.s32.f32 %v500
        %v629 = vcvt.s32.f32 %v501
        %v630 = vcvt.s32.f32 %v502
        %v631 = vcvt.s32.f32 %v503
        %v632 = vcvt.s32.f32 %v504
        %v633 = vcvt.s32.f32 %v505
        %v634 = vcvt.s32.f32 %v506
        %v635 = vcvt.s32.f32 %v507
        %v636 = vcvt.s32.f32 %v508
        %v637 = vcvt.s32.f32 %v509
        %v638 = vcvt.s32.f32 %v510
        %v639 = vcvt.s32.f32 %v511
        %v640 = vcvt.s32.f32 %v512
        %v641 = vcvt.s32.f32 %v513
        %v642 = vcvt.s32.f32 %v514
        %v643 = vcvt.s32.f32 %v515
        %v644 = vcvt.s32.f32 %v516
        %v645 = vcvt.s32.f32 %v517
        %v646 = vcvt.s32.f32 %v518
        %v647 = vcvt.s32.f32 %v519
        %v648 = vcvt.s32.f32 %v520
        %v649 = vcvt.s32.f32 %v521
        %v650 = vcvt.s32.f32 %v522
        %v651 = vcvt.s32.f32 %v523
        %v652 = vcvt.s32.f32 %v524
        %v653 = vcvt.s32.f32 %v525
        %v654 = vcvt.s32.f32 %v526
        %v655 = vcvt.s32.f32 %v527
        %v656 = vcvt.s32.f32 %v528
        %v657 = vcvt.s32.f32 %v529
        %v658 = vcvt.s32.f32 %v530
        %v659 = vcvt.s32.f32 %v531
        %v660 = vcvt.s32.f32 %v532
        %v661 = vcvt.s32.f32 %v533
        %v662 = vcvt.s32.f32 %v534
        %v663 = vcvt.s32.f32 %v535
        %v664 = vcvt.s32.f32 %v536
        %v665 = vcvt.s32.f32 %v537
        %v666 = vcvt.s32.f32 %v538
        %v667 = vcvt.s32.f32 %v539
        %v668 = vcvt.s32.f32 %v540
        %v669 = vcvt.s32.f32 %v541
        %v670 = vcvt.s32.f32 %v542
        %v671 = vcvt.s32.f32 %v543
        %v672 = vcvt.s32.f32 %v544
        %v673 = vcvt.s32.f32 %v545
        %v674 = vcvt.s32.f32 %v546
        %v675 = vcvt.s32.f32 %v547
        %v676 = vcvt.s32.f32 %v548
        %v677 = vcvt.s32.f32 %v549
        %v678 = vcvt.s32.f32 %v550
        %v679 = vcvt.s32.f32 %v551
        %v680 = vcvt.s32.f32 %v552
        %v681 = vcvt.s32.f32 %v553
        %v682 = vcvt.s32.f32 %v554
        %v683 = vcvt.s32.f32 %v555
        %v684 = vcvt.s32.f32 %v556
        %v685 = vcvt.s32.f32 %v557
        %v686 = vcvt.s32.f32 %v558
        %v687 = vcvt.s32.f32 %v559
        %v688 = vcvt.s32.f32 %v560
        %v689 = vcvt.s32.f32 %v561
        %v690 = vcvt.s32.f32 %v562
        %v691 = vcvt.s32.f32 %v563
        %v692 = vcvt.s32.f32 %v564
        %v693 = vcvt.s32.f32 %v565
        %v694 = vcvt.s32.f32 %v566
        %v695 = vcvt.s32.f32 %v567
        %v696 = vcvt.s32.f32 %v568
        %v697 = vcvt.s32.f32 %v569
        %v698 = vcvt.s32.f32 %v570
        %v699 = vcvt.s32.f32 %v571
        %v700 = vcvt.s32.f32 %v572
        %v701 = vcvt.s32.f32 %v573
        %v702 = vcvt.s32.f32 %v574
        %v703 = vcvt.s32.f32 %v575
        %v704 = vcvt.s32.f32 %v576
        %v705 = vcvt.s32.f32 %v577
        %v706 = vcvt.s32.f32 %v578
        %v707 = vcvt.s32.f32 %v579
        %v708 = vcvt.s32.f32 %v580
        %v709 = vcvt.s32.f32 %v581
        %v710 = vcvt.s32.f32 %v582
        %v711 = vcvt.s32.f32 %v583
        %v712 = vcvt.s32.f32 %v584
        %v713 = vcvt.s32.f32 %v585
        %v714 = vcvt.s32.f32 %v586
        %v715 = vcvt.s32.f32 %v587
        %v716 = vcvt.s32.f32 %v588
        %v717 = vcvt.s32.f32 %v589
        %v718 = vcvt.s32.f32 %v590
        %v719 = vcvt.s32.f32 %v591
        %v720 = vcvt.s32.f32 %v592
        %v721 = vcvt.s32.f32 %v593
        %v722 = vcvt.s32.f32 %v594
        %v723 = vcvt.s32.f32 %v595
        %v724 = vcvt.s32.f32 %v596
        %v725 = vcvt.s32.f32 %v597
        %v726 = vcvt.s32.f32 %v598
        %v727 = vcvt.s32.f32 %v599
        %v728 = vcvt.s32.f32 %v600
        %v729 = vcvt.s32.f32 %v601
        %v730 = vcvt.s32.f32 %v602
        %v731 = vcvt.s32.f32 %v603
        %v732 = vcvt.s32.f32 %v604
        %v733 = vcvt.s32.f32 %v605
        %v734 = vcvt.s32.f32 %v606
        %v735 = vcvt.s32.f32 %v607
        %v736 = vcvt.s32.f32 %v608
        %v737 = vcvt.s32.f32 %v609
        %v738 = vcvt.s32.f32 %v610
        %v739 = vcvt.s32.f32 %v611
        %v740 = vcvt.s32.f32 %v612
        %v741 = vcvt.s32.f32 %v613
        %v742 = vcvt.s32.f32 %v614
        %v743 = vcvt.s32.f32 %v615
        %v744 = vcvt.s32.f32 %v616
        %v745 = vcvt.s32.f32 %v617
        %v746 = vcvt.s32.f32 %v618
        %v747 = vcvt.s32.f32 %v619
        %v748 = vcvt.s32.f32 %v620
        %v749 = vcvt.s32.f32 %v621
        %v750 = vcvt.s32.f32 %v622
        %751 = vmatprep.subr.mxu0 %v684
        %752 = vmatpush1.msra.mxu0 %v683
        %753 = vmatprep.subr.mxu0 %v680
        %754 = vmatpush1.msra.mxu0 %v679
        %755 = vmatprep.subr.mxu0 %v676
        %756 = vmatpush1.msra.mxu0 %v675
        %757 = vmatprep.subr.mxu0 %v672
        %758 = vmatpush1.msra.mxu0 %v671
        %759 = vmatprep.subr.mxu0 %v668
        %760 = vmatpush1.msra.mxu0 %v667
        %761 = vmatprep.subr.mxu0 %v664
        %762 = vmatpush1.msra.mxu0 %v663
        %763 = vmatprep.subr.mxu0 %v660
        %764 = vmatpush1.msra.mxu0 %v659
        %765 = vmatprep.subr.mxu0 %v656
        %766 = vmatpush1.msra.mxu0 %v655
        %767 = vmatprep.subr.mxu0 %v652
        %768 = vmatpush1.msra.mxu0 %v651
        %769 = vmatprep.subr.mxu0 %v648
        %770 = vmatpush1.msra.mxu0 %v647
        %771 = vmatprep.subr.mxu0 %v644
        %772 = vmatpush1.msra.mxu0 %v643
        %773 = vmatprep.subr.mxu0 %v640
        %774 = vmatpush1.msra.mxu0 %v639
        %775 = vmatprep.subr.mxu0 %v636
        %776 = vmatpush1.msra.mxu0 %v635
        %777 = vmatprep.subr.mxu0 %v632
        %778 = vmatpush1.msra.mxu0 %v631
        %779 = vmatprep.subr.mxu0 %v628
        %780 = vmatpush1.msra.mxu0 %v627
        %781 = vmatprep.subr.mxu0 %v624
        %782 = vmatpush1.msra.mxu0 %v623
        %783 = vmatprep.subr.mxu0 %v748
        %784 = vmatpush2.msra.mxu0 %v747
        %785 = vmatprep.subr.mxu0 %v744
        %786 = vmatpush2.msra.mxu0 %v743
        %787 = vmatprep.subr.mxu0 %v740
        %788 = vmatpush2.msra.mxu0 %v739
        %789 = vmatprep.subr.mxu0 %v736
        %790 = vmatpush2.msra.mxu0 %v735
        %791 = vmatprep.subr.mxu0 %v732
        %792 = vmatpush2.msra.mxu0 %v731
        %793 = vmatprep.subr.mxu0 %v728
        %794 = vmatpush2.msra.mxu0 %v727
        %795 = vmatprep.subr.mxu0 %v724
        %796 = vmatpush2.msra.mxu0 %v723
        %797 = vmatprep.subr.mxu0 %v720
        %798 = vmatpush2.msra.mxu0 %v719
        %799 = vmatprep.subr.mxu0 %v716
        %800 = vmatpush2.msra.mxu0 %v715
        %801 = vmatprep.subr.mxu0 %v712
        %802 = vmatpush2.msra.mxu0 %v711
        %803 = vmatprep.subr.mxu0 %v708
        %804 = vmatpush2.msra.mxu0 %v707
        %805 = vmatprep.subr.mxu0 %v704
        %806 = vmatpush2.msra.mxu0 %v703
        %807 = vmatprep.subr.mxu0 %v700
        %808 = vmatpush2.msra.mxu0 %v699
        %809 = vmatprep.subr.mxu0 %v696
        %810 = vmatpush2.msra.mxu0 %v695
        %811 = vmatprep.subr.mxu0 %v692
        %812 = vmatpush2.msra.mxu0 %v691
        %813 = vmatprep.subr.mxu0 %v688
        %814 = vmatpush2.msra.mxu0 %v687
        %815 = vmatprep.mubr.f32.mxu0 %v294
        %816 = vmatmul.mubr.f32.gmra.mxu0 %v293
        %v817 = vpop.f32.mrf.mxu0
        %v818 = vadd.f32 0.0, %v817
        %v819 = vpop.f32.mrf.mxu0
        %v820 = vadd.f32 0.0, %v819
        %821 = vmatprep.mubr.f32.mxu0 %v296
        %822 = vmatmul.mubr.f32.gmra.mxu0 %v295
        %v823 = vpop.f32.mrf.mxu0
        %v824 = vadd.f32 0.0, %v823
        %v825 = vpop.f32.mrf.mxu0
        %v826 = vadd.f32 0.0, %v825
        %827 = vmatprep.mubr.f32.mxu0 %v298
        %828 = vmatmul.mubr.f32.gmra.mxu0 %v297
        %v829 = vpop.f32.mrf.mxu0
        %v830 = vadd.f32 0.0, %v829
        %v831 = vpop.f32.mrf.mxu0
        %v832 = vadd.f32 0.0, %v831
        %833 = vmatprep.mubr.f32.mxu0 %v300
        %834 = vmatmul.mubr.f32.gmra.mxu0 %v299
        %v835 = vpop.f32.mrf.mxu0
        %v836 = vadd.f32 0.0, %v835
        %v837 = vpop.f32.mrf.mxu0
        %v838 = vadd.f32 0.0, %v837
        %839 = vdwg.mxu0
        %840 = vmatprep.subr.mxu0 %v686
        %841 = vmatpush1.msra.mxu0 %v685
        %842 = vmatprep.subr.mxu0 %v682
        %843 = vmatpush1.msra.mxu0 %v681
        %844 = vmatprep.subr.mxu0 %v678
        %845 = vmatpush1.msra.mxu0 %v677
        %846 = vmatprep.subr.mxu0 %v674
        %847 = vmatpush1.msra.mxu0 %v673
        %848 = vmatprep.subr.mxu0 %v670
        %849 = vmatpush1.msra.mxu0 %v669
        %850 = vmatprep.subr.mxu0 %v666
        %851 = vmatpush1.msra.mxu0 %v665
        %852 = vmatprep.subr.mxu0 %v662
        %853 = vmatpush1.msra.mxu0 %v661
        %854 = vmatprep.subr.mxu0 %v658
        %855 = vmatpush1.msra.mxu0 %v657
        %856 = vmatprep.subr.mxu0 %v654
        %857 = vmatpush1.msra.mxu0 %v653
        %858 = vmatprep.subr.mxu0 %v650
        %859 = vmatpush1.msra.mxu0 %v649
        %860 = vmatprep.subr.mxu0 %v646
        %861 = vmatpush1.msra.mxu0 %v645
        %862 = vmatprep.subr.mxu0 %v642
        %863 = vmatpush1.msra.mxu0 %v641
        %864 = vmatprep.subr.mxu0 %v638
        %865 = vmatpush1.msra.mxu0 %v637
        %866 = vmatprep.subr.mxu0 %v634
        %867 = vmatpush1.msra.mxu0 %v633
        %868 = vmatprep.subr.mxu0 %v630
        %869 = vmatpush1.msra.mxu0 %v629
        %870 = vmatprep.subr.mxu0 %v626
        %871 = vmatpush1.msra.mxu0 %v625
        %872 = vmatprep.subr.mxu0 %v750
        %873 = vmatpush2.msra.mxu0 %v749
        %874 = vmatprep.subr.mxu0 %v746
        %875 = vmatpush2.msra.mxu0 %v745
        %876 = vmatprep.subr.mxu0 %v742
        %877 = vmatpush2.msra.mxu0 %v741
        %878 = vmatprep.subr.mxu0 %v738
        %879 = vmatpush2.msra.mxu0 %v737
        %880 = vmatprep.subr.mxu0 %v734
        %881 = vmatpush2.msra.mxu0 %v733
        %882 = vmatprep.subr.mxu0 %v730
        %883 = vmatpush2.msra.mxu0 %v729
        %884 = vmatprep.subr.mxu0 %v726
        %885 = vmatpush2.msra.mxu0 %v725
        %886 = vmatprep.subr.mxu0 %v722
        %887 = vmatpush2.msra.mxu0 %v721
        %888 = vmatprep.subr.mxu0 %v718
        %889 = vmatpush2.msra.mxu0 %v717
        %890 = vmatprep.subr.mxu0 %v714
        %891 = vmatpush2.msra.mxu0 %v713
        %892 = vmatprep.subr.mxu0 %v710
        %893 = vmatpush2.msra.mxu0 %v709
        %894 = vmatprep.subr.mxu0 %v706
        %895 = vmatpush2.msra.mxu0 %v705
        %896 = vmatprep.subr.mxu0 %v702
        %897 = vmatpush2.msra.mxu0 %v701
        %898 = vmatprep.subr.mxu0 %v698
        %899 = vmatpush2.msra.mxu0 %v697
        %900 = vmatprep.subr.mxu0 %v694
        %901 = vmatpush2.msra.mxu0 %v693
        %902 = vmatprep.subr.mxu0 %v690
        %903 = vmatpush2.msra.mxu0 %v689
        %904 = vmatprep.mubr.f32.mxu0 %v294
        %905 = vmatmul.mubr.f32.gmra.mxu0 %v293
        %v906 = vpop.f32.mrf.mxu0
        %v907 = vadd.f32 0.0, %v906
        %v908 = vpop.f32.mrf.mxu0
        %v909 = vadd.f32 0.0, %v908
        %910 = vmatprep.mubr.f32.mxu0 %v296
        %911 = vmatmul.mubr.f32.gmra.mxu0 %v295
        %v912 = vpop.f32.mrf.mxu0
        %v913 = vadd.f32 0.0, %v912
        %v914 = vpop.f32.mrf.mxu0
        %v915 = vadd.f32 0.0, %v914
        %916 = vmatprep.mubr.f32.mxu0 %v298
        %917 = vmatmul.mubr.f32.gmra.mxu0 %v297
        %v918 = vpop.f32.mrf.mxu0
        %v919 = vadd.f32 0.0, %v918
        %v920 = vpop.f32.mrf.mxu0
        %v921 = vadd.f32 0.0, %v920
        %922 = vmatprep.mubr.f32.mxu0 %v300
        %923 = vmatmul.mubr.f32.gmra.mxu0 %v299
        %v924 = vpop.f32.mrf.mxu0
        %v925 = vadd.f32 0.0, %v924
        %v926 = vpop.f32.mrf.mxu0
        %v927 = vadd.f32 0.0, %v926
        %928 = vdwg.mxu0
        %v929 = vld [vmem:[%s280] sm:$0xf]
        %v930 = vadd.s32 %v319, 256
        %v931 = vadd.s32 %v319, 264
        %v932 = vadd.s32 %v319, 272
        %v933 = vadd.s32 %v319, 280
        %v934 = vadd.s32 %v319, 288
        %v935 = vadd.s32 %v319, 296
        %v936 = vadd.s32 %v319, 304
        %v937 = vadd.s32 %v319, 312
        %v938 = vadd.s32 %v319, 320
        %v939 = vadd.s32 %v319, 328
        %v940 = vadd.s32 %v319, 336
        %v941 = vadd.s32 %v319, 344
        %v942 = vadd.s32 %v319, 352
        %v943 = vadd.s32 %v319, 360
        %v944 = vadd.s32 %v319, 368
        %v945 = vadd.s32 %v319, 376
        %v946 = vadd.s32 %v319, 384
        %v947 = vadd.s32 %v319, 392
        %v948 = vadd.s32 %v319, 400
        %v949 = vadd.s32 %v319, 408
        %v950 = vadd.s32 %v319, 416
        %v951 = vadd.s32 %v319, 424
        %v952 = vadd.s32 %v319, 432
        %v953 = vadd.s32 %v319, 440
        %v954 = vadd.s32 %v319, 448
        %v955 = vadd.s32 %v319, 456
        %v956 = vadd.s32 %v319, 464
        %v957 = vadd.s32 %v319, 472
        %v958 = vadd.s32 %v319, 480
        %v959 = vadd.s32 %v319, 488
        %v960 = vadd.s32 %v319, 496
        %v961 = vadd.s32 %v319, 504
        %v962 = vlaneseq
        %v963 = vshrl.u32 %v962, 7
        %v964 = vsub.s32 0, %v963
        %v965 = vrot.slane %v929, %v964
        %v966 = vlaneseq
        %v967 = vshrl.u32 %v966, 7
        %v968 = vsub.s32 1, %v967
        %v969 = vrot.slane %v929, %v968
        %v970 = vlaneseq
        %v971 = vshrl.u32 %v970, 7
        %v972 = vsub.s32 2, %v971
        %v973 = vrot.slane %v929, %v972
        %v974 = vlaneseq
        %v975 = vshrl.u32 %v974, 7
        %v976 = vsub.s32 3, %v975
        %v977 = vrot.slane %v929, %v976
        %vm978 = vcmp.eq.s32.totalorder %v319, %v965
        %vm979 = vcmp.eq.s32.totalorder %v319, %v969
        %vm980 = vcmp.eq.s32.totalorder %v319, %v973
        %vm981 = vcmp.eq.s32.totalorder %v319, %v977
        %vm982 = vcmp.eq.s32.totalorder %v320, %v965
        %vm983 = vcmp.eq.s32.totalorder %v320, %v969
        %vm984 = vcmp.eq.s32.totalorder %v320, %v973
        %vm985 = vcmp.eq.s32.totalorder %v320, %v977
        %vm986 = vcmp.eq.s32.totalorder %v321, %v965
        %vm987 = vcmp.eq.s32.totalorder %v321, %v969
        %vm988 = vcmp.eq.s32.totalorder %v321, %v973
        %vm989 = vcmp.eq.s32.totalorder %v321, %v977
        %vm990 = vcmp.eq.s32.totalorder %v322, %v965
        %vm991 = vcmp.eq.s32.totalorder %v322, %v969
        %vm992 = vcmp.eq.s32.totalorder %v322, %v973
        %vm993 = vcmp.eq.s32.totalorder %v322, %v977
        %vm994 = vcmp.eq.s32.totalorder %v323, %v965
        %vm995 = vcmp.eq.s32.totalorder %v323, %v969
        %vm996 = vcmp.eq.s32.totalorder %v323, %v973
        %vm997 = vcmp.eq.s32.totalorder %v323, %v977
        %vm998 = vcmp.eq.s32.totalorder %v324, %v965
        %vm999 = vcmp.eq.s32.totalorder %v324, %v969
        %vm1000 = vcmp.eq.s32.totalorder %v324, %v973
        %vm1001 = vcmp.eq.s32.totalorder %v324, %v977
        %vm1002 = vcmp.eq.s32.totalorder %v325, %v965
        %vm1003 = vcmp.eq.s32.totalorder %v325, %v969
        %vm1004 = vcmp.eq.s32.totalorder %v325, %v973
        %vm1005 = vcmp.eq.s32.totalorder %v325, %v977
        %vm1006 = vcmp.eq.s32.totalorder %v326, %v965
        %vm1007 = vcmp.eq.s32.totalorder %v326, %v969
        %vm1008 = vcmp.eq.s32.totalorder %v326, %v973
        %vm1009 = vcmp.eq.s32.totalorder %v326, %v977
        %vm1010 = vcmp.eq.s32.totalorder %v327, %v965
        %vm1011 = vcmp.eq.s32.totalorder %v327, %v969
        %vm1012 = vcmp.eq.s32.totalorder %v327, %v973
        %vm1013 = vcmp.eq.s32.totalorder %v327, %v977
        %vm1014 = vcmp.eq.s32.totalorder %v328, %v965
        %vm1015 = vcmp.eq.s32.totalorder %v328, %v969
        %vm1016 = vcmp.eq.s32.totalorder %v328, %v973
        %vm1017 = vcmp.eq.s32.totalorder %v328, %v977
        %vm1018 = vcmp.eq.s32.totalorder %v329, %v965
        %vm1019 = vcmp.eq.s32.totalorder %v329, %v969
        %vm1020 = vcmp.eq.s32.totalorder %v329, %v973
        %vm1021 = vcmp.eq.s32.totalorder %v329, %v977
        %vm1022 = vcmp.eq.s32.totalorder %v330, %v965
        %vm1023 = vcmp.eq.s32.totalorder %v330, %v969
        %vm1024 = vcmp.eq.s32.totalorder %v330, %v973
        %vm1025 = vcmp.eq.s32.totalorder %v330, %v977
        %vm1026 = vcmp.eq.s32.totalorder %v331, %v965
        %vm1027 = vcmp.eq.s32.totalorder %v331, %v969
        %vm1028 = vcmp.eq.s32.totalorder %v331, %v973
        %vm1029 = vcmp.eq.s32.totalorder %v331, %v977
        %vm1030 = vcmp.eq.s32.totalorder %v332, %v965
        %vm1031 = vcmp.eq.s32.totalorder %v332, %v969
        %vm1032 = vcmp.eq.s32.totalorder %v332, %v973
        %vm1033 = vcmp.eq.s32.totalorder %v332, %v977
        %vm1034 = vcmp.eq.s32.totalorder %v333, %v965
        %vm1035 = vcmp.eq.s32.totalorder %v333, %v969
        %vm1036 = vcmp.eq.s32.totalorder %v333, %v973
        %vm1037 = vcmp.eq.s32.totalorder %v333, %v977
        %vm1038 = vcmp.eq.s32.totalorder %v334, %v965
        %vm1039 = vcmp.eq.s32.totalorder %v334, %v969
        %vm1040 = vcmp.eq.s32.totalorder %v334, %v973
        %vm1041 = vcmp.eq.s32.totalorder %v334, %v977
        %vm1042 = vcmp.eq.s32.totalorder %v335, %v965
        %vm1043 = vcmp.eq.s32.totalorder %v335, %v969
        %vm1044 = vcmp.eq.s32.totalorder %v335, %v973
        %vm1045 = vcmp.eq.s32.totalorder %v335, %v977
        %vm1046 = vcmp.eq.s32.totalorder %v336, %v965
        %vm1047 = vcmp.eq.s32.totalorder %v336, %v969
        %vm1048 = vcmp.eq.s32.totalorder %v336, %v973
        %vm1049 = vcmp.eq.s32.totalorder %v336, %v977
        %vm1050 = vcmp.eq.s32.totalorder %v337, %v965
        %vm1051 = vcmp.eq.s32.totalorder %v337, %v969
        %vm1052 = vcmp.eq.s32.totalorder %v337, %v973
        %vm1053 = vcmp.eq.s32.totalorder %v337, %v977
        %vm1054 = vcmp.eq.s32.totalorder %v338, %v965
        %vm1055 = vcmp.eq.s32.totalorder %v338, %v969
        %vm1056 = vcmp.eq.s32.totalorder %v338, %v973
        %vm1057 = vcmp.eq.s32.totalorder %v338, %v977
        %vm1058 = vcmp.eq.s32.totalorder %v339, %v965
        %vm1059 = vcmp.eq.s32.totalorder %v339, %v969
        %vm1060 = vcmp.eq.s32.totalorder %v339, %v973
        %vm1061 = vcmp.eq.s32.totalorder %v339, %v977
        %vm1062 = vcmp.eq.s32.totalorder %v340, %v965
        %vm1063 = vcmp.eq.s32.totalorder %v340, %v969
        %vm1064 = vcmp.eq.s32.totalorder %v340, %v973
        %vm1065 = vcmp.eq.s32.totalorder %v340, %v977
        %vm1066 = vcmp.eq.s32.totalorder %v341, %v965
        %vm1067 = vcmp.eq.s32.totalorder %v341, %v969
        %vm1068 = vcmp.eq.s32.totalorder %v341, %v973
        %vm1069 = vcmp.eq.s32.totalorder %v341, %v977
        %vm1070 = vcmp.eq.s32.totalorder %v342, %v965
        %vm1071 = vcmp.eq.s32.totalorder %v342, %v969
        %vm1072 = vcmp.eq.s32.totalorder %v342, %v973
        %vm1073 = vcmp.eq.s32.totalorder %v342, %v977
        %vm1074 = vcmp.eq.s32.totalorder %v343, %v965
        %vm1075 = vcmp.eq.s32.totalorder %v343, %v969
        %vm1076 = vcmp.eq.s32.totalorder %v343, %v973
        %vm1077 = vcmp.eq.s32.totalorder %v343, %v977
        %vm1078 = vcmp.eq.s32.totalorder %v344, %v965
        %vm1079 = vcmp.eq.s32.totalorder %v344, %v969
        %vm1080 = vcmp.eq.s32.totalorder %v344, %v973
        %vm1081 = vcmp.eq.s32.totalorder %v344, %v977
        %vm1082 = vcmp.eq.s32.totalorder %v345, %v965
        %vm1083 = vcmp.eq.s32.totalorder %v345, %v969
        %vm1084 = vcmp.eq.s32.totalorder %v345, %v973
        %vm1085 = vcmp.eq.s32.totalorder %v345, %v977
        %vm1086 = vcmp.eq.s32.totalorder %v346, %v965
        %vm1087 = vcmp.eq.s32.totalorder %v346, %v969
        %vm1088 = vcmp.eq.s32.totalorder %v346, %v973
        %vm1089 = vcmp.eq.s32.totalorder %v346, %v977
        %vm1090 = vcmp.eq.s32.totalorder %v347, %v965
        %vm1091 = vcmp.eq.s32.totalorder %v347, %v969
        %vm1092 = vcmp.eq.s32.totalorder %v347, %v973
        %vm1093 = vcmp.eq.s32.totalorder %v347, %v977
        %vm1094 = vcmp.eq.s32.totalorder %v348, %v965
        %vm1095 = vcmp.eq.s32.totalorder %v348, %v969
        %vm1096 = vcmp.eq.s32.totalorder %v348, %v973
        %vm1097 = vcmp.eq.s32.totalorder %v348, %v977
        %vm1098 = vcmp.eq.s32.totalorder %v349, %v965
        %vm1099 = vcmp.eq.s32.totalorder %v349, %v969
        %vm1100 = vcmp.eq.s32.totalorder %v349, %v973
        %vm1101 = vcmp.eq.s32.totalorder %v349, %v977
        %vm1102 = vcmp.eq.s32.totalorder %v350, %v965
        %vm1103 = vcmp.eq.s32.totalorder %v350, %v969
        %vm1104 = vcmp.eq.s32.totalorder %v350, %v973
        %vm1105 = vcmp.eq.s32.totalorder %v350, %v977
        %vm1106 = vcmp.eq.s32.totalorder %v930, %v965
        %vm1107 = vcmp.eq.s32.totalorder %v930, %v969
        %vm1108 = vcmp.eq.s32.totalorder %v930, %v973
        %vm1109 = vcmp.eq.s32.totalorder %v930, %v977
        %vm1110 = vcmp.eq.s32.totalorder %v931, %v965
        %vm1111 = vcmp.eq.s32.totalorder %v931, %v969
        %vm1112 = vcmp.eq.s32.totalorder %v931, %v973
        %vm1113 = vcmp.eq.s32.totalorder %v931, %v977
        %vm1114 = vcmp.eq.s32.totalorder %v932, %v965
        %vm1115 = vcmp.eq.s32.totalorder %v932, %v969
        %vm1116 = vcmp.eq.s32.totalorder %v932, %v973
        %vm1117 = vcmp.eq.s32.totalorder %v932, %v977
        %vm1118 = vcmp.eq.s32.totalorder %v933, %v965
        %vm1119 = vcmp.eq.s32.totalorder %v933, %v969
        %vm1120 = vcmp.eq.s32.totalorder %v933, %v973
        %vm1121 = vcmp.eq.s32.totalorder %v933, %v977
        %vm1122 = vcmp.eq.s32.totalorder %v934, %v965
        %vm1123 = vcmp.eq.s32.totalorder %v934, %v969
        %vm1124 = vcmp.eq.s32.totalorder %v934, %v973
        %vm1125 = vcmp.eq.s32.totalorder %v934, %v977
        %vm1126 = vcmp.eq.s32.totalorder %v935, %v965
        %vm1127 = vcmp.eq.s32.totalorder %v935, %v969
        %vm1128 = vcmp.eq.s32.totalorder %v935, %v973
        %vm1129 = vcmp.eq.s32.totalorder %v935, %v977
        %vm1130 = vcmp.eq.s32.totalorder %v936, %v965
        %vm1131 = vcmp.eq.s32.totalorder %v936, %v969
        %vm1132 = vcmp.eq.s32.totalorder %v936, %v973
        %vm1133 = vcmp.eq.s32.totalorder %v936, %v977
        %vm1134 = vcmp.eq.s32.totalorder %v937, %v965
        %vm1135 = vcmp.eq.s32.totalorder %v937, %v969
        %vm1136 = vcmp.eq.s32.totalorder %v937, %v973
        %vm1137 = vcmp.eq.s32.totalorder %v937, %v977
        %vm1138 = vcmp.eq.s32.totalorder %v938, %v965
        %vm1139 = vcmp.eq.s32.totalorder %v938, %v969
        %vm1140 = vcmp.eq.s32.totalorder %v938, %v973
        %vm1141 = vcmp.eq.s32.totalorder %v938, %v977
        %vm1142 = vcmp.eq.s32.totalorder %v939, %v965
        %vm1143 = vcmp.eq.s32.totalorder %v939, %v969
        %vm1144 = vcmp.eq.s32.totalorder %v939, %v973
        %vm1145 = vcmp.eq.s32.totalorder %v939, %v977
        %vm1146 = vcmp.eq.s32.totalorder %v940, %v965
        %vm1147 = vcmp.eq.s32.totalorder %v940, %v969
        %vm1148 = vcmp.eq.s32.totalorder %v940, %v973
        %vm1149 = vcmp.eq.s32.totalorder %v940, %v977
        %vm1150 = vcmp.eq.s32.totalorder %v941, %v965
        %vm1151 = vcmp.eq.s32.totalorder %v941, %v969
        %vm1152 = vcmp.eq.s32.totalorder %v941, %v973
        %vm1153 = vcmp.eq.s32.totalorder %v941, %v977
        %vm1154 = vcmp.eq.s32.totalorder %v942, %v965
        %vm1155 = vcmp.eq.s32.totalorder %v942, %v969
        %vm1156 = vcmp.eq.s32.totalorder %v942, %v973
        %vm1157 = vcmp.eq.s32.totalorder %v942, %v977
        %vm1158 = vcmp.eq.s32.totalorder %v943, %v965
        %vm1159 = vcmp.eq.s32.totalorder %v943, %v969
        %vm1160 = vcmp.eq.s32.totalorder %v943, %v973
        %vm1161 = vcmp.eq.s32.totalorder %v943, %v977
        %vm1162 = vcmp.eq.s32.totalorder %v944, %v965
        %vm1163 = vcmp.eq.s32.totalorder %v944, %v969
        %vm1164 = vcmp.eq.s32.totalorder %v944, %v973
        %vm1165 = vcmp.eq.s32.totalorder %v944, %v977
        %vm1166 = vcmp.eq.s32.totalorder %v945, %v965
        %vm1167 = vcmp.eq.s32.totalorder %v945, %v969
        %vm1168 = vcmp.eq.s32.totalorder %v945, %v973
        %vm1169 = vcmp.eq.s32.totalorder %v945, %v977
        %vm1170 = vcmp.eq.s32.totalorder %v946, %v965
        %vm1171 = vcmp.eq.s32.totalorder %v946, %v969
        %vm1172 = vcmp.eq.s32.totalorder %v946, %v973
        %vm1173 = vcmp.eq.s32.totalorder %v946, %v977
        %vm1174 = vcmp.eq.s32.totalorder %v947, %v965
        %vm1175 = vcmp.eq.s32.totalorder %v947, %v969
        %vm1176 = vcmp.eq.s32.totalorder %v947, %v973
        %vm1177 = vcmp.eq.s32.totalorder %v947, %v977
        %vm1178 = vcmp.eq.s32.totalorder %v948, %v965
        %vm1179 = vcmp.eq.s32.totalorder %v948, %v969
        %vm1180 = vcmp.eq.s32.totalorder %v948, %v973
        %vm1181 = vcmp.eq.s32.totalorder %v948, %v977
        %vm1182 = vcmp.eq.s32.totalorder %v949, %v965
        %vm1183 = vcmp.eq.s32.totalorder %v949, %v969
        %vm1184 = vcmp.eq.s32.totalorder %v949, %v973
        %vm1185 = vcmp.eq.s32.totalorder %v949, %v977
        %vm1186 = vcmp.eq.s32.totalorder %v950, %v965
        %vm1187 = vcmp.eq.s32.totalorder %v950, %v969
        %vm1188 = vcmp.eq.s32.totalorder %v950, %v973
        %vm1189 = vcmp.eq.s32.totalorder %v950, %v977
        %vm1190 = vcmp.eq.s32.totalorder %v951, %v965
        %vm1191 = vcmp.eq.s32.totalorder %v951, %v969
        %vm1192 = vcmp.eq.s32.totalorder %v951, %v973
        %vm1193 = vcmp.eq.s32.totalorder %v951, %v977
        %vm1194 = vcmp.eq.s32.totalorder %v952, %v965
        %vm1195 = vcmp.eq.s32.totalorder %v952, %v969
        %vm1196 = vcmp.eq.s32.totalorder %v952, %v973
        %vm1197 = vcmp.eq.s32.totalorder %v952, %v977
        %vm1198 = vcmp.eq.s32.totalorder %v953, %v965
        %vm1199 = vcmp.eq.s32.totalorder %v953, %v969
        %vm1200 = vcmp.eq.s32.totalorder %v953, %v973
        %vm1201 = vcmp.eq.s32.totalorder %v953, %v977
        %vm1202 = vcmp.eq.s32.totalorder %v954, %v965
        %vm1203 = vcmp.eq.s32.totalorder %v954, %v969
        %vm1204 = vcmp.eq.s32.totalorder %v954, %v973
        %vm1205 = vcmp.eq.s32.totalorder %v954, %v977
        %vm1206 = vcmp.eq.s32.totalorder %v955, %v965
        %vm1207 = vcmp.eq.s32.totalorder %v955, %v969
        %vm1208 = vcmp.eq.s32.totalorder %v955, %v973
        %vm1209 = vcmp.eq.s32.totalorder %v955, %v977
        %vm1210 = vcmp.eq.s32.totalorder %v956, %v965
        %vm1211 = vcmp.eq.s32.totalorder %v956, %v969
        %vm1212 = vcmp.eq.s32.totalorder %v956, %v973
        %vm1213 = vcmp.eq.s32.totalorder %v956, %v977
        %vm1214 = vcmp.eq.s32.totalorder %v957, %v965
        %vm1215 = vcmp.eq.s32.totalorder %v957, %v969
        %vm1216 = vcmp.eq.s32.totalorder %v957, %v973
        %vm1217 = vcmp.eq.s32.totalorder %v957, %v977
        %vm1218 = vcmp.eq.s32.totalorder %v958, %v965
        %vm1219 = vcmp.eq.s32.totalorder %v958, %v969
        %vm1220 = vcmp.eq.s32.totalorder %v958, %v973
        %vm1221 = vcmp.eq.s32.totalorder %v958, %v977
        %vm1222 = vcmp.eq.s32.totalorder %v959, %v965
        %vm1223 = vcmp.eq.s32.totalorder %v959, %v969
        %vm1224 = vcmp.eq.s32.totalorder %v959, %v973
        %vm1225 = vcmp.eq.s32.totalorder %v959, %v977
        %vm1226 = vcmp.eq.s32.totalorder %v960, %v965
        %vm1227 = vcmp.eq.s32.totalorder %v960, %v969
        %vm1228 = vcmp.eq.s32.totalorder %v960, %v973
        %vm1229 = vcmp.eq.s32.totalorder %v960, %v977
        %vm1230 = vcmp.eq.s32.totalorder %v961, %v965
        %vm1231 = vcmp.eq.s32.totalorder %v961, %v969
        %vm1232 = vcmp.eq.s32.totalorder %v961, %v973
        %vm1233 = vcmp.eq.s32.totalorder %v961, %v977
        %v1234 = vsel %vm978, 1, 0
        %v1235 = vsel %vm979, 1, 0
        %v1236 = vsel %vm980, 1, 0
        %v1237 = vsel %vm981, 1, 0
        %v1238 = vsel %vm982, 1, 0
        %v1239 = vsel %vm983, 1, 0
        %v1240 = vsel %vm984, 1, 0
        %v1241 = vsel %vm985, 1, 0
        %v1242 = vsel %vm986, 1, 0
        %v1243 = vsel %vm987, 1, 0
        %v1244 = vsel %vm988, 1, 0
        %v1245 = vsel %vm989, 1, 0
        %v1246 = vsel %vm990, 1, 0
        %v1247 = vsel %vm991, 1, 0
        %v1248 = vsel %vm992, 1, 0
        %v1249 = vsel %vm993, 1, 0
        %v1250 = vsel %vm994, 1, 0
        %v1251 = vsel %vm995, 1, 0
        %v1252 = vsel %vm996, 1, 0
        %v1253 = vsel %vm997, 1, 0
        %v1254 = vsel %vm998, 1, 0
        %v1255 = vsel %vm999, 1, 0
        %v1256 = vsel %vm1000, 1, 0
        %v1257 = vsel %vm1001, 1, 0
        %v1258 = vsel %vm1002, 1, 0
        %v1259 = vsel %vm1003, 1, 0
        %v1260 = vsel %vm1004, 1, 0
        %v1261 = vsel %vm1005, 1, 0
        %v1262 = vsel %vm1006, 1, 0
        %v1263 = vsel %vm1007, 1, 0
        %v1264 = vsel %vm1008, 1, 0
        %v1265 = vsel %vm1009, 1, 0
        %v1266 = vsel %vm1010, 1, 0
        %v1267 = vsel %vm1011, 1, 0
        %v1268 = vsel %vm1012, 1, 0
        %v1269 = vsel %vm1013, 1, 0
        %v1270 = vsel %vm1014, 1, 0
        %v1271 = vsel %vm1015, 1, 0
        %v1272 = vsel %vm1016, 1, 0
        %v1273 = vsel %vm1017, 1, 0
        %v1274 = vsel %vm1018, 1, 0
        %v1275 = vsel %vm1019, 1, 0
        %v1276 = vsel %vm1020, 1, 0
        %v1277 = vsel %vm1021, 1, 0
        %v1278 = vsel %vm1022, 1, 0
        %v1279 = vsel %vm1023, 1, 0
        %v1280 = vsel %vm1024, 1, 0
        %v1281 = vsel %vm1025, 1, 0
        %v1282 = vsel %vm1026, 1, 0
        %v1283 = vsel %vm1027, 1, 0
        %v1284 = vsel %vm1028, 1, 0
        %v1285 = vsel %vm1029, 1, 0
        %v1286 = vsel %vm1030, 1, 0
        %v1287 = vsel %vm1031, 1, 0
        %v1288 = vsel %vm1032, 1, 0
        %v1289 = vsel %vm1033, 1, 0
        %v1290 = vsel %vm1034, 1, 0
        %v1291 = vsel %vm1035, 1, 0
        %v1292 = vsel %vm1036, 1, 0
        %v1293 = vsel %vm1037, 1, 0
        %v1294 = vsel %vm1038, 1, 0
        %v1295 = vsel %vm1039, 1, 0
        %v1296 = vsel %vm1040, 1, 0
        %v1297 = vsel %vm1041, 1, 0
        %v1298 = vsel %vm1042, 1, 0
        %v1299 = vsel %vm1043, 1, 0
        %v1300 = vsel %vm1044, 1, 0
        %v1301 = vsel %vm1045, 1, 0
        %v1302 = vsel %vm1046, 1, 0
        %v1303 = vsel %vm1047, 1, 0
        %v1304 = vsel %vm1048, 1, 0
        %v1305 = vsel %vm1049, 1, 0
        %v1306 = vsel %vm1050, 1, 0
        %v1307 = vsel %vm1051, 1, 0
        %v1308 = vsel %vm1052, 1, 0
        %v1309 = vsel %vm1053, 1, 0
        %v1310 = vsel %vm1054, 1, 0
        %v1311 = vsel %vm1055, 1, 0
        %v1312 = vsel %vm1056, 1, 0
        %v1313 = vsel %vm1057, 1, 0
        %v1314 = vsel %vm1058, 1, 0
        %v1315 = vsel %vm1059, 1, 0
        %v1316 = vsel %vm1060, 1, 0
        %v1317 = vsel %vm1061, 1, 0
        %v1318 = vsel %vm1062, 1, 0
        %v1319 = vsel %vm1063, 1, 0
        %v1320 = vsel %vm1064, 1, 0
        %v1321 = vsel %vm1065, 1, 0
        %v1322 = vsel %vm1066, 1, 0
        %v1323 = vsel %vm1067, 1, 0
        %v1324 = vsel %vm1068, 1, 0
        %v1325 = vsel %vm1069, 1, 0
        %v1326 = vsel %vm1070, 1, 0
        %v1327 = vsel %vm1071, 1, 0
        %v1328 = vsel %vm1072, 1, 0
        %v1329 = vsel %vm1073, 1, 0
        %v1330 = vsel %vm1074, 1, 0
        %v1331 = vsel %vm1075, 1, 0
        %v1332 = vsel %vm1076, 1, 0
        %v1333 = vsel %vm1077, 1, 0
        %v1334 = vsel %vm1078, 1, 0
        %v1335 = vsel %vm1079, 1, 0
        %v1336 = vsel %vm1080, 1, 0
        %v1337 = vsel %vm1081, 1, 0
        %v1338 = vsel %vm1082, 1, 0
        %v1339 = vsel %vm1083, 1, 0
        %v1340 = vsel %vm1084, 1, 0
        %v1341 = vsel %vm1085, 1, 0
        %v1342 = vsel %vm1086, 1, 0
        %v1343 = vsel %vm1087, 1, 0
        %v1344 = vsel %vm1088, 1, 0
        %v1345 = vsel %vm1089, 1, 0
        %v1346 = vsel %vm1090, 1, 0
        %v1347 = vsel %vm1091, 1, 0
        %v1348 = vsel %vm1092, 1, 0
        %v1349 = vsel %vm1093, 1, 0
        %v1350 = vsel %vm1094, 1, 0
        %v1351 = vsel %vm1095, 1, 0
        %v1352 = vsel %vm1096, 1, 0
        %v1353 = vsel %vm1097, 1, 0
        %v1354 = vsel %vm1098, 1, 0
        %v1355 = vsel %vm1099, 1, 0
        %v1356 = vsel %vm1100, 1, 0
        %v1357 = vsel %vm1101, 1, 0
        %v1358 = vsel %vm1102, 1, 0
        %v1359 = vsel %vm1103, 1, 0
        %v1360 = vsel %vm1104, 1, 0
        %v1361 = vsel %vm1105, 1, 0
        %v1362 = vsel %vm1106, 1, 0
        %v1363 = vsel %vm1107, 1, 0
        %v1364 = vsel %vm1108, 1, 0
        %v1365 = vsel %vm1109, 1, 0
        %v1366 = vsel %vm1110, 1, 0
        %v1367 = vsel %vm1111, 1, 0
        %v1368 = vsel %vm1112, 1, 0
        %v1369 = vsel %vm1113, 1, 0
        %v1370 = vsel %vm1114, 1, 0
        %v1371 = vsel %vm1115, 1, 0
        %v1372 = vsel %vm1116, 1, 0
        %v1373 = vsel %vm1117, 1, 0
        %v1374 = vsel %vm1118, 1, 0
        %v1375 = vsel %vm1119, 1, 0
        %v1376 = vsel %vm1120, 1, 0
        %v1377 = vsel %vm1121, 1, 0
        %v1378 = vsel %vm1122, 1, 0
        %v1379 = vsel %vm1123, 1, 0
        %v1380 = vsel %vm1124, 1, 0
        %v1381 = vsel %vm1125, 1, 0
        %v1382 = vsel %vm1126, 1, 0
        %v1383 = vsel %vm1127, 1, 0
        %v1384 = vsel %vm1128, 1, 0
        %v1385 = vsel %vm1129, 1, 0
        %v1386 = vsel %vm1130, 1, 0
        %v1387 = vsel %vm1131, 1, 0
        %v1388 = vsel %vm1132, 1, 0
        %v1389 = vsel %vm1133, 1, 0
        %v1390 = vsel %vm1134, 1, 0
        %v1391 = vsel %vm1135, 1, 0
        %v1392 = vsel %vm1136, 1, 0
        %v1393 = vsel %vm1137, 1, 0
        %v1394 = vsel %vm1138, 1, 0
        %v1395 = vsel %vm1139, 1, 0
        %v1396 = vsel %vm1140, 1, 0
        %v1397 = vsel %vm1141, 1, 0
        %v1398 = vsel %vm1142, 1, 0
        %v1399 = vsel %vm1143, 1, 0
        %v1400 = vsel %vm1144, 1, 0
        %v1401 = vsel %vm1145, 1, 0
        %v1402 = vsel %vm1146, 1, 0
        %v1403 = vsel %vm1147, 1, 0
        %v1404 = vsel %vm1148, 1, 0
        %v1405 = vsel %vm1149, 1, 0
        %v1406 = vsel %vm1150, 1, 0
        %v1407 = vsel %vm1151, 1, 0
        %v1408 = vsel %vm1152, 1, 0
        %v1409 = vsel %vm1153, 1, 0
        %v1410 = vsel %vm1154, 1, 0
        %v1411 = vsel %vm1155, 1, 0
        %v1412 = vsel %vm1156, 1, 0
        %v1413 = vsel %vm1157, 1, 0
        %v1414 = vsel %vm1158, 1, 0
        %v1415 = vsel %vm1159, 1, 0
        %v1416 = vsel %vm1160, 1, 0
        %v1417 = vsel %vm1161, 1, 0
        %v1418 = vsel %vm1162, 1, 0
        %v1419 = vsel %vm1163, 1, 0
        %v1420 = vsel %vm1164, 1, 0
        %v1421 = vsel %vm1165, 1, 0
        %v1422 = vsel %vm1166, 1, 0
        %v1423 = vsel %vm1167, 1, 0
        %v1424 = vsel %vm1168, 1, 0
        %v1425 = vsel %vm1169, 1, 0
        %v1426 = vsel %vm1170, 1, 0
        %v1427 = vsel %vm1171, 1, 0
        %v1428 = vsel %vm1172, 1, 0
        %v1429 = vsel %vm1173, 1, 0
        %v1430 = vsel %vm1174, 1, 0
        %v1431 = vsel %vm1175, 1, 0
        %v1432 = vsel %vm1176, 1, 0
        %v1433 = vsel %vm1177, 1, 0
        %v1434 = vsel %vm1178, 1, 0
        %v1435 = vsel %vm1179, 1, 0
        %v1436 = vsel %vm1180, 1, 0
        %v1437 = vsel %vm1181, 1, 0
        %v1438 = vsel %vm1182, 1, 0
        %v1439 = vsel %vm1183, 1, 0
        %v1440 = vsel %vm1184, 1, 0
        %v1441 = vsel %vm1185, 1, 0
        %v1442 = vsel %vm1186, 1, 0
        %v1443 = vsel %vm1187, 1, 0
        %v1444 = vsel %vm1188, 1, 0
        %v1445 = vsel %vm1189, 1, 0
        %v1446 = vsel %vm1190, 1, 0
        %v1447 = vsel %vm1191, 1, 0
        %v1448 = vsel %vm1192, 1, 0
        %v1449 = vsel %vm1193, 1, 0
        %v1450 = vsel %vm1194, 1, 0
        %v1451 = vsel %vm1195, 1, 0
        %v1452 = vsel %vm1196, 1, 0
        %v1453 = vsel %vm1197, 1, 0
        %v1454 = vsel %vm1198, 1, 0
        %v1455 = vsel %vm1199, 1, 0
        %v1456 = vsel %vm1200, 1, 0
        %v1457 = vsel %vm1201, 1, 0
        %v1458 = vsel %vm1202, 1, 0
        %v1459 = vsel %vm1203, 1, 0
        %v1460 = vsel %vm1204, 1, 0
        %v1461 = vsel %vm1205, 1, 0
        %v1462 = vsel %vm1206, 1, 0
        %v1463 = vsel %vm1207, 1, 0
        %v1464 = vsel %vm1208, 1, 0
        %v1465 = vsel %vm1209, 1, 0
        %v1466 = vsel %vm1210, 1, 0
        %v1467 = vsel %vm1211, 1, 0
        %v1468 = vsel %vm1212, 1, 0
        %v1469 = vsel %vm1213, 1, 0
        %v1470 = vsel %vm1214, 1, 0
        %v1471 = vsel %vm1215, 1, 0
        %v1472 = vsel %vm1216, 1, 0
        %v1473 = vsel %vm1217, 1, 0
        %v1474 = vsel %vm1218, 1, 0
        %v1475 = vsel %vm1219, 1, 0
        %v1476 = vsel %vm1220, 1, 0
        %v1477 = vsel %vm1221, 1, 0
        %v1478 = vsel %vm1222, 1, 0
        %v1479 = vsel %vm1223, 1, 0
        %v1480 = vsel %vm1224, 1, 0
        %v1481 = vsel %vm1225, 1, 0
        %v1482 = vsel %vm1226, 1, 0
        %v1483 = vsel %vm1227, 1, 0
        %v1484 = vsel %vm1228, 1, 0
        %v1485 = vsel %vm1229, 1, 0
        %v1486 = vsel %vm1230, 1, 0
        %v1487 = vsel %vm1231, 1, 0
        %v1488 = vsel %vm1232, 1, 0
        %v1489 = vsel %vm1233, 1, 0
        %v1490 = vcvt.s32.f32 %v1234
        %v1491 = vcvt.s32.f32 %v1235
        %v1492 = vcvt.s32.f32 %v1236
        %v1493 = vcvt.s32.f32 %v1237
        %v1494 = vcvt.s32.f32 %v1238
        %v1495 = vcvt.s32.f32 %v1239
        %v1496 = vcvt.s32.f32 %v1240
        %v1497 = vcvt.s32.f32 %v1241
        %v1498 = vcvt.s32.f32 %v1242
        %v1499 = vcvt.s32.f32 %v1243
        %v1500 = vcvt.s32.f32 %v1244
        %v1501 = vcvt.s32.f32 %v1245
        %v1502 = vcvt.s32.f32 %v1246
        %v1503 = vcvt.s32.f32 %v1247
        %v1504 = vcvt.s32.f32 %v1248
        %v1505 = vcvt.s32.f32 %v1249
        %v1506 = vcvt.s32.f32 %v1250
        %v1507 = vcvt.s32.f32 %v1251
        %v1508 = vcvt.s32.f32 %v1252
        %v1509 = vcvt.s32.f32 %v1253
        %v1510 = vcvt.s32.f32 %v1254
        %v1511 = vcvt.s32.f32 %v1255
        %v1512 = vcvt.s32.f32 %v1256
        %v1513 = vcvt.s32.f32 %v1257
        %v1514 = vcvt.s32.f32 %v1258
        %v1515 = vcvt.s32.f32 %v1259
        %v1516 = vcvt.s32.f32 %v1260
        %v1517 = vcvt.s32.f32 %v1261
        %v1518 = vcvt.s32.f32 %v1262
        %v1519 = vcvt.s32.f32 %v1263
        %v1520 = vcvt.s32.f32 %v1264
        %v1521 = vcvt.s32.f32 %v1265
        %v1522 = vcvt.s32.f32 %v1266
        %v1523 = vcvt.s32.f32 %v1267
        %v1524 = vcvt.s32.f32 %v1268
        %v1525 = vcvt.s32.f32 %v1269
        %v1526 = vcvt.s32.f32 %v1270
        %v1527 = vcvt.s32.f32 %v1271
        %v1528 = vcvt.s32.f32 %v1272
        %v1529 = vcvt.s32.f32 %v1273
        %v1530 = vcvt.s32.f32 %v1274
        %v1531 = vcvt.s32.f32 %v1275
        %v1532 = vcvt.s32.f32 %v1276
        %v1533 = vcvt.s32.f32 %v1277
        %v1534 = vcvt.s32.f32 %v1278
        %v1535 = vcvt.s32.f32 %v1279
        %v1536 = vcvt.s32.f32 %v1280
        %v1537 = vcvt.s32.f32 %v1281
        %v1538 = vcvt.s32.f32 %v1282
        %v1539 = vcvt.s32.f32 %v1283
        %v1540 = vcvt.s32.f32 %v1284
        %v1541 = vcvt.s32.f32 %v1285
        %v1542 = vcvt.s32.f32 %v1286
        %v1543 = vcvt.s32.f32 %v1287
        %v1544 = vcvt.s32.f32 %v1288
        %v1545 = vcvt.s32.f32 %v1289
        %v1546 = vcvt.s32.f32 %v1290
        %v1547 = vcvt.s32.f32 %v1291
        %v1548 = vcvt.s32.f32 %v1292
        %v1549 = vcvt.s32.f32 %v1293
        %v1550 = vcvt.s32.f32 %v1294
        %v1551 = vcvt.s32.f32 %v1295
        %v1552 = vcvt.s32.f32 %v1296
        %v1553 = vcvt.s32.f32 %v1297
        %v1554 = vcvt.s32.f32 %v1298
        %v1555 = vcvt.s32.f32 %v1299
        %v1556 = vcvt.s32.f32 %v1300
        %v1557 = vcvt.s32.f32 %v1301
        %v1558 = vcvt.s32.f32 %v1302
        %v1559 = vcvt.s32.f32 %v1303
        %v1560 = vcvt.s32.f32 %v1304
        %v1561 = vcvt.s32.f32 %v1305
        %v1562 = vcvt.s32.f32 %v1306
        %v1563 = vcvt.s32.f32 %v1307
        %v1564 = vcvt.s32.f32 %v1308
        %v1565 = vcvt.s32.f32 %v1309
        %v1566 = vcvt.s32.f32 %v1310
        %v1567 = vcvt.s32.f32 %v1311
        %v1568 = vcvt.s32.f32 %v1312
        %v1569 = vcvt.s32.f32 %v1313
        %v1570 = vcvt.s32.f32 %v1314
        %v1571 = vcvt.s32.f32 %v1315
        %v1572 = vcvt.s32.f32 %v1316
        %v1573 = vcvt.s32.f32 %v1317
        %v1574 = vcvt.s32.f32 %v1318
        %v1575 = vcvt.s32.f32 %v1319
        %v1576 = vcvt.s32.f32 %v1320
        %v1577 = vcvt.s32.f32 %v1321
        %v1578 = vcvt.s32.f32 %v1322
        %v1579 = vcvt.s32.f32 %v1323
        %v1580 = vcvt.s32.f32 %v1324
        %v1581 = vcvt.s32.f32 %v1325
        %v1582 = vcvt.s32.f32 %v1326
        %v1583 = vcvt.s32.f32 %v1327
        %v1584 = vcvt.s32.f32 %v1328
        %v1585 = vcvt.s32.f32 %v1329
        %v1586 = vcvt.s32.f32 %v1330
        %v1587 = vcvt.s32.f32 %v1331
        %v1588 = vcvt.s32.f32 %v1332
        %v1589 = vcvt.s32.f32 %v1333
        %v1590 = vcvt.s32.f32 %v1334
        %v1591 = vcvt.s32.f32 %v1335
        %v1592 = vcvt.s32.f32 %v1336
        %v1593 = vcvt.s32.f32 %v1337
        %v1594 = vcvt.s32.f32 %v1338
        %v1595 = vcvt.s32.f32 %v1339
        %v1596 = vcvt.s32.f32 %v1340
        %v1597 = vcvt.s32.f32 %v1341
        %v1598 = vcvt.s32.f32 %v1342
        %v1599 = vcvt.s32.f32 %v1343
        %v1600 = vcvt.s32.f32 %v1344
        %v1601 = vcvt.s32.f32 %v1345
        %v1602 = vcvt.s32.f32 %v1346
        %v1603 = vcvt.s32.f32 %v1347
        %v1604 = vcvt.s32.f32 %v1348
        %v1605 = vcvt.s32.f32 %v1349
        %v1606 = vcvt.s32.f32 %v1350
        %v1607 = vcvt.s32.f32 %v1351
        %v1608 = vcvt.s32.f32 %v1352
        %v1609 = vcvt.s32.f32 %v1353
        %v1610 = vcvt.s32.f32 %v1354
        %v1611 = vcvt.s32.f32 %v1355
        %v1612 = vcvt.s32.f32 %v1356
        %v1613 = vcvt.s32.f32 %v1357
        %v1614 = vcvt.s32.f32 %v1358
        %v1615 = vcvt.s32.f32 %v1359
        %v1616 = vcvt.s32.f32 %v1360
        %v1617 = vcvt.s32.f32 %v1361
        %v1618 = vcvt.s32.f32 %v1362
        %v1619 = vcvt.s32.f32 %v1363
        %v1620 = vcvt.s32.f32 %v1364
        %v1621 = vcvt.s32.f32 %v1365
        %v1622 = vcvt.s32.f32 %v1366
        %v1623 = vcvt.s32.f32 %v1367
        %v1624 = vcvt.s32.f32 %v1368
        %v1625 = vcvt.s32.f32 %v1369
        %v1626 = vcvt.s32.f32 %v1370
        %v1627 = vcvt.s32.f32 %v1371
        %v1628 = vcvt.s32.f32 %v1372
        %v1629 = vcvt.s32.f32 %v1373
        %v1630 = vcvt.s32.f32 %v1374
        %v1631 = vcvt.s32.f32 %v1375
        %v1632 = vcvt.s32.f32 %v1376
        %v1633 = vcvt.s32.f32 %v1377
        %v1634 = vcvt.s32.f32 %v1378
        %v1635 = vcvt.s32.f32 %v1379
        %v1636 = vcvt.s32.f32 %v1380
        %v1637 = vcvt.s32.f32 %v1381
        %v1638 = vcvt.s32.f32 %v1382
        %v1639 = vcvt.s32.f32 %v1383
        %v1640 = vcvt.s32.f32 %v1384
        %v1641 = vcvt.s32.f32 %v1385
        %v1642 = vcvt.s32.f32 %v1386
        %v1643 = vcvt.s32.f32 %v1387
        %v1644 = vcvt.s32.f32 %v1388
        %v1645 = vcvt.s32.f32 %v1389
        %v1646 = vcvt.s32.f32 %v1390
        %v1647 = vcvt.s32.f32 %v1391
        %v1648 = vcvt.s32.f32 %v1392
        %v1649 = vcvt.s32.f32 %v1393
        %v1650 = vcvt.s32.f32 %v1394
        %v1651 = vcvt.s32.f32 %v1395
        %v1652 = vcvt.s32.f32 %v1396
        %v1653 = vcvt.s32.f32 %v1397
        %v1654 = vcvt.s32.f32 %v1398
        %v1655 = vcvt.s32.f32 %v1399
        %v1656 = vcvt.s32.f32 %v1400
        %v1657 = vcvt.s32.f32 %v1401
        %v1658 = vcvt.s32.f32 %v1402
        %v1659 = vcvt.s32.f32 %v1403
        %v1660 = vcvt.s32.f32 %v1404
        %v1661 = vcvt.s32.f32 %v1405
        %v1662 = vcvt.s32.f32 %v1406
        %v1663 = vcvt.s32.f32 %v1407
        %v1664 = vcvt.s32.f32 %v1408
        %v1665 = vcvt.s32.f32 %v1409
        %v1666 = vcvt.s32.f32 %v1410
        %v1667 = vcvt.s32.f32 %v1411
        %v1668 = vcvt.s32.f32 %v1412
        %v1669 = vcvt.s32.f32 %v1413
        %v1670 = vcvt.s32.f32 %v1414
        %v1671 = vcvt.s32.f32 %v1415
        %v1672 = vcvt.s32.f32 %v1416
        %v1673 = vcvt.s32.f32 %v1417
        %v1674 = vcvt.s32.f32 %v1418
        %v1675 = vcvt.s32.f32 %v1419
        %v1676 = vcvt.s32.f32 %v1420
        %v1677 = vcvt.s32.f32 %v1421
        %v1678 = vcvt.s32.f32 %v1422
        %v1679 = vcvt.s32.f32 %v1423
        %v1680 = vcvt.s32.f32 %v1424
        %v1681 = vcvt.s32.f32 %v1425
        %v1682 = vcvt.s32.f32 %v1426
        %v1683 = vcvt.s32.f32 %v1427
        %v1684 = vcvt.s32.f32 %v1428
        %v1685 = vcvt.s32.f32 %v1429
        %v1686 = vcvt.s32.f32 %v1430
        %v1687 = vcvt.s32.f32 %v1431
        %v1688 = vcvt.s32.f32 %v1432
        %v1689 = vcvt.s32.f32 %v1433
        %v1690 = vcvt.s32.f32 %v1434
        %v1691 = vcvt.s32.f32 %v1435
        %v1692 = vcvt.s32.f32 %v1436
        %v1693 = vcvt.s32.f32 %v1437
        %v1694 = vcvt.s32.f32 %v1438
        %v1695 = vcvt.s32.f32 %v1439
        %v1696 = vcvt.s32.f32 %v1440
        %v1697 = vcvt.s32.f32 %v1441
        %v1698 = vcvt.s32.f32 %v1442
        %v1699 = vcvt.s32.f32 %v1443
        %v1700 = vcvt.s32.f32 %v1444
        %v1701 = vcvt.s32.f32 %v1445
        %v1702 = vcvt.s32.f32 %v1446
        %v1703 = vcvt.s32.f32 %v1447
        %v1704 = vcvt.s32.f32 %v1448
        %v1705 = vcvt.s32.f32 %v1449
        %v1706 = vcvt.s32.f32 %v1450
        %v1707 = vcvt.s32.f32 %v1451
        %v1708 = vcvt.s32.f32 %v1452
        %v1709 = vcvt.s32.f32 %v1453
        %v1710 = vcvt.s32.f32 %v1454
        %v1711 = vcvt.s32.f32 %v1455
        %v1712 = vcvt.s32.f32 %v1456
        %v1713 = vcvt.s32.f32 %v1457
        %v1714 = vcvt.s32.f32 %v1458
        %v1715 = vcvt.s32.f32 %v1459
        %v1716 = vcvt.s32.f32 %v1460
        %v1717 = vcvt.s32.f32 %v1461
        %v1718 = vcvt.s32.f32 %v1462
        %v1719 = vcvt.s32.f32 %v1463
        %v1720 = vcvt.s32.f32 %v1464
        %v1721 = vcvt.s32.f32 %v1465
        %v1722 = vcvt.s32.f32 %v1466
        %v1723 = vcvt.s32.f32 %v1467
        %v1724 = vcvt.s32.f32 %v1468
        %v1725 = vcvt.s32.f32 %v1469
        %v1726 = vcvt.s32.f32 %v1470
        %v1727 = vcvt.s32.f32 %v1471
        %v1728 = vcvt.s32.f32 %v1472
        %v1729 = vcvt.s32.f32 %v1473
        %v1730 = vcvt.s32.f32 %v1474
        %v1731 = vcvt.s32.f32 %v1475
        %v1732 = vcvt.s32.f32 %v1476
        %v1733 = vcvt.s32.f32 %v1477
        %v1734 = vcvt.s32.f32 %v1478
        %v1735 = vcvt.s32.f32 %v1479
        %v1736 = vcvt.s32.f32 %v1480
        %v1737 = vcvt.s32.f32 %v1481
        %v1738 = vcvt.s32.f32 %v1482
        %v1739 = vcvt.s32.f32 %v1483
        %v1740 = vcvt.s32.f32 %v1484
        %v1741 = vcvt.s32.f32 %v1485
        %v1742 = vcvt.s32.f32 %v1486
        %v1743 = vcvt.s32.f32 %v1487
        %v1744 = vcvt.s32.f32 %v1488
        %v1745 = vcvt.s32.f32 %v1489
        %1746 = vmatprep.subr.mxu0 %v1551
        %1747 = vmatpush1.msra.mxu0 %v1550
        %1748 = vmatprep.subr.mxu0 %v1547
        %1749 = vmatpush1.msra.mxu0 %v1546
        %1750 = vmatprep.subr.mxu0 %v1543
        %1751 = vmatpush1.msra.mxu0 %v1542
        %1752 = vmatprep.subr.mxu0 %v1539
        %1753 = vmatpush1.msra.mxu0 %v1538
        %1754 = vmatprep.subr.mxu0 %v1535
        %1755 = vmatpush1.msra.mxu0 %v1534
        %1756 = vmatprep.subr.mxu0 %v1531
        %1757 = vmatpush1.msra.mxu0 %v1530
        %1758 = vmatprep.subr.mxu0 %v1527
        %1759 = vmatpush1.msra.mxu0 %v1526
        %1760 = vmatprep.subr.mxu0 %v1523
        %1761 = vmatpush1.msra.mxu0 %v1522
        %1762 = vmatprep.subr.mxu0 %v1519
        %1763 = vmatpush1.msra.mxu0 %v1518
        %1764 = vmatprep.subr.mxu0 %v1515
        %1765 = vmatpush1.msra.mxu0 %v1514
        %1766 = vmatprep.subr.mxu0 %v1511
        %1767 = vmatpush1.msra.mxu0 %v1510
        %1768 = vmatprep.subr.mxu0 %v1507
        %1769 = vmatpush1.msra.mxu0 %v1506
        %1770 = vmatprep.subr.mxu0 %v1503
        %1771 = vmatpush1.msra.mxu0 %v1502
        %1772 = vmatprep.subr.mxu0 %v1499
        %1773 = vmatpush1.msra.mxu0 %v1498
        %1774 = vmatprep.subr.mxu0 %v1495
        %1775 = vmatpush1.msra.mxu0 %v1494
        %1776 = vmatprep.subr.mxu0 %v1491
        %1777 = vmatpush1.msra.mxu0 %v1490
        %1778 = vmatprep.subr.mxu0 %v1615
        %1779 = vmatpush2.msra.mxu0 %v1614
        %1780 = vmatprep.subr.mxu0 %v1611
        %1781 = vmatpush2.msra.mxu0 %v1610
        %1782 = vmatprep.subr.mxu0 %v1607
        %1783 = vmatpush2.msra.mxu0 %v1606
        %1784 = vmatprep.subr.mxu0 %v1603
        %1785 = vmatpush2.msra.mxu0 %v1602
        %1786 = vmatprep.subr.mxu0 %v1599
        %1787 = vmatpush2.msra.mxu0 %v1598
        %1788 = vmatprep.subr.mxu0 %v1595
        %1789 = vmatpush2.msra.mxu0 %v1594
        %1790 = vmatprep.subr.mxu0 %v1591
        %1791 = vmatpush2.msra.mxu0 %v1590
        %1792 = vmatprep.subr.mxu0 %v1587
        %1793 = vmatpush2.msra.mxu0 %v1586
        %1794 = vmatprep.subr.mxu0 %v1583
        %1795 = vmatpush2.msra.mxu0 %v1582
        %1796 = vmatprep.subr.mxu0 %v1579
        %1797 = vmatpush2.msra.mxu0 %v1578
        %1798 = vmatprep.subr.mxu0 %v1575
        %1799 = vmatpush2.msra.mxu0 %v1574
        %1800 = vmatprep.subr.mxu0 %v1571
        %1801 = vmatpush2.msra.mxu0 %v1570
        %1802 = vmatprep.subr.mxu0 %v1567
        %1803 = vmatpush2.msra.mxu0 %v1566
        %1804 = vmatprep.subr.mxu0 %v1563
        %1805 = vmatpush2.msra.mxu0 %v1562
        %1806 = vmatprep.subr.mxu0 %v1559
        %1807 = vmatpush2.msra.mxu0 %v1558
        %1808 = vmatprep.subr.mxu0 %v1555
        %1809 = vmatpush2.msra.mxu0 %v1554
        %1810 = vmatprep.mubr.f32.mxu0 %v302
        %1811 = vmatmul.mubr.f32.gmra.mxu0 %v301
        %v1812 = vpop.f32.mrf.mxu0
        %v1813 = vadd.f32 0.0, %v1812
        %v1814 = vpop.f32.mrf.mxu0
        %v1815 = vadd.f32 0.0, %v1814
        %1816 = vmatprep.mubr.f32.mxu0 %v306
        %1817 = vmatmul.mubr.f32.gmra.mxu0 %v305
        %v1818 = vpop.f32.mrf.mxu0
        %v1819 = vadd.f32 0.0, %v1818
        %v1820 = vpop.f32.mrf.mxu0
        %v1821 = vadd.f32 0.0, %v1820
        %1822 = vmatprep.mubr.f32.mxu0 %v310
        %1823 = vmatmul.mubr.f32.gmra.mxu0 %v309
        %v1824 = vpop.f32.mrf.mxu0
        %v1825 = vadd.f32 0.0, %v1824
        %v1826 = vpop.f32.mrf.mxu0
        %v1827 = vadd.f32 0.0, %v1826
        %1828 = vmatprep.mubr.f32.mxu0 %v314
        %1829 = vmatmul.mubr.f32.gmra.mxu0 %v313
        %v1830 = vpop.f32.mrf.mxu0
        %v1831 = vadd.f32 0.0, %v1830
        %v1832 = vpop.f32.mrf.mxu0
        %v1833 = vadd.f32 0.0, %v1832
        %1834 = vdwg.mxu0
        %1835 = vmatprep.subr.mxu0 %v1679
        %1836 = vmatpush1.msra.mxu0 %v1678
        %1837 = vmatprep.subr.mxu0 %v1675
        %1838 = vmatpush1.msra.mxu0 %v1674
        %1839 = vmatprep.subr.mxu0 %v1671
        %1840 = vmatpush1.msra.mxu0 %v1670
        %1841 = vmatprep.subr.mxu0 %v1667
        %1842 = vmatpush1.msra.mxu0 %v1666
        %1843 = vmatprep.subr.mxu0 %v1663
        %1844 = vmatpush1.msra.mxu0 %v1662
        %1845 = vmatprep.subr.mxu0 %v1659
        %1846 = vmatpush1.msra.mxu0 %v1658
        %1847 = vmatprep.subr.mxu0 %v1655
        %1848 = vmatpush1.msra.mxu0 %v1654
        %1849 = vmatprep.subr.mxu0 %v1651
        %1850 = vmatpush1.msra.mxu0 %v1650
        %1851 = vmatprep.subr.mxu0 %v1647
        %1852 = vmatpush1.msra.mxu0 %v1646
        %1853 = vmatprep.subr.mxu0 %v1643
        %1854 = vmatpush1.msra.mxu0 %v1642
        %1855 = vmatprep.subr.mxu0 %v1639
        %1856 = vmatpush1.msra.mxu0 %v1638
        %1857 = vmatprep.subr.mxu0 %v1635
        %1858 = vmatpush1.msra.mxu0 %v1634
        %1859 = vmatprep.subr.mxu0 %v1631
        %1860 = vmatpush1.msra.mxu0 %v1630
        %1861 = vmatprep.subr.mxu0 %v1627
        %1862 = vmatpush1.msra.mxu0 %v1626
        %1863 = vmatprep.subr.mxu0 %v1623
        %1864 = vmatpush1.msra.mxu0 %v1622
        %1865 = vmatprep.subr.mxu0 %v1619
        %1866 = vmatpush1.msra.mxu0 %v1618
        %1867 = vmatprep.subr.mxu0 %v1743
        %1868 = vmatpush2.msra.mxu0 %v1742
        %1869 = vmatprep.subr.mxu0 %v1739
        %1870 = vmatpush2.msra.mxu0 %v1738
        %1871 = vmatprep.subr.mxu0 %v1735
        %1872 = vmatpush2.msra.mxu0 %v1734
        %1873 = vmatprep.subr.mxu0 %v1731
        %1874 = vmatpush2.msra.mxu0 %v1730
        %1875 = vmatprep.subr.mxu0 %v1727
        %1876 = vmatpush2.msra.mxu0 %v1726
        %1877 = vmatprep.subr.mxu0 %v1723
        %1878 = vmatpush2.msra.mxu0 %v1722
        %1879 = vmatprep.subr.mxu0 %v1719
        %1880 = vmatpush2.msra.mxu0 %v1718
        %1881 = vmatprep.subr.mxu0 %v1715
        %1882 = vmatpush2.msra.mxu0 %v1714
        %1883 = vmatprep.subr.mxu0 %v1711
        %1884 = vmatpush2.msra.mxu0 %v1710
        %1885 = vmatprep.subr.mxu0 %v1707
        %1886 = vmatpush2.msra.mxu0 %v1706
        %1887 = vmatprep.subr.mxu0 %v1703
        %1888 = vmatpush2.msra.mxu0 %v1702
        %1889 = vmatprep.subr.mxu0 %v1699
        %1890 = vmatpush2.msra.mxu0 %v1698
        %1891 = vmatprep.subr.mxu0 %v1695
        %1892 = vmatpush2.msra.mxu0 %v1694
        %1893 = vmatprep.subr.mxu0 %v1691
        %1894 = vmatpush2.msra.mxu0 %v1690
        %1895 = vmatprep.subr.mxu0 %v1687
        %1896 = vmatpush2.msra.mxu0 %v1686
        %1897 = vmatprep.subr.mxu0 %v1683
        %1898 = vmatpush2.msra.mxu0 %v1682
        %1899 = vmatprep.mubr.f32.mxu0 %v304
        %1900 = vmatmul.mubr.f32.gmra.mxu0 %v303
        %v1901 = vpop.f32.mrf.mxu0
        %v1902 = vadd.f32 %v1813, %v1901
        %v1903 = vpop.f32.mrf.mxu0
        %v1904 = vadd.f32 %v1815, %v1903
        %1905 = vmatprep.mubr.f32.mxu0 %v308
        %1906 = vmatmul.mubr.f32.gmra.mxu0 %v307
        %v1907 = vpop.f32.mrf.mxu0
        %v1908 = vadd.f32 %v1819, %v1907
        %v1909 = vpop.f32.mrf.mxu0
        %v1910 = vadd.f32 %v1821, %v1909
        %1911 = vmatprep.mubr.f32.mxu0 %v312
        %1912 = vmatmul.mubr.f32.gmra.mxu0 %v311
        %v1913 = vpop.f32.mrf.mxu0
        %v1914 = vadd.f32 %v1825, %v1913
        %v1915 = vpop.f32.mrf.mxu0
        %v1916 = vadd.f32 %v1827, %v1915
        %1917 = vmatprep.mubr.f32.mxu0 %v316
        %1918 = vmatmul.mubr.f32.gmra.mxu0 %v315
        %v1919 = vpop.f32.mrf.mxu0
        %v1920 = vadd.f32 %v1831, %v1919
        %v1921 = vpop.f32.mrf.mxu0
        %v1922 = vadd.f32 %v1833, %v1921
        %1923 = vdwg.mxu0
        %1924 = vmatprep.subr.mxu0 %v1553
        %1925 = vmatpush1.msra.mxu0 %v1552
        %1926 = vmatprep.subr.mxu0 %v1549
        %1927 = vmatpush1.msra.mxu0 %v1548
        %1928 = vmatprep.subr.mxu0 %v1545
        %1929 = vmatpush1.msra.mxu0 %v1544
        %1930 = vmatprep.subr.mxu0 %v1541
        %1931 = vmatpush1.msra.mxu0 %v1540
        %1932 = vmatprep.subr.mxu0 %v1537
        %1933 = vmatpush1.msra.mxu0 %v1536
        %1934 = vmatprep.subr.mxu0 %v1533
        %1935 = vmatpush1.msra.mxu0 %v1532
        %1936 = vmatprep.subr.mxu0 %v1529
        %1937 = vmatpush1.msra.mxu0 %v1528
        %1938 = vmatprep.subr.mxu0 %v1525
        %1939 = vmatpush1.msra.mxu0 %v1524
        %1940 = vmatprep.subr.mxu0 %v1521
        %1941 = vmatpush1.msra.mxu0 %v1520
        %1942 = vmatprep.subr.mxu0 %v1517
        %1943 = vmatpush1.msra.mxu0 %v1516
        %1944 = vmatprep.subr.mxu0 %v1513
        %1945 = vmatpush1.msra.mxu0 %v1512
        %1946 = vmatprep.subr.mxu0 %v1509
        %1947 = vmatpush1.msra.mxu0 %v1508
        %1948 = vmatprep.subr.mxu0 %v1505
        %1949 = vmatpush1.msra.mxu0 %v1504
        %1950 = vmatprep.subr.mxu0 %v1501
        %1951 = vmatpush1.msra.mxu0 %v1500
        %1952 = vmatprep.subr.mxu0 %v1497
        %1953 = vmatpush1.msra.mxu0 %v1496
        %1954 = vmatprep.subr.mxu0 %v1493
        %1955 = vmatpush1.msra.mxu0 %v1492
        %1956 = vmatprep.subr.mxu0 %v1617
        %1957 = vmatpush2.msra.mxu0 %v1616
        %1958 = vmatprep.subr.mxu0 %v1613
        %1959 = vmatpush2.msra.mxu0 %v1612
        %1960 = vmatprep.subr.mxu0 %v1609
        %1961 = vmatpush2.msra.mxu0 %v1608
        %1962 = vmatprep.subr.mxu0 %v1605
        %1963 = vmatpush2.msra.mxu0 %v1604
        %1964 = vmatprep.subr.mxu0 %v1601
        %1965 = vmatpush2.msra.mxu0 %v1600
        %1966 = vmatprep.subr.mxu0 %v1597
        %1967 = vmatpush2.msra.mxu0 %v1596
        %1968 = vmatprep.subr.mxu0 %v1593
        %1969 = vmatpush2.msra.mxu0 %v1592
        %1970 = vmatprep.subr.mxu0 %v1589
        %1971 = vmatpush2.msra.mxu0 %v1588
        %1972 = vmatprep.subr.mxu0 %v1585
        %1973 = vmatpush2.msra.mxu0 %v1584
        %1974 = vmatprep.subr.mxu0 %v1581
        %1975 = vmatpush2.msra.mxu0 %v1580
        %1976 = vmatprep.subr.mxu0 %v1577
        %1977 = vmatpush2.msra.mxu0 %v1576
        %1978 = vmatprep.subr.mxu0 %v1573
        %1979 = vmatpush2.msra.mxu0 %v1572
        %1980 = vmatprep.subr.mxu0 %v1569
        %1981 = vmatpush2.msra.mxu0 %v1568
        %1982 = vmatprep.subr.mxu0 %v1565
        %1983 = vmatpush2.msra.mxu0 %v1564
        %1984 = vmatprep.subr.mxu0 %v1561
        %1985 = vmatpush2.msra.mxu0 %v1560
        %1986 = vmatprep.subr.mxu0 %v1557
        %1987 = vmatpush2.msra.mxu0 %v1556
        %1988 = vmatprep.mubr.f32.mxu0 %v302
        %1989 = vmatmul.mubr.f32.gmra.mxu0 %v301
        %v1990 = vpop.f32.mrf.mxu0
        %v1991 = vadd.f32 0.0, %v1990
        %v1992 = vpop.f32.mrf.mxu0
        %v1993 = vadd.f32 0.0, %v1992
        %1994 = vmatprep.mubr.f32.mxu0 %v306
        %1995 = vmatmul.mubr.f32.gmra.mxu0 %v305
        %v1996 = vpop.f32.mrf.mxu0
        %v1997 = vadd.f32 0.0, %v1996
        %v1998 = vpop.f32.mrf.mxu0
        %v1999 = vadd.f32 0.0, %v1998
        %2000 = vmatprep.mubr.f32.mxu0 %v310
        %2001 = vmatmul.mubr.f32.gmra.mxu0 %v309
        %v2002 = vpop.f32.mrf.mxu0
        %v2003 = vadd.f32 0.0, %v2002
        %v2004 = vpop.f32.mrf.mxu0
        %v2005 = vadd.f32 0.0, %v2004
        %2006 = vmatprep.mubr.f32.mxu0 %v314
        %2007 = vmatmul.mubr.f32.gmra.mxu0 %v313
        %v2008 = vpop.f32.mrf.mxu0
        %v2009 = vadd.f32 0.0, %v2008
        %v2010 = vpop.f32.mrf.mxu0
        %v2011 = vadd.f32 0.0, %v2010
        %2012 = vdwg.mxu0
        %2013 = vmatprep.subr.mxu0 %v1681
        %2014 = vmatpush1.msra.mxu0 %v1680
        %2015 = vmatprep.subr.mxu0 %v1677
        %2016 = vmatpush1.msra.mxu0 %v1676
        %2017 = vmatprep.subr.mxu0 %v1673
        %2018 = vmatpush1.msra.mxu0 %v1672
        %2019 = vmatprep.subr.mxu0 %v1669
        %2020 = vmatpush1.msra.mxu0 %v1668
        %2021 = vmatprep.subr.mxu0 %v1665
        %2022 = vmatpush1.msra.mxu0 %v1664
        %2023 = vmatprep.subr.mxu0 %v1661
        %2024 = vmatpush1.msra.mxu0 %v1660
        %2025 = vmatprep.subr.mxu0 %v1657
        %2026 = vmatpush1.msra.mxu0 %v1656
        %2027 = vmatprep.subr.mxu0 %v1653
        %2028 = vmatpush1.msra.mxu0 %v1652
        %2029 = vmatprep.subr.mxu0 %v1649
        %2030 = vmatpush1.msra.mxu0 %v1648
        %2031 = vmatprep.subr.mxu0 %v1645
        %2032 = vmatpush1.msra.mxu0 %v1644
        %2033 = vmatprep.subr.mxu0 %v1641
        %2034 = vmatpush1.msra.mxu0 %v1640
        %2035 = vmatprep.subr.mxu0 %v1637
        %2036 = vmatpush1.msra.mxu0 %v1636
        %2037 = vmatprep.subr.mxu0 %v1633
        %2038 = vmatpush1.msra.mxu0 %v1632
        %2039 = vmatprep.subr.mxu0 %v1629
        %2040 = vmatpush1.msra.mxu0 %v1628
        %2041 = vmatprep.subr.mxu0 %v1625
        %2042 = vmatpush1.msra.mxu0 %v1624
        %2043 = vmatprep.subr.mxu0 %v1621
        %2044 = vmatpush1.msra.mxu0 %v1620
        %2045 = vmatprep.subr.mxu0 %v1745
        %2046 = vmatpush2.msra.mxu0 %v1744
        %2047 = vmatprep.subr.mxu0 %v1741
        %2048 = vmatpush2.msra.mxu0 %v1740
        %2049 = vmatprep.subr.mxu0 %v1737
        %2050 = vmatpush2.msra.mxu0 %v1736
        %2051 = vmatprep.subr.mxu0 %v1733
        %2052 = vmatpush2.msra.mxu0 %v1732
        %2053 = vmatprep.subr.mxu0 %v1729
        %2054 = vmatpush2.msra.mxu0 %v1728
        %2055 = vmatprep.subr.mxu0 %v1725
        %2056 = vmatpush2.msra.mxu0 %v1724
        %2057 = vmatprep.subr.mxu0 %v1721
        %2058 = vmatpush2.msra.mxu0 %v1720
        %2059 = vmatprep.subr.mxu0 %v1717
        %2060 = vmatpush2.msra.mxu0 %v1716
        %2061 = vmatprep.subr.mxu0 %v1713
        %2062 = vmatpush2.msra.mxu0 %v1712
        %2063 = vmatprep.subr.mxu0 %v1709
        %2064 = vmatpush2.msra.mxu0 %v1708
        %2065 = vmatprep.subr.mxu0 %v1705
        %2066 = vmatpush2.msra.mxu0 %v1704
        %2067 = vmatprep.subr.mxu0 %v1701
        %2068 = vmatpush2.msra.mxu0 %v1700
        %2069 = vmatprep.subr.mxu0 %v1697
        %2070 = vmatpush2.msra.mxu0 %v1696
        %2071 = vmatprep.subr.mxu0 %v1693
        %2072 = vmatpush2.msra.mxu0 %v1692
        %2073 = vmatprep.subr.mxu0 %v1689
        %2074 = vmatpush2.msra.mxu0 %v1688
        %2075 = vmatprep.subr.mxu0 %v1685
        %2076 = vmatpush2.msra.mxu0 %v1684
        %2077 = vmatprep.mubr.f32.mxu0 %v304
        %2078 = vmatmul.mubr.f32.gmra.mxu0 %v303
        %v2079 = vpop.f32.mrf.mxu0
        %v2080 = vadd.f32 %v1991, %v2079
        %v2081 = vpop.f32.mrf.mxu0
        %v2082 = vadd.f32 %v1993, %v2081
        %2083 = vmatprep.mubr.f32.mxu0 %v308
        %2084 = vmatmul.mubr.f32.gmra.mxu0 %v307
        %v2085 = vpop.f32.mrf.mxu0
        %v2086 = vadd.f32 %v1997, %v2085
        %v2087 = vpop.f32.mrf.mxu0
        %v2088 = vadd.f32 %v1999, %v2087
        %2089 = vmatprep.mubr.f32.mxu0 %v312
        %2090 = vmatmul.mubr.f32.gmra.mxu0 %v311
        %v2091 = vpop.f32.mrf.mxu0
        %v2092 = vadd.f32 %v2003, %v2091
        %v2093 = vpop.f32.mrf.mxu0
        %v2094 = vadd.f32 %v2005, %v2093
        %2095 = vmatprep.mubr.f32.mxu0 %v316
        %2096 = vmatmul.mubr.f32.gmra.mxu0 %v315
        %v2097 = vpop.f32.mrf.mxu0
        %v2098 = vadd.f32 %v2009, %v2097
        %v2099 = vpop.f32.mrf.mxu0
        %v2100 = vadd.f32 %v2011, %v2099
        %2101 = vdwg.mxu0
        %v2102 = vld [vmem:[%s285] sm:$0xf]
        %v2103 = vlaneseq
        %v2104 = vshrl.u32 %v2103, 7
        %v2105 = vsub.s32 0, %v2104
        %v2106 = vrot.slane %v2102, %v2105
        %v2107 = vlaneseq
        %v2108 = vshrl.u32 %v2107, 7
        %v2109 = vsub.s32 1, %v2108
        %v2110 = vrot.slane %v2102, %v2109
        %v2111 = vlaneseq
        %v2112 = vshrl.u32 %v2111, 7
        %v2113 = vsub.s32 2, %v2112
        %v2114 = vrot.slane %v2102, %v2113
        %v2115 = vlaneseq
        %v2116 = vshrl.u32 %v2115, 7
        %v2117 = vsub.s32 3, %v2116
        %v2118 = vrot.slane %v2102, %v2117
        %vm2119 = vcmp.eq.s32.totalorder %v319, %v2106
        %vm2120 = vcmp.eq.s32.totalorder %v319, %v2110
        %vm2121 = vcmp.eq.s32.totalorder %v319, %v2114
        %vm2122 = vcmp.eq.s32.totalorder %v319, %v2118
        %vm2123 = vcmp.eq.s32.totalorder %v320, %v2106
        %vm2124 = vcmp.eq.s32.totalorder %v320, %v2110
        %vm2125 = vcmp.eq.s32.totalorder %v320, %v2114
        %vm2126 = vcmp.eq.s32.totalorder %v320, %v2118
        %vm2127 = vcmp.eq.s32.totalorder %v321, %v2106
        %vm2128 = vcmp.eq.s32.totalorder %v321, %v2110
        %vm2129 = vcmp.eq.s32.totalorder %v321, %v2114
        %vm2130 = vcmp.eq.s32.totalorder %v321, %v2118
        %vm2131 = vcmp.eq.s32.totalorder %v322, %v2106
        %vm2132 = vcmp.eq.s32.totalorder %v322, %v2110
        %vm2133 = vcmp.eq.s32.totalorder %v322, %v2114
        %vm2134 = vcmp.eq.s32.totalorder %v322, %v2118
        %vm2135 = vcmp.eq.s32.totalorder %v323, %v2106
        %vm2136 = vcmp.eq.s32.totalorder %v323, %v2110
        %vm2137 = vcmp.eq.s32.totalorder %v323, %v2114
        %vm2138 = vcmp.eq.s32.totalorder %v323, %v2118
        %vm2139 = vcmp.eq.s32.totalorder %v324, %v2106
        %vm2140 = vcmp.eq.s32.totalorder %v324, %v2110
        %vm2141 = vcmp.eq.s32.totalorder %v324, %v2114
        %vm2142 = vcmp.eq.s32.totalorder %v324, %v2118
        %vm2143 = vcmp.eq.s32.totalorder %v325, %v2106
        %vm2144 = vcmp.eq.s32.totalorder %v325, %v2110
        %vm2145 = vcmp.eq.s32.totalorder %v325, %v2114
        %vm2146 = vcmp.eq.s32.totalorder %v325, %v2118
        %vm2147 = vcmp.eq.s32.totalorder %v326, %v2106
        %vm2148 = vcmp.eq.s32.totalorder %v326, %v2110
        %vm2149 = vcmp.eq.s32.totalorder %v326, %v2114
        %vm2150 = vcmp.eq.s32.totalorder %v326, %v2118
        %vm2151 = vcmp.eq.s32.totalorder %v327, %v2106
        %vm2152 = vcmp.eq.s32.totalorder %v327, %v2110
        %vm2153 = vcmp.eq.s32.totalorder %v327, %v2114
        %vm2154 = vcmp.eq.s32.totalorder %v327, %v2118
        %vm2155 = vcmp.eq.s32.totalorder %v328, %v2106
        %vm2156 = vcmp.eq.s32.totalorder %v328, %v2110
        %vm2157 = vcmp.eq.s32.totalorder %v328, %v2114
        %vm2158 = vcmp.eq.s32.totalorder %v328, %v2118
        %vm2159 = vcmp.eq.s32.totalorder %v329, %v2106
        %vm2160 = vcmp.eq.s32.totalorder %v329, %v2110
        %vm2161 = vcmp.eq.s32.totalorder %v329, %v2114
        %vm2162 = vcmp.eq.s32.totalorder %v329, %v2118
        %vm2163 = vcmp.eq.s32.totalorder %v330, %v2106
        %vm2164 = vcmp.eq.s32.totalorder %v330, %v2110
        %vm2165 = vcmp.eq.s32.totalorder %v330, %v2114
        %vm2166 = vcmp.eq.s32.totalorder %v330, %v2118
        %vm2167 = vcmp.eq.s32.totalorder %v331, %v2106
        %vm2168 = vcmp.eq.s32.totalorder %v331, %v2110
        %vm2169 = vcmp.eq.s32.totalorder %v331, %v2114
        %vm2170 = vcmp.eq.s32.totalorder %v331, %v2118
        %vm2171 = vcmp.eq.s32.totalorder %v332, %v2106
        %vm2172 = vcmp.eq.s32.totalorder %v332, %v2110
        %vm2173 = vcmp.eq.s32.totalorder %v332, %v2114
        %vm2174 = vcmp.eq.s32.totalorder %v332, %v2118
        %vm2175 = vcmp.eq.s32.totalorder %v333, %v2106
        %vm2176 = vcmp.eq.s32.totalorder %v333, %v2110
        %vm2177 = vcmp.eq.s32.totalorder %v333, %v2114
        %vm2178 = vcmp.eq.s32.totalorder %v333, %v2118
        %vm2179 = vcmp.eq.s32.totalorder %v334, %v2106
        %vm2180 = vcmp.eq.s32.totalorder %v334, %v2110
        %vm2181 = vcmp.eq.s32.totalorder %v334, %v2114
        %vm2182 = vcmp.eq.s32.totalorder %v334, %v2118
        %vm2183 = vcmp.eq.s32.totalorder %v335, %v2106
        %vm2184 = vcmp.eq.s32.totalorder %v335, %v2110
        %vm2185 = vcmp.eq.s32.totalorder %v335, %v2114
        %vm2186 = vcmp.eq.s32.totalorder %v335, %v2118
        %vm2187 = vcmp.eq.s32.totalorder %v336, %v2106
        %vm2188 = vcmp.eq.s32.totalorder %v336, %v2110
        %vm2189 = vcmp.eq.s32.totalorder %v336, %v2114
        %vm2190 = vcmp.eq.s32.totalorder %v336, %v2118
        %vm2191 = vcmp.eq.s32.totalorder %v337, %v2106
        %vm2192 = vcmp.eq.s32.totalorder %v337, %v2110
        %vm2193 = vcmp.eq.s32.totalorder %v337, %v2114
        %vm2194 = vcmp.eq.s32.totalorder %v337, %v2118
        %vm2195 = vcmp.eq.s32.totalorder %v338, %v2106
        %vm2196 = vcmp.eq.s32.totalorder %v338, %v2110
        %vm2197 = vcmp.eq.s32.totalorder %v338, %v2114
        %vm2198 = vcmp.eq.s32.totalorder %v338, %v2118
        %vm2199 = vcmp.eq.s32.totalorder %v339, %v2106
        %vm2200 = vcmp.eq.s32.totalorder %v339, %v2110
        %vm2201 = vcmp.eq.s32.totalorder %v339, %v2114
        %vm2202 = vcmp.eq.s32.totalorder %v339, %v2118
        %vm2203 = vcmp.eq.s32.totalorder %v340, %v2106
        %vm2204 = vcmp.eq.s32.totalorder %v340, %v2110
        %vm2205 = vcmp.eq.s32.totalorder %v340, %v2114
        %vm2206 = vcmp.eq.s32.totalorder %v340, %v2118
        %vm2207 = vcmp.eq.s32.totalorder %v341, %v2106
        %vm2208 = vcmp.eq.s32.totalorder %v341, %v2110
        %vm2209 = vcmp.eq.s32.totalorder %v341, %v2114
        %vm2210 = vcmp.eq.s32.totalorder %v341, %v2118
        %vm2211 = vcmp.eq.s32.totalorder %v342, %v2106
        %vm2212 = vcmp.eq.s32.totalorder %v342, %v2110
        %vm2213 = vcmp.eq.s32.totalorder %v342, %v2114
        %vm2214 = vcmp.eq.s32.totalorder %v342, %v2118
        %vm2215 = vcmp.eq.s32.totalorder %v343, %v2106
        %vm2216 = vcmp.eq.s32.totalorder %v343, %v2110
        %vm2217 = vcmp.eq.s32.totalorder %v343, %v2114
        %vm2218 = vcmp.eq.s32.totalorder %v343, %v2118
        %vm2219 = vcmp.eq.s32.totalorder %v344, %v2106
        %vm2220 = vcmp.eq.s32.totalorder %v344, %v2110
        %vm2221 = vcmp.eq.s32.totalorder %v344, %v2114
        %vm2222 = vcmp.eq.s32.totalorder %v344, %v2118
        %vm2223 = vcmp.eq.s32.totalorder %v345, %v2106
        %vm2224 = vcmp.eq.s32.totalorder %v345, %v2110
        %vm2225 = vcmp.eq.s32.totalorder %v345, %v2114
        %vm2226 = vcmp.eq.s32.totalorder %v345, %v2118
        %vm2227 = vcmp.eq.s32.totalorder %v346, %v2106
        %vm2228 = vcmp.eq.s32.totalorder %v346, %v2110
        %vm2229 = vcmp.eq.s32.totalorder %v346, %v2114
        %vm2230 = vcmp.eq.s32.totalorder %v346, %v2118
        %vm2231 = vcmp.eq.s32.totalorder %v347, %v2106
        %vm2232 = vcmp.eq.s32.totalorder %v347, %v2110
        %vm2233 = vcmp.eq.s32.totalorder %v347, %v2114
        %vm2234 = vcmp.eq.s32.totalorder %v347, %v2118
        %vm2235 = vcmp.eq.s32.totalorder %v348, %v2106
        %vm2236 = vcmp.eq.s32.totalorder %v348, %v2110
        %vm2237 = vcmp.eq.s32.totalorder %v348, %v2114
        %vm2238 = vcmp.eq.s32.totalorder %v348, %v2118
        %vm2239 = vcmp.eq.s32.totalorder %v349, %v2106
        %vm2240 = vcmp.eq.s32.totalorder %v349, %v2110
        %vm2241 = vcmp.eq.s32.totalorder %v349, %v2114
        %vm2242 = vcmp.eq.s32.totalorder %v349, %v2118
        %vm2243 = vcmp.eq.s32.totalorder %v350, %v2106
        %vm2244 = vcmp.eq.s32.totalorder %v350, %v2110
        %vm2245 = vcmp.eq.s32.totalorder %v350, %v2114
        %vm2246 = vcmp.eq.s32.totalorder %v350, %v2118
        %vm2247 = vcmp.eq.s32.totalorder %v930, %v2106
        %vm2248 = vcmp.eq.s32.totalorder %v930, %v2110
        %vm2249 = vcmp.eq.s32.totalorder %v930, %v2114
        %vm2250 = vcmp.eq.s32.totalorder %v930, %v2118
        %vm2251 = vcmp.eq.s32.totalorder %v931, %v2106
        %vm2252 = vcmp.eq.s32.totalorder %v931, %v2110
        %vm2253 = vcmp.eq.s32.totalorder %v931, %v2114
        %vm2254 = vcmp.eq.s32.totalorder %v931, %v2118
        %vm2255 = vcmp.eq.s32.totalorder %v932, %v2106
        %vm2256 = vcmp.eq.s32.totalorder %v932, %v2110
        %vm2257 = vcmp.eq.s32.totalorder %v932, %v2114
        %vm2258 = vcmp.eq.s32.totalorder %v932, %v2118
        %vm2259 = vcmp.eq.s32.totalorder %v933, %v2106
        %vm2260 = vcmp.eq.s32.totalorder %v933, %v2110
        %vm2261 = vcmp.eq.s32.totalorder %v933, %v2114
        %vm2262 = vcmp.eq.s32.totalorder %v933, %v2118
        %vm2263 = vcmp.eq.s32.totalorder %v934, %v2106
        %vm2264 = vcmp.eq.s32.totalorder %v934, %v2110
        %vm2265 = vcmp.eq.s32.totalorder %v934, %v2114
        %vm2266 = vcmp.eq.s32.totalorder %v934, %v2118
        %vm2267 = vcmp.eq.s32.totalorder %v935, %v2106
        %vm2268 = vcmp.eq.s32.totalorder %v935, %v2110
        %vm2269 = vcmp.eq.s32.totalorder %v935, %v2114
        %vm2270 = vcmp.eq.s32.totalorder %v935, %v2118
        %vm2271 = vcmp.eq.s32.totalorder %v936, %v2106
        %vm2272 = vcmp.eq.s32.totalorder %v936, %v2110
        %vm2273 = vcmp.eq.s32.totalorder %v936, %v2114
        %vm2274 = vcmp.eq.s32.totalorder %v936, %v2118
        %vm2275 = vcmp.eq.s32.totalorder %v937, %v2106
        %vm2276 = vcmp.eq.s32.totalorder %v937, %v2110
        %vm2277 = vcmp.eq.s32.totalorder %v937, %v2114
        %vm2278 = vcmp.eq.s32.totalorder %v937, %v2118
        %vm2279 = vcmp.eq.s32.totalorder %v938, %v2106
        %vm2280 = vcmp.eq.s32.totalorder %v938, %v2110
        %vm2281 = vcmp.eq.s32.totalorder %v938, %v2114
        %vm2282 = vcmp.eq.s32.totalorder %v938, %v2118
        %vm2283 = vcmp.eq.s32.totalorder %v939, %v2106
        %vm2284 = vcmp.eq.s32.totalorder %v939, %v2110
        %vm2285 = vcmp.eq.s32.totalorder %v939, %v2114
        %vm2286 = vcmp.eq.s32.totalorder %v939, %v2118
        %vm2287 = vcmp.eq.s32.totalorder %v940, %v2106
        %vm2288 = vcmp.eq.s32.totalorder %v940, %v2110
        %vm2289 = vcmp.eq.s32.totalorder %v940, %v2114
        %vm2290 = vcmp.eq.s32.totalorder %v940, %v2118
        %vm2291 = vcmp.eq.s32.totalorder %v941, %v2106
        %vm2292 = vcmp.eq.s32.totalorder %v941, %v2110
        %vm2293 = vcmp.eq.s32.totalorder %v941, %v2114
        %vm2294 = vcmp.eq.s32.totalorder %v941, %v2118
        %vm2295 = vcmp.eq.s32.totalorder %v942, %v2106
        %vm2296 = vcmp.eq.s32.totalorder %v942, %v2110
        %vm2297 = vcmp.eq.s32.totalorder %v942, %v2114
        %vm2298 = vcmp.eq.s32.totalorder %v942, %v2118
        %vm2299 = vcmp.eq.s32.totalorder %v943, %v2106
        %vm2300 = vcmp.eq.s32.totalorder %v943, %v2110
        %vm2301 = vcmp.eq.s32.totalorder %v943, %v2114
        %vm2302 = vcmp.eq.s32.totalorder %v943, %v2118
        %vm2303 = vcmp.eq.s32.totalorder %v944, %v2106
        %vm2304 = vcmp.eq.s32.totalorder %v944, %v2110
        %vm2305 = vcmp.eq.s32.totalorder %v944, %v2114
        %vm2306 = vcmp.eq.s32.totalorder %v944, %v2118
        %vm2307 = vcmp.eq.s32.totalorder %v945, %v2106
        %vm2308 = vcmp.eq.s32.totalorder %v945, %v2110
        %vm2309 = vcmp.eq.s32.totalorder %v945, %v2114
        %vm2310 = vcmp.eq.s32.totalorder %v945, %v2118
        %vm2311 = vcmp.eq.s32.totalorder %v946, %v2106
        %vm2312 = vcmp.eq.s32.totalorder %v946, %v2110
        %vm2313 = vcmp.eq.s32.totalorder %v946, %v2114
        %vm2314 = vcmp.eq.s32.totalorder %v946, %v2118
        %vm2315 = vcmp.eq.s32.totalorder %v947, %v2106
        %vm2316 = vcmp.eq.s32.totalorder %v947, %v2110
        %vm2317 = vcmp.eq.s32.totalorder %v947, %v2114
        %vm2318 = vcmp.eq.s32.totalorder %v947, %v2118
        %vm2319 = vcmp.eq.s32.totalorder %v948, %v2106
        %vm2320 = vcmp.eq.s32.totalorder %v948, %v2110
        %vm2321 = vcmp.eq.s32.totalorder %v948, %v2114
        %vm2322 = vcmp.eq.s32.totalorder %v948, %v2118
        %vm2323 = vcmp.eq.s32.totalorder %v949, %v2106
        %vm2324 = vcmp.eq.s32.totalorder %v949, %v2110
        %vm2325 = vcmp.eq.s32.totalorder %v949, %v2114
        %vm2326 = vcmp.eq.s32.totalorder %v949, %v2118
        %vm2327 = vcmp.eq.s32.totalorder %v950, %v2106
        %vm2328 = vcmp.eq.s32.totalorder %v950, %v2110
        %vm2329 = vcmp.eq.s32.totalorder %v950, %v2114
        %vm2330 = vcmp.eq.s32.totalorder %v950, %v2118
        %vm2331 = vcmp.eq.s32.totalorder %v951, %v2106
        %vm2332 = vcmp.eq.s32.totalorder %v951, %v2110
        %vm2333 = vcmp.eq.s32.totalorder %v951, %v2114
        %vm2334 = vcmp.eq.s32.totalorder %v951, %v2118
        %vm2335 = vcmp.eq.s32.totalorder %v952, %v2106
        %vm2336 = vcmp.eq.s32.totalorder %v952, %v2110
        %vm2337 = vcmp.eq.s32.totalorder %v952, %v2114
        %vm2338 = vcmp.eq.s32.totalorder %v952, %v2118
        %vm2339 = vcmp.eq.s32.totalorder %v953, %v2106
        %vm2340 = vcmp.eq.s32.totalorder %v953, %v2110
        %vm2341 = vcmp.eq.s32.totalorder %v953, %v2114
        %vm2342 = vcmp.eq.s32.totalorder %v953, %v2118
        %vm2343 = vcmp.eq.s32.totalorder %v954, %v2106
        %vm2344 = vcmp.eq.s32.totalorder %v954, %v2110
        %vm2345 = vcmp.eq.s32.totalorder %v954, %v2114
        %vm2346 = vcmp.eq.s32.totalorder %v954, %v2118
        %vm2347 = vcmp.eq.s32.totalorder %v955, %v2106
        %vm2348 = vcmp.eq.s32.totalorder %v955, %v2110
        %vm2349 = vcmp.eq.s32.totalorder %v955, %v2114
        %vm2350 = vcmp.eq.s32.totalorder %v955, %v2118
        %vm2351 = vcmp.eq.s32.totalorder %v956, %v2106
        %vm2352 = vcmp.eq.s32.totalorder %v956, %v2110
        %vm2353 = vcmp.eq.s32.totalorder %v956, %v2114
        %vm2354 = vcmp.eq.s32.totalorder %v956, %v2118
        %vm2355 = vcmp.eq.s32.totalorder %v957, %v2106
        %vm2356 = vcmp.eq.s32.totalorder %v957, %v2110
        %vm2357 = vcmp.eq.s32.totalorder %v957, %v2114
        %vm2358 = vcmp.eq.s32.totalorder %v957, %v2118
        %vm2359 = vcmp.eq.s32.totalorder %v958, %v2106
        %vm2360 = vcmp.eq.s32.totalorder %v958, %v2110
        %vm2361 = vcmp.eq.s32.totalorder %v958, %v2114
        %vm2362 = vcmp.eq.s32.totalorder %v958, %v2118
        %vm2363 = vcmp.eq.s32.totalorder %v959, %v2106
        %vm2364 = vcmp.eq.s32.totalorder %v959, %v2110
        %vm2365 = vcmp.eq.s32.totalorder %v959, %v2114
        %vm2366 = vcmp.eq.s32.totalorder %v959, %v2118
        %vm2367 = vcmp.eq.s32.totalorder %v960, %v2106
        %vm2368 = vcmp.eq.s32.totalorder %v960, %v2110
        %vm2369 = vcmp.eq.s32.totalorder %v960, %v2114
        %vm2370 = vcmp.eq.s32.totalorder %v960, %v2118
        %vm2371 = vcmp.eq.s32.totalorder %v961, %v2106
        %vm2372 = vcmp.eq.s32.totalorder %v961, %v2110
        %vm2373 = vcmp.eq.s32.totalorder %v961, %v2114
        %vm2374 = vcmp.eq.s32.totalorder %v961, %v2118
        %v2375 = vsel %vm2119, 1, 0
        %v2376 = vsel %vm2120, 1, 0
        %v2377 = vsel %vm2121, 1, 0
        %v2378 = vsel %vm2122, 1, 0
        %v2379 = vsel %vm2123, 1, 0
        %v2380 = vsel %vm2124, 1, 0
        %v2381 = vsel %vm2125, 1, 0
        %v2382 = vsel %vm2126, 1, 0
        %v2383 = vsel %vm2127, 1, 0
        %v2384 = vsel %vm2128, 1, 0
        %v2385 = vsel %vm2129, 1, 0
        %v2386 = vsel %vm2130, 1, 0
        %v2387 = vsel %vm2131, 1, 0
        %v2388 = vsel %vm2132, 1, 0
        %v2389 = vsel %vm2133, 1, 0
        %v2390 = vsel %vm2134, 1, 0
        %v2391 = vsel %vm2135, 1, 0
        %v2392 = vsel %vm2136, 1, 0
        %v2393 = vsel %vm2137, 1, 0
        %v2394 = vsel %vm2138, 1, 0
        %v2395 = vsel %vm2139, 1, 0
        %v2396 = vsel %vm2140, 1, 0
        %v2397 = vsel %vm2141, 1, 0
        %v2398 = vsel %vm2142, 1, 0
        %v2399 = vsel %vm2143, 1, 0
        %v2400 = vsel %vm2144, 1, 0
        %v2401 = vsel %vm2145, 1, 0
        %v2402 = vsel %vm2146, 1, 0
        %v2403 = vsel %vm2147, 1, 0
        %v2404 = vsel %vm2148, 1, 0
        %v2405 = vsel %vm2149, 1, 0
        %v2406 = vsel %vm2150, 1, 0
        %v2407 = vsel %vm2151, 1, 0
        %v2408 = vsel %vm2152, 1, 0
        %v2409 = vsel %vm2153, 1, 0
        %v2410 = vsel %vm2154, 1, 0
        %v2411 = vsel %vm2155, 1, 0
        %v2412 = vsel %vm2156, 1, 0
        %v2413 = vsel %vm2157, 1, 0
        %v2414 = vsel %vm2158, 1, 0
        %v2415 = vsel %vm2159, 1, 0
        %v2416 = vsel %vm2160, 1, 0
        %v2417 = vsel %vm2161, 1, 0
        %v2418 = vsel %vm2162, 1, 0
        %v2419 = vsel %vm2163, 1, 0
        %v2420 = vsel %vm2164, 1, 0
        %v2421 = vsel %vm2165, 1, 0
        %v2422 = vsel %vm2166, 1, 0
        %v2423 = vsel %vm2167, 1, 0
        %v2424 = vsel %vm2168, 1, 0
        %v2425 = vsel %vm2169, 1, 0
        %v2426 = vsel %vm2170, 1, 0
        %v2427 = vsel %vm2171, 1, 0
        %v2428 = vsel %vm2172, 1, 0
        %v2429 = vsel %vm2173, 1, 0
        %v2430 = vsel %vm2174, 1, 0
        %v2431 = vsel %vm2175, 1, 0
        %v2432 = vsel %vm2176, 1, 0
        %v2433 = vsel %vm2177, 1, 0
        %v2434 = vsel %vm2178, 1, 0
        %v2435 = vsel %vm2179, 1, 0
        %v2436 = vsel %vm2180, 1, 0
        %v2437 = vsel %vm2181, 1, 0
        %v2438 = vsel %vm2182, 1, 0
        %v2439 = vsel %vm2183, 1, 0
        %v2440 = vsel %vm2184, 1, 0
        %v2441 = vsel %vm2185, 1, 0
        %v2442 = vsel %vm2186, 1, 0
        %v2443 = vsel %vm2187, 1, 0
        %v2444 = vsel %vm2188, 1, 0
        %v2445 = vsel %vm2189, 1, 0
        %v2446 = vsel %vm2190, 1, 0
        %v2447 = vsel %vm2191, 1, 0
        %v2448 = vsel %vm2192, 1, 0
        %v2449 = vsel %vm2193, 1, 0
        %v2450 = vsel %vm2194, 1, 0
        %v2451 = vsel %vm2195, 1, 0
        %v2452 = vsel %vm2196, 1, 0
        %v2453 = vsel %vm2197, 1, 0
        %v2454 = vsel %vm2198, 1, 0
        %v2455 = vsel %vm2199, 1, 0
        %v2456 = vsel %vm2200, 1, 0
        %v2457 = vsel %vm2201, 1, 0
        %v2458 = vsel %vm2202, 1, 0
        %v2459 = vsel %vm2203, 1, 0
        %v2460 = vsel %vm2204, 1, 0
        %v2461 = vsel %vm2205, 1, 0
        %v2462 = vsel %vm2206, 1, 0
        %v2463 = vsel %vm2207, 1, 0
        %v2464 = vsel %vm2208, 1, 0
        %v2465 = vsel %vm2209, 1, 0
        %v2466 = vsel %vm2210, 1, 0
        %v2467 = vsel %vm2211, 1, 0
        %v2468 = vsel %vm2212, 1, 0
        %v2469 = vsel %vm2213, 1, 0
        %v2470 = vsel %vm2214, 1, 0
        %v2471 = vsel %vm2215, 1, 0
        %v2472 = vsel %vm2216, 1, 0
        %v2473 = vsel %vm2217, 1, 0
        %v2474 = vsel %vm2218, 1, 0
        %v2475 = vsel %vm2219, 1, 0
        %v2476 = vsel %vm2220, 1, 0
        %v2477 = vsel %vm2221, 1, 0
        %v2478 = vsel %vm2222, 1, 0
        %v2479 = vsel %vm2223, 1, 0
        %v2480 = vsel %vm2224, 1, 0
        %v2481 = vsel %vm2225, 1, 0
        %v2482 = vsel %vm2226, 1, 0
        %v2483 = vsel %vm2227, 1, 0
        %v2484 = vsel %vm2228, 1, 0
        %v2485 = vsel %vm2229, 1, 0
        %v2486 = vsel %vm2230, 1, 0
        %v2487 = vsel %vm2231, 1, 0
        %v2488 = vsel %vm2232, 1, 0
        %v2489 = vsel %vm2233, 1, 0
        %v2490 = vsel %vm2234, 1, 0
        %v2491 = vsel %vm2235, 1, 0
        %v2492 = vsel %vm2236, 1, 0
        %v2493 = vsel %vm2237, 1, 0
        %v2494 = vsel %vm2238, 1, 0
        %v2495 = vsel %vm2239, 1, 0
        %v2496 = vsel %vm2240, 1, 0
        %v2497 = vsel %vm2241, 1, 0
        %v2498 = vsel %vm2242, 1, 0
        %v2499 = vsel %vm2243, 1, 0
        %v2500 = vsel %vm2244, 1, 0
        %v2501 = vsel %vm2245, 1, 0
        %v2502 = vsel %vm2246, 1, 0
        %v2503 = vsel %vm2247, 1, 0
        %v2504 = vsel %vm2248, 1, 0
        %v2505 = vsel %vm2249, 1, 0
        %v2506 = vsel %vm2250, 1, 0
        %v2507 = vsel %vm2251, 1, 0
        %v2508 = vsel %vm2252, 1, 0
        %v2509 = vsel %vm2253, 1, 0
        %v2510 = vsel %vm2254, 1, 0
        %v2511 = vsel %vm2255, 1, 0
        %v2512 = vsel %vm2256, 1, 0
        %v2513 = vsel %vm2257, 1, 0
        %v2514 = vsel %vm2258, 1, 0
        %v2515 = vsel %vm2259, 1, 0
        %v2516 = vsel %vm2260, 1, 0
        %v2517 = vsel %vm2261, 1, 0
        %v2518 = vsel %vm2262, 1, 0
        %v2519 = vsel %vm2263, 1, 0
        %v2520 = vsel %vm2264, 1, 0
        %v2521 = vsel %vm2265, 1, 0
        %v2522 = vsel %vm2266, 1, 0
        %v2523 = vsel %vm2267, 1, 0
        %v2524 = vsel %vm2268, 1, 0
        %v2525 = vsel %vm2269, 1, 0
        %v2526 = vsel %vm2270, 1, 0
        %v2527 = vsel %vm2271, 1, 0
        %v2528 = vsel %vm2272, 1, 0
        %v2529 = vsel %vm2273, 1, 0
        %v2530 = vsel %vm2274, 1, 0
        %v2531 = vsel %vm2275, 1, 0
        %v2532 = vsel %vm2276, 1, 0
        %v2533 = vsel %vm2277, 1, 0
        %v2534 = vsel %vm2278, 1, 0
        %v2535 = vsel %vm2279, 1, 0
        %v2536 = vsel %vm2280, 1, 0
        %v2537 = vsel %vm2281, 1, 0
        %v2538 = vsel %vm2282, 1, 0
        %v2539 = vsel %vm2283, 1, 0
        %v2540 = vsel %vm2284, 1, 0
        %v2541 = vsel %vm2285, 1, 0
        %v2542 = vsel %vm2286, 1, 0
        %v2543 = vsel %vm2287, 1, 0
        %v2544 = vsel %vm2288, 1, 0
        %v2545 = vsel %vm2289, 1, 0
        %v2546 = vsel %vm2290, 1, 0
        %v2547 = vsel %vm2291, 1, 0
        %v2548 = vsel %vm2292, 1, 0
        %v2549 = vsel %vm2293, 1, 0
        %v2550 = vsel %vm2294, 1, 0
        %v2551 = vsel %vm2295, 1, 0
        %v2552 = vsel %vm2296, 1, 0
        %v2553 = vsel %vm2297, 1, 0
        %v2554 = vsel %vm2298, 1, 0
        %v2555 = vsel %vm2299, 1, 0
        %v2556 = vsel %vm2300, 1, 0
        %v2557 = vsel %vm2301, 1, 0
        %v2558 = vsel %vm2302, 1, 0
        %v2559 = vsel %vm2303, 1, 0
        %v2560 = vsel %vm2304, 1, 0
        %v2561 = vsel %vm2305, 1, 0
        %v2562 = vsel %vm2306, 1, 0
        %v2563 = vsel %vm2307, 1, 0
        %v2564 = vsel %vm2308, 1, 0
        %v2565 = vsel %vm2309, 1, 0
        %v2566 = vsel %vm2310, 1, 0
        %v2567 = vsel %vm2311, 1, 0
        %v2568 = vsel %vm2312, 1, 0
        %v2569 = vsel %vm2313, 1, 0
        %v2570 = vsel %vm2314, 1, 0
        %v2571 = vsel %vm2315, 1, 0
        %v2572 = vsel %vm2316, 1, 0
        %v2573 = vsel %vm2317, 1, 0
        %v2574 = vsel %vm2318, 1, 0
        %v2575 = vsel %vm2319, 1, 0
        %v2576 = vsel %vm2320, 1, 0
        %v2577 = vsel %vm2321, 1, 0
        %v2578 = vsel %vm2322, 1, 0
        %v2579 = vsel %vm2323, 1, 0
        %v2580 = vsel %vm2324, 1, 0
        %v2581 = vsel %vm2325, 1, 0
        %v2582 = vsel %vm2326, 1, 0
        %v2583 = vsel %vm2327, 1, 0
        %v2584 = vsel %vm2328, 1, 0
        %v2585 = vsel %vm2329, 1, 0
        %v2586 = vsel %vm2330, 1, 0
        %v2587 = vsel %vm2331, 1, 0
        %v2588 = vsel %vm2332, 1, 0
        %v2589 = vsel %vm2333, 1, 0
        %v2590 = vsel %vm2334, 1, 0
        %v2591 = vsel %vm2335, 1, 0
        %v2592 = vsel %vm2336, 1, 0
        %v2593 = vsel %vm2337, 1, 0
        %v2594 = vsel %vm2338, 1, 0
        %v2595 = vsel %vm2339, 1, 0
        %v2596 = vsel %vm2340, 1, 0
        %v2597 = vsel %vm2341, 1, 0
        %v2598 = vsel %vm2342, 1, 0
        %v2599 = vsel %vm2343, 1, 0
        %v2600 = vsel %vm2344, 1, 0
        %v2601 = vsel %vm2345, 1, 0
        %v2602 = vsel %vm2346, 1, 0
        %v2603 = vsel %vm2347, 1, 0
        %v2604 = vsel %vm2348, 1, 0
        %v2605 = vsel %vm2349, 1, 0
        %v2606 = vsel %vm2350, 1, 0
        %v2607 = vsel %vm2351, 1, 0
        %v2608 = vsel %vm2352, 1, 0
        %v2609 = vsel %vm2353, 1, 0
        %v2610 = vsel %vm2354, 1, 0
        %v2611 = vsel %vm2355, 1, 0
        %v2612 = vsel %vm2356, 1, 0
        %v2613 = vsel %vm2357, 1, 0
        %v2614 = vsel %vm2358, 1, 0
        %v2615 = vsel %vm2359, 1, 0
        %v2616 = vsel %vm2360, 1, 0
        %v2617 = vsel %vm2361, 1, 0
        %v2618 = vsel %vm2362, 1, 0
        %v2619 = vsel %vm2363, 1, 0
        %v2620 = vsel %vm2364, 1, 0
        %v2621 = vsel %vm2365, 1, 0
        %v2622 = vsel %vm2366, 1, 0
        %v2623 = vsel %vm2367, 1, 0
        %v2624 = vsel %vm2368, 1, 0
        %v2625 = vsel %vm2369, 1, 0
        %v2626 = vsel %vm2370, 1, 0
        %v2627 = vsel %vm2371, 1, 0
        %v2628 = vsel %vm2372, 1, 0
        %v2629 = vsel %vm2373, 1, 0
        %v2630 = vsel %vm2374, 1, 0
        %v2631 = vcvt.s32.f32 %v2375
        %v2632 = vcvt.s32.f32 %v2376
        %v2633 = vcvt.s32.f32 %v2377
        %v2634 = vcvt.s32.f32 %v2378
        %v2635 = vcvt.s32.f32 %v2379
        %v2636 = vcvt.s32.f32 %v2380
        %v2637 = vcvt.s32.f32 %v2381
        %v2638 = vcvt.s32.f32 %v2382
        %v2639 = vcvt.s32.f32 %v2383
        %v2640 = vcvt.s32.f32 %v2384
        %v2641 = vcvt.s32.f32 %v2385
        %v2642 = vcvt.s32.f32 %v2386
        %v2643 = vcvt.s32.f32 %v2387
        %v2644 = vcvt.s32.f32 %v2388
        %v2645 = vcvt.s32.f32 %v2389
        %v2646 = vcvt.s32.f32 %v2390
        %v2647 = vcvt.s32.f32 %v2391
        %v2648 = vcvt.s32.f32 %v2392
        %v2649 = vcvt.s32.f32 %v2393
        %v2650 = vcvt.s32.f32 %v2394
        %v2651 = vcvt.s32.f32 %v2395
        %v2652 = vcvt.s32.f32 %v2396
        %v2653 = vcvt.s32.f32 %v2397
        %v2654 = vcvt.s32.f32 %v2398
        %v2655 = vcvt.s32.f32 %v2399
        %v2656 = vcvt.s32.f32 %v2400
        %v2657 = vcvt.s32.f32 %v2401
        %v2658 = vcvt.s32.f32 %v2402
        %v2659 = vcvt.s32.f32 %v2403
        %v2660 = vcvt.s32.f32 %v2404
        %v2661 = vcvt.s32.f32 %v2405
        %v2662 = vcvt.s32.f32 %v2406
        %v2663 = vcvt.s32.f32 %v2407
        %v2664 = vcvt.s32.f32 %v2408
        %v2665 = vcvt.s32.f32 %v2409
        %v2666 = vcvt.s32.f32 %v2410
        %v2667 = vcvt.s32.f32 %v2411
        %v2668 = vcvt.s32.f32 %v2412
        %v2669 = vcvt.s32.f32 %v2413
        %v2670 = vcvt.s32.f32 %v2414
        %v2671 = vcvt.s32.f32 %v2415
        %v2672 = vcvt.s32.f32 %v2416
        %v2673 = vcvt.s32.f32 %v2417
        %v2674 = vcvt.s32.f32 %v2418
        %v2675 = vcvt.s32.f32 %v2419
        %v2676 = vcvt.s32.f32 %v2420
        %v2677 = vcvt.s32.f32 %v2421
        %v2678 = vcvt.s32.f32 %v2422
        %v2679 = vcvt.s32.f32 %v2423
        %v2680 = vcvt.s32.f32 %v2424
        %v2681 = vcvt.s32.f32 %v2425
        %v2682 = vcvt.s32.f32 %v2426
        %v2683 = vcvt.s32.f32 %v2427
        %v2684 = vcvt.s32.f32 %v2428
        %v2685 = vcvt.s32.f32 %v2429
        %v2686 = vcvt.s32.f32 %v2430
        %v2687 = vcvt.s32.f32 %v2431
        %v2688 = vcvt.s32.f32 %v2432
        %v2689 = vcvt.s32.f32 %v2433
        %v2690 = vcvt.s32.f32 %v2434
        %v2691 = vcvt.s32.f32 %v2435
        %v2692 = vcvt.s32.f32 %v2436
        %v2693 = vcvt.s32.f32 %v2437
        %v2694 = vcvt.s32.f32 %v2438
        %v2695 = vcvt.s32.f32 %v2439
        %v2696 = vcvt.s32.f32 %v2440
        %v2697 = vcvt.s32.f32 %v2441
        %v2698 = vcvt.s32.f32 %v2442
        %v2699 = vcvt.s32.f32 %v2443
        %v2700 = vcvt.s32.f32 %v2444
        %v2701 = vcvt.s32.f32 %v2445
        %v2702 = vcvt.s32.f32 %v2446
        %v2703 = vcvt.s32.f32 %v2447
        %v2704 = vcvt.s32.f32 %v2448
        %v2705 = vcvt.s32.f32 %v2449
        %v2706 = vcvt.s32.f32 %v2450
        %v2707 = vcvt.s32.f32 %v2451
        %v2708 = vcvt.s32.f32 %v2452
        %v2709 = vcvt.s32.f32 %v2453
        %v2710 = vcvt.s32.f32 %v2454
        %v2711 = vcvt.s32.f32 %v2455
        %v2712 = vcvt.s32.f32 %v2456
        %v2713 = vcvt.s32.f32 %v2457
        %v2714 = vcvt.s32.f32 %v2458
        %v2715 = vcvt.s32.f32 %v2459
        %v2716 = vcvt.s32.f32 %v2460
        %v2717 = vcvt.s32.f32 %v2461
        %v2718 = vcvt.s32.f32 %v2462
        %v2719 = vcvt.s32.f32 %v2463
        %v2720 = vcvt.s32.f32 %v2464
        %v2721 = vcvt.s32.f32 %v2465
        %v2722 = vcvt.s32.f32 %v2466
        %v2723 = vcvt.s32.f32 %v2467
        %v2724 = vcvt.s32.f32 %v2468
        %v2725 = vcvt.s32.f32 %v2469
        %v2726 = vcvt.s32.f32 %v2470
        %v2727 = vcvt.s32.f32 %v2471
        %v2728 = vcvt.s32.f32 %v2472
        %v2729 = vcvt.s32.f32 %v2473
        %v2730 = vcvt.s32.f32 %v2474
        %v2731 = vcvt.s32.f32 %v2475
        %v2732 = vcvt.s32.f32 %v2476
        %v2733 = vcvt.s32.f32 %v2477
        %v2734 = vcvt.s32.f32 %v2478
        %v2735 = vcvt.s32.f32 %v2479
        %v2736 = vcvt.s32.f32 %v2480
        %v2737 = vcvt.s32.f32 %v2481
        %v2738 = vcvt.s32.f32 %v2482
        %v2739 = vcvt.s32.f32 %v2483
        %v2740 = vcvt.s32.f32 %v2484
        %v2741 = vcvt.s32.f32 %v2485
        %v2742 = vcvt.s32.f32 %v2486
        %v2743 = vcvt.s32.f32 %v2487
        %v2744 = vcvt.s32.f32 %v2488
        %v2745 = vcvt.s32.f32 %v2489
        %v2746 = vcvt.s32.f32 %v2490
        %v2747 = vcvt.s32.f32 %v2491
        %v2748 = vcvt.s32.f32 %v2492
        %v2749 = vcvt.s32.f32 %v2493
        %v2750 = vcvt.s32.f32 %v2494
        %v2751 = vcvt.s32.f32 %v2495
        %v2752 = vcvt.s32.f32 %v2496
        %v2753 = vcvt.s32.f32 %v2497
        %v2754 = vcvt.s32.f32 %v2498
        %v2755 = vcvt.s32.f32 %v2499
        %v2756 = vcvt.s32.f32 %v2500
        %v2757 = vcvt.s32.f32 %v2501
        %v2758 = vcvt.s32.f32 %v2502
        %v2759 = vcvt.s32.f32 %v2503
        %v2760 = vcvt.s32.f32 %v2504
        %v2761 = vcvt.s32.f32 %v2505
        %v2762 = vcvt.s32.f32 %v2506
        %v2763 = vcvt.s32.f32 %v2507
        %v2764 = vcvt.s32.f32 %v2508
        %v2765 = vcvt.s32.f32 %v2509
        %v2766 = vcvt.s32.f32 %v2510
        %v2767 = vcvt.s32.f32 %v2511
        %v2768 = vcvt.s32.f32 %v2512
        %v2769 = vcvt.s32.f32 %v2513
        %v2770 = vcvt.s32.f32 %v2514
        %v2771 = vcvt.s32.f32 %v2515
        %v2772 = vcvt.s32.f32 %v2516
        %v2773 = vcvt.s32.f32 %v2517
        %v2774 = vcvt.s32.f32 %v2518
        %v2775 = vcvt.s32.f32 %v2519
        %v2776 = vcvt.s32.f32 %v2520
        %v2777 = vcvt.s32.f32 %v2521
        %v2778 = vcvt.s32.f32 %v2522
        %v2779 = vcvt.s32.f32 %v2523
        %v2780 = vcvt.s32.f32 %v2524
        %v2781 = vcvt.s32.f32 %v2525
        %v2782 = vcvt.s32.f32 %v2526
        %v2783 = vcvt.s32.f32 %v2527
        %v2784 = vcvt.s32.f32 %v2528
        %v2785 = vcvt.s32.f32 %v2529
        %v2786 = vcvt.s32.f32 %v2530
        %v2787 = vcvt.s32.f32 %v2531
        %v2788 = vcvt.s32.f32 %v2532
        %v2789 = vcvt.s32.f32 %v2533
        %v2790 = vcvt.s32.f32 %v2534
        %v2791 = vcvt.s32.f32 %v2535
        %v2792 = vcvt.s32.f32 %v2536
        %v2793 = vcvt.s32.f32 %v2537
        %v2794 = vcvt.s32.f32 %v2538
        %v2795 = vcvt.s32.f32 %v2539
        %v2796 = vcvt.s32.f32 %v2540
        %v2797 = vcvt.s32.f32 %v2541
        %v2798 = vcvt.s32.f32 %v2542
        %v2799 = vcvt.s32.f32 %v2543
        %v2800 = vcvt.s32.f32 %v2544
        %v2801 = vcvt.s32.f32 %v2545
        %v2802 = vcvt.s32.f32 %v2546
        %v2803 = vcvt.s32.f32 %v2547
        %v2804 = vcvt.s32.f32 %v2548
        %v2805 = vcvt.s32.f32 %v2549
        %v2806 = vcvt.s32.f32 %v2550
        %v2807 = vcvt.s32.f32 %v2551
        %v2808 = vcvt.s32.f32 %v2552
        %v2809 = vcvt.s32.f32 %v2553
        %v2810 = vcvt.s32.f32 %v2554
        %v2811 = vcvt.s32.f32 %v2555
        %v2812 = vcvt.s32.f32 %v2556
        %v2813 = vcvt.s32.f32 %v2557
        %v2814 = vcvt.s32.f32 %v2558
        %v2815 = vcvt.s32.f32 %v2559
        %v2816 = vcvt.s32.f32 %v2560
        %v2817 = vcvt.s32.f32 %v2561
        %v2818 = vcvt.s32.f32 %v2562
        %v2819 = vcvt.s32.f32 %v2563
        %v2820 = vcvt.s32.f32 %v2564
        %v2821 = vcvt.s32.f32 %v2565
        %v2822 = vcvt.s32.f32 %v2566
        %v2823 = vcvt.s32.f32 %v2567
        %v2824 = vcvt.s32.f32 %v2568
        %v2825 = vcvt.s32.f32 %v2569
        %v2826 = vcvt.s32.f32 %v2570
        %v2827 = vcvt.s32.f32 %v2571
        %v2828 = vcvt.s32.f32 %v2572
        %v2829 = vcvt.s32.f32 %v2573
        %v2830 = vcvt.s32.f32 %v2574
        %v2831 = vcvt.s32.f32 %v2575
        %v2832 = vcvt.s32.f32 %v2576
        %v2833 = vcvt.s32.f32 %v2577
        %v2834 = vcvt.s32.f32 %v2578
        %v2835 = vcvt.s32.f32 %v2579
        %v2836 = vcvt.s32.f32 %v2580
        %v2837 = vcvt.s32.f32 %v2581
        %v2838 = vcvt.s32.f32 %v2582
        %v2839 = vcvt.s32.f32 %v2583
        %v2840 = vcvt.s32.f32 %v2584
        %v2841 = vcvt.s32.f32 %v2585
        %v2842 = vcvt.s32.f32 %v2586
        %v2843 = vcvt.s32.f32 %v2587
        %v2844 = vcvt.s32.f32 %v2588
        %v2845 = vcvt.s32.f32 %v2589
        %v2846 = vcvt.s32.f32 %v2590
        %v2847 = vcvt.s32.f32 %v2591
        %v2848 = vcvt.s32.f32 %v2592
        %v2849 = vcvt.s32.f32 %v2593
        %v2850 = vcvt.s32.f32 %v2594
        %v2851 = vcvt.s32.f32 %v2595
        %v2852 = vcvt.s32.f32 %v2596
        %v2853 = vcvt.s32.f32 %v2597
        %v2854 = vcvt.s32.f32 %v2598
        %v2855 = vcvt.s32.f32 %v2599
        %v2856 = vcvt.s32.f32 %v2600
        %v2857 = vcvt.s32.f32 %v2601
        %v2858 = vcvt.s32.f32 %v2602
        %v2859 = vcvt.s32.f32 %v2603
        %v2860 = vcvt.s32.f32 %v2604
        %v2861 = vcvt.s32.f32 %v2605
        %v2862 = vcvt.s32.f32 %v2606
        %v2863 = vcvt.s32.f32 %v2607
        %v2864 = vcvt.s32.f32 %v2608
        %v2865 = vcvt.s32.f32 %v2609
        %v2866 = vcvt.s32.f32 %v2610
        %v2867 = vcvt.s32.f32 %v2611
        %v2868 = vcvt.s32.f32 %v2612
        %v2869 = vcvt.s32.f32 %v2613
        %v2870 = vcvt.s32.f32 %v2614
        %v2871 = vcvt.s32.f32 %v2615
        %v2872 = vcvt.s32.f32 %v2616
        %v2873 = vcvt.s32.f32 %v2617
        %v2874 = vcvt.s32.f32 %v2618
        %v2875 = vcvt.s32.f32 %v2619
        %v2876 = vcvt.s32.f32 %v2620
        %v2877 = vcvt.s32.f32 %v2621
        %v2878 = vcvt.s32.f32 %v2622
        %v2879 = vcvt.s32.f32 %v2623
        %v2880 = vcvt.s32.f32 %v2624
        %v2881 = vcvt.s32.f32 %v2625
        %v2882 = vcvt.s32.f32 %v2626
        %v2883 = vcvt.s32.f32 %v2627
        %v2884 = vcvt.s32.f32 %v2628
        %v2885 = vcvt.s32.f32 %v2629
        %v2886 = vcvt.s32.f32 %v2630
        %2887 = vmatprep.subr.mxu0 %v2692
        %2888 = vmatpush1.msra.mxu0 %v2691
        %2889 = vmatprep.subr.mxu0 %v2688
        %2890 = vmatpush1.msra.mxu0 %v2687
        %2891 = vmatprep.subr.mxu0 %v2684
        %2892 = vmatpush1.msra.mxu0 %v2683
        %2893 = vmatprep.subr.mxu0 %v2680
        %2894 = vmatpush1.msra.mxu0 %v2679
        %2895 = vmatprep.subr.mxu0 %v2676
        %2896 = vmatpush1.msra.mxu0 %v2675
        %2897 = vmatprep.subr.mxu0 %v2672
        %2898 = vmatpush1.msra.mxu0 %v2671
        %2899 = vmatprep.subr.mxu0 %v2668
        %2900 = vmatpush1.msra.mxu0 %v2667
        %2901 = vmatprep.subr.mxu0 %v2664
        %2902 = vmatpush1.msra.mxu0 %v2663
        %2903 = vmatprep.subr.mxu0 %v2660
        %2904 = vmatpush1.msra.mxu0 %v2659
        %2905 = vmatprep.subr.mxu0 %v2656
        %2906 = vmatpush1.msra.mxu0 %v2655
        %2907 = vmatprep.subr.mxu0 %v2652
        %2908 = vmatpush1.msra.mxu0 %v2651
        %2909 = vmatprep.subr.mxu0 %v2648
        %2910 = vmatpush1.msra.mxu0 %v2647
        %2911 = vmatprep.subr.mxu0 %v2644
        %2912 = vmatpush1.msra.mxu0 %v2643
        %2913 = vmatprep.subr.mxu0 %v2640
        %2914 = vmatpush1.msra.mxu0 %v2639
        %2915 = vmatprep.subr.mxu0 %v2636
        %2916 = vmatpush1.msra.mxu0 %v2635
        %2917 = vmatprep.subr.mxu0 %v2632
        %2918 = vmatpush1.msra.mxu0 %v2631
        %2919 = vmatprep.subr.mxu0 %v2756
        %2920 = vmatpush2.msra.mxu0 %v2755
        %2921 = vmatprep.subr.mxu0 %v2752
        %2922 = vmatpush2.msra.mxu0 %v2751
        %2923 = vmatprep.subr.mxu0 %v2748
        %2924 = vmatpush2.msra.mxu0 %v2747
        %2925 = vmatprep.subr.mxu0 %v2744
        %2926 = vmatpush2.msra.mxu0 %v2743
        %2927 = vmatprep.subr.mxu0 %v2740
        %2928 = vmatpush2.msra.mxu0 %v2739
        %2929 = vmatprep.subr.mxu0 %v2736
        %2930 = vmatpush2.msra.mxu0 %v2735
        %2931 = vmatprep.subr.mxu0 %v2732
        %2932 = vmatpush2.msra.mxu0 %v2731
        %2933 = vmatprep.subr.mxu0 %v2728
        %2934 = vmatpush2.msra.mxu0 %v2727
        %2935 = vmatprep.subr.mxu0 %v2724
        %2936 = vmatpush2.msra.mxu0 %v2723
        %2937 = vmatprep.subr.mxu0 %v2720
        %2938 = vmatpush2.msra.mxu0 %v2719
        %2939 = vmatprep.subr.mxu0 %v2716
        %2940 = vmatpush2.msra.mxu0 %v2715
        %2941 = vmatprep.subr.mxu0 %v2712
        %2942 = vmatpush2.msra.mxu0 %v2711
        %2943 = vmatprep.subr.mxu0 %v2708
        %2944 = vmatpush2.msra.mxu0 %v2707
        %2945 = vmatprep.subr.mxu0 %v2704
        %2946 = vmatpush2.msra.mxu0 %v2703
        %2947 = vmatprep.subr.mxu0 %v2700
        %2948 = vmatpush2.msra.mxu0 %v2699
        %2949 = vmatprep.subr.mxu0 %v2696
        %2950 = vmatpush2.msra.mxu0 %v2695
        %2951 = vmatprep.mubr.f32.mxu0 %v302
        %2952 = vmatmul.mubr.f32.gmra.mxu0 %v301
        %v2953 = vpop.f32.mrf.mxu0
        %v2954 = vadd.f32 0.0, %v2953
        %v2955 = vpop.f32.mrf.mxu0
        %v2956 = vadd.f32 0.0, %v2955
        %2957 = vmatprep.mubr.f32.mxu0 %v306
        %2958 = vmatmul.mubr.f32.gmra.mxu0 %v305
        %v2959 = vpop.f32.mrf.mxu0
        %v2960 = vadd.f32 0.0, %v2959
        %v2961 = vpop.f32.mrf.mxu0
        %v2962 = vadd.f32 0.0, %v2961
        %2963 = vmatprep.mubr.f32.mxu0 %v310
        %2964 = vmatmul.mubr.f32.gmra.mxu0 %v309
        %v2965 = vpop.f32.mrf.mxu0
        %v2966 = vadd.f32 0.0, %v2965
        %v2967 = vpop.f32.mrf.mxu0
        %v2968 = vadd.f32 0.0, %v2967
        %2969 = vmatprep.mubr.f32.mxu0 %v314
        %2970 = vmatmul.mubr.f32.gmra.mxu0 %v313
        %v2971 = vpop.f32.mrf.mxu0
        %v2972 = vadd.f32 0.0, %v2971
        %v2973 = vpop.f32.mrf.mxu0
        %v2974 = vadd.f32 0.0, %v2973
        %2975 = vdwg.mxu0
        %2976 = vmatprep.subr.mxu0 %v2820
        %2977 = vmatpush1.msra.mxu0 %v2819
        %2978 = vmatprep.subr.mxu0 %v2816
        %2979 = vmatpush1.msra.mxu0 %v2815
        %2980 = vmatprep.subr.mxu0 %v2812
        %2981 = vmatpush1.msra.mxu0 %v2811
        %2982 = vmatprep.subr.mxu0 %v2808
        %2983 = vmatpush1.msra.mxu0 %v2807
        %2984 = vmatprep.subr.mxu0 %v2804
        %2985 = vmatpush1.msra.mxu0 %v2803
        %2986 = vmatprep.subr.mxu0 %v2800
        %2987 = vmatpush1.msra.mxu0 %v2799
        %2988 = vmatprep.subr.mxu0 %v2796
        %2989 = vmatpush1.msra.mxu0 %v2795
        %2990 = vmatprep.subr.mxu0 %v2792
        %2991 = vmatpush1.msra.mxu0 %v2791
        %2992 = vmatprep.subr.mxu0 %v2788
        %2993 = vmatpush1.msra.mxu0 %v2787
        %2994 = vmatprep.subr.mxu0 %v2784
        %2995 = vmatpush1.msra.mxu0 %v2783
        %2996 = vmatprep.subr.mxu0 %v2780
        %2997 = vmatpush1.msra.mxu0 %v2779
        %2998 = vmatprep.subr.mxu0 %v2776
        %2999 = vmatpush1.msra.mxu0 %v2775
        %3000 = vmatprep.subr.mxu0 %v2772
        %3001 = vmatpush1.msra.mxu0 %v2771
        %3002 = vmatprep.subr.mxu0 %v2768
        %3003 = vmatpush1.msra.mxu0 %v2767
        %3004 = vmatprep.subr.mxu0 %v2764
        %3005 = vmatpush1.msra.mxu0 %v2763
        %3006 = vmatprep.subr.mxu0 %v2760
        %3007 = vmatpush1.msra.mxu0 %v2759
        %3008 = vmatprep.subr.mxu0 %v2884
        %3009 = vmatpush2.msra.mxu0 %v2883
        %3010 = vmatprep.subr.mxu0 %v2880
        %3011 = vmatpush2.msra.mxu0 %v2879
        %3012 = vmatprep.subr.mxu0 %v2876
        %3013 = vmatpush2.msra.mxu0 %v2875
        %3014 = vmatprep.subr.mxu0 %v2872
        %3015 = vmatpush2.msra.mxu0 %v2871
        %3016 = vmatprep.subr.mxu0 %v2868
        %3017 = vmatpush2.msra.mxu0 %v2867
        %3018 = vmatprep.subr.mxu0 %v2864
        %3019 = vmatpush2.msra.mxu0 %v2863
        %3020 = vmatprep.subr.mxu0 %v2860
        %3021 = vmatpush2.msra.mxu0 %v2859
        %3022 = vmatprep.subr.mxu0 %v2856
        %3023 = vmatpush2.msra.mxu0 %v2855
        %3024 = vmatprep.subr.mxu0 %v2852
        %3025 = vmatpush2.msra.mxu0 %v2851
        %3026 = vmatprep.subr.mxu0 %v2848
        %3027 = vmatpush2.msra.mxu0 %v2847
        %3028 = vmatprep.subr.mxu0 %v2844
        %3029 = vmatpush2.msra.mxu0 %v2843
        %3030 = vmatprep.subr.mxu0 %v2840
        %3031 = vmatpush2.msra.mxu0 %v2839
        %3032 = vmatprep.subr.mxu0 %v2836
        %3033 = vmatpush2.msra.mxu0 %v2835
        %3034 = vmatprep.subr.mxu0 %v2832
        %3035 = vmatpush2.msra.mxu0 %v2831
        %3036 = vmatprep.subr.mxu0 %v2828
        %3037 = vmatpush2.msra.mxu0 %v2827
        %3038 = vmatprep.subr.mxu0 %v2824
        %3039 = vmatpush2.msra.mxu0 %v2823
        %3040 = vmatprep.mubr.f32.mxu0 %v304
        %3041 = vmatmul.mubr.f32.gmra.mxu0 %v303
        %v3042 = vpop.f32.mrf.mxu0
        %v3043 = vadd.f32 %v2954, %v3042
        %v3044 = vpop.f32.mrf.mxu0
        %v3045 = vadd.f32 %v2956, %v3044
        %3046 = vmatprep.mubr.f32.mxu0 %v308
        %3047 = vmatmul.mubr.f32.gmra.mxu0 %v307
        %v3048 = vpop.f32.mrf.mxu0
        %v3049 = vadd.f32 %v2960, %v3048
        %v3050 = vpop.f32.mrf.mxu0
        %v3051 = vadd.f32 %v2962, %v3050
        %3052 = vmatprep.mubr.f32.mxu0 %v312
        %3053 = vmatmul.mubr.f32.gmra.mxu0 %v311
        %v3054 = vpop.f32.mrf.mxu0
        %v3055 = vadd.f32 %v2966, %v3054
        %v3056 = vpop.f32.mrf.mxu0
        %v3057 = vadd.f32 %v2968, %v3056
        %3058 = vmatprep.mubr.f32.mxu0 %v316
        %3059 = vmatmul.mubr.f32.gmra.mxu0 %v315
        %v3060 = vpop.f32.mrf.mxu0
        %v3061 = vadd.f32 %v2972, %v3060
        %v3062 = vpop.f32.mrf.mxu0
        %v3063 = vadd.f32 %v2974, %v3062
        %3064 = vdwg.mxu0
        %3065 = vmatprep.subr.mxu0 %v2694
        %3066 = vmatpush1.msra.mxu0 %v2693
        %3067 = vmatprep.subr.mxu0 %v2690
        %3068 = vmatpush1.msra.mxu0 %v2689
        %3069 = vmatprep.subr.mxu0 %v2686
        %3070 = vmatpush1.msra.mxu0 %v2685
        %3071 = vmatprep.subr.mxu0 %v2682
        %3072 = vmatpush1.msra.mxu0 %v2681
        %3073 = vmatprep.subr.mxu0 %v2678
        %3074 = vmatpush1.msra.mxu0 %v2677
        %3075 = vmatprep.subr.mxu0 %v2674
        %3076 = vmatpush1.msra.mxu0 %v2673
        %3077 = vmatprep.subr.mxu0 %v2670
        %3078 = vmatpush1.msra.mxu0 %v2669
        %3079 = vmatprep.subr.mxu0 %v2666
        %3080 = vmatpush1.msra.mxu0 %v2665
        %3081 = vmatprep.subr.mxu0 %v2662
        %3082 = vmatpush1.msra.mxu0 %v2661
        %3083 = vmatprep.subr.mxu0 %v2658
        %3084 = vmatpush1.msra.mxu0 %v2657
        %3085 = vmatprep.subr.mxu0 %v2654
        %3086 = vmatpush1.msra.mxu0 %v2653
        %3087 = vmatprep.subr.mxu0 %v2650
        %3088 = vmatpush1.msra.mxu0 %v2649
        %3089 = vmatprep.subr.mxu0 %v2646
        %3090 = vmatpush1.msra.mxu0 %v2645
        %3091 = vmatprep.subr.mxu0 %v2642
        %3092 = vmatpush1.msra.mxu0 %v2641
        %3093 = vmatprep.subr.mxu0 %v2638
        %3094 = vmatpush1.msra.mxu0 %v2637
        %3095 = vmatprep.subr.mxu0 %v2634
        %3096 = vmatpush1.msra.mxu0 %v2633
        %3097 = vmatprep.subr.mxu0 %v2758
        %3098 = vmatpush2.msra.mxu0 %v2757
        %3099 = vmatprep.subr.mxu0 %v2754
        %3100 = vmatpush2.msra.mxu0 %v2753
        %3101 = vmatprep.subr.mxu0 %v2750
        %3102 = vmatpush2.msra.mxu0 %v2749
        %3103 = vmatprep.subr.mxu0 %v2746
        %3104 = vmatpush2.msra.mxu0 %v2745
        %3105 = vmatprep.subr.mxu0 %v2742
        %3106 = vmatpush2.msra.mxu0 %v2741
        %3107 = vmatprep.subr.mxu0 %v2738
        %3108 = vmatpush2.msra.mxu0 %v2737
        %3109 = vmatprep.subr.mxu0 %v2734
        %3110 = vmatpush2.msra.mxu0 %v2733
        %3111 = vmatprep.subr.mxu0 %v2730
        %3112 = vmatpush2.msra.mxu0 %v2729
        %3113 = vmatprep.subr.mxu0 %v2726
        %3114 = vmatpush2.msra.mxu0 %v2725
        %3115 = vmatprep.subr.mxu0 %v2722
        %3116 = vmatpush2.msra.mxu0 %v2721
        %3117 = vmatprep.subr.mxu0 %v2718
        %3118 = vmatpush2.msra.mxu0 %v2717
        %3119 = vmatprep.subr.mxu0 %v2714
        %3120 = vmatpush2.msra.mxu0 %v2713
        %3121 = vmatprep.subr.mxu0 %v2710
        %3122 = vmatpush2.msra.mxu0 %v2709
        %3123 = vmatprep.subr.mxu0 %v2706
        %3124 = vmatpush2.msra.mxu0 %v2705
        %3125 = vmatprep.subr.mxu0 %v2702
        %3126 = vmatpush2.msra.mxu0 %v2701
        %3127 = vmatprep.subr.mxu0 %v2698
        %3128 = vmatpush2.msra.mxu0 %v2697
        %3129 = vmatprep.mubr.f32.mxu0 %v302
        %3130 = vmatmul.mubr.f32.gmra.mxu0 %v301
        %v3131 = vpop.f32.mrf.mxu0
        %v3132 = vadd.f32 0.0, %v3131
        %v3133 = vpop.f32.mrf.mxu0
        %v3134 = vadd.f32 0.0, %v3133
        %3135 = vmatprep.mubr.f32.mxu0 %v306
        %3136 = vmatmul.mubr.f32.gmra.mxu0 %v305
        %v3137 = vpop.f32.mrf.mxu0
        %v3138 = vadd.f32 0.0, %v3137
        %v3139 = vpop.f32.mrf.mxu0
        %v3140 = vadd.f32 0.0, %v3139
        %3141 = vmatprep.mubr.f32.mxu0 %v310
        %3142 = vmatmul.mubr.f32.gmra.mxu0 %v309
        %v3143 = vpop.f32.mrf.mxu0
        %v3144 = vadd.f32 0.0, %v3143
        %v3145 = vpop.f32.mrf.mxu0
        %v3146 = vadd.f32 0.0, %v3145
        %3147 = vmatprep.mubr.f32.mxu0 %v314
        %3148 = vmatmul.mubr.f32.gmra.mxu0 %v313
        %v3149 = vpop.f32.mrf.mxu0
        %v3150 = vadd.f32 0.0, %v3149
        %v3151 = vpop.f32.mrf.mxu0
        %v3152 = vadd.f32 0.0, %v3151
        %3153 = vdwg.mxu0
        %3154 = vmatprep.subr.mxu0 %v2822
        %3155 = vmatpush1.msra.mxu0 %v2821
        %3156 = vmatprep.subr.mxu0 %v2818
        %3157 = vmatpush1.msra.mxu0 %v2817
        %3158 = vmatprep.subr.mxu0 %v2814
        %3159 = vmatpush1.msra.mxu0 %v2813
        %3160 = vmatprep.subr.mxu0 %v2810
        %3161 = vmatpush1.msra.mxu0 %v2809
        %3162 = vmatprep.subr.mxu0 %v2806
        %3163 = vmatpush1.msra.mxu0 %v2805
        %3164 = vmatprep.subr.mxu0 %v2802
        %3165 = vmatpush1.msra.mxu0 %v2801
        %3166 = vmatprep.subr.mxu0 %v2798
        %3167 = vmatpush1.msra.mxu0 %v2797
        %3168 = vmatprep.subr.mxu0 %v2794
        %3169 = vmatpush1.msra.mxu0 %v2793
        %3170 = vmatprep.subr.mxu0 %v2790
        %3171 = vmatpush1.msra.mxu0 %v2789
        %3172 = vmatprep.subr.mxu0 %v2786
        %3173 = vmatpush1.msra.mxu0 %v2785
        %3174 = vmatprep.subr.mxu0 %v2782
        %3175 = vmatpush1.msra.mxu0 %v2781
        %3176 = vmatprep.subr.mxu0 %v2778
        %3177 = vmatpush1.msra.mxu0 %v2777
        %3178 = vmatprep.subr.mxu0 %v2774
        %3179 = vmatpush1.msra.mxu0 %v2773
        %3180 = vmatprep.subr.mxu0 %v2770
        %3181 = vmatpush1.msra.mxu0 %v2769
        %3182 = vmatprep.subr.mxu0 %v2766
        %3183 = vmatpush1.msra.mxu0 %v2765
        %3184 = vmatprep.subr.mxu0 %v2762
        %3185 = vmatpush1.msra.mxu0 %v2761
        %3186 = vmatprep.subr.mxu0 %v2886
        %3187 = vmatpush2.msra.mxu0 %v2885
        %3188 = vmatprep.subr.mxu0 %v2882
        %3189 = vmatpush2.msra.mxu0 %v2881
        %3190 = vmatprep.subr.mxu0 %v2878
        %3191 = vmatpush2.msra.mxu0 %v2877
        %3192 = vmatprep.subr.mxu0 %v2874
        %3193 = vmatpush2.msra.mxu0 %v2873
        %3194 = vmatprep.subr.mxu0 %v2870
        %3195 = vmatpush2.msra.mxu0 %v2869
        %3196 = vmatprep.subr.mxu0 %v2866
        %3197 = vmatpush2.msra.mxu0 %v2865
        %3198 = vmatprep.subr.mxu0 %v2862
        %3199 = vmatpush2.msra.mxu0 %v2861
        %3200 = vmatprep.subr.mxu0 %v2858
        %3201 = vmatpush2.msra.mxu0 %v2857
        %3202 = vmatprep.subr.mxu0 %v2854
        %3203 = vmatpush2.msra.mxu0 %v2853
        %3204 = vmatprep.subr.mxu0 %v2850
        %3205 = vmatpush2.msra.mxu0 %v2849
        %3206 = vmatprep.subr.mxu0 %v2846
        %3207 = vmatpush2.msra.mxu0 %v2845
        %3208 = vmatprep.subr.mxu0 %v2842
        %3209 = vmatpush2.msra.mxu0 %v2841
        %3210 = vmatprep.subr.mxu0 %v2838
        %3211 = vmatpush2.msra.mxu0 %v2837
        %3212 = vmatprep.subr.mxu0 %v2834
        %3213 = vmatpush2.msra.mxu0 %v2833
        %3214 = vmatprep.subr.mxu0 %v2830
        %3215 = vmatpush2.msra.mxu0 %v2829
        %3216 = vmatprep.subr.mxu0 %v2826
        %3217 = vmatpush2.msra.mxu0 %v2825
        %3218 = vmatprep.mubr.f32.mxu0 %v304
        %3219 = vmatmul.mubr.f32.gmra.mxu0 %v303
        %v3220 = vpop.f32.mrf.mxu0
        %v3221 = vadd.f32 %v3132, %v3220
        %v3222 = vpop.f32.mrf.mxu0
        %v3223 = vadd.f32 %v3134, %v3222
        %3224 = vmatprep.mubr.f32.mxu0 %v308
        %3225 = vmatmul.mubr.f32.gmra.mxu0 %v307
        %v3226 = vpop.f32.mrf.mxu0
        %v3227 = vadd.f32 %v3138, %v3226
        %v3228 = vpop.f32.mrf.mxu0
        %v3229 = vadd.f32 %v3140, %v3228
        %3230 = vmatprep.mubr.f32.mxu0 %v312
        %3231 = vmatmul.mubr.f32.gmra.mxu0 %v311
        %v3232 = vpop.f32.mrf.mxu0
        %v3233 = vadd.f32 %v3144, %v3232
        %v3234 = vpop.f32.mrf.mxu0
        %v3235 = vadd.f32 %v3146, %v3234
        %3236 = vmatprep.mubr.f32.mxu0 %v316
        %3237 = vmatmul.mubr.f32.gmra.mxu0 %v315
        %v3238 = vpop.f32.mrf.mxu0
        %v3239 = vadd.f32 %v3150, %v3238
        %v3240 = vpop.f32.mrf.mxu0
        %v3241 = vadd.f32 %v3152, %v3240
        %3242 = vdwg.mxu0
        %v3243 = vmul.f32 %v818, %v1902
        %v3244 = vmul.f32 %v820, %v1904
        %v3245 = vmul.f32 %v907, %v2080
        %v3246 = vmul.f32 %v909, %v2082
        %v3247 = vmul.f32 %v824, %v1908
        %v3248 = vmul.f32 %v826, %v1910
        %v3249 = vmul.f32 %v913, %v2086
        %v3250 = vmul.f32 %v915, %v2088
        %v3251 = vmul.f32 %v830, %v1914
        %v3252 = vmul.f32 %v832, %v1916
        %v3253 = vmul.f32 %v919, %v2092
        %v3254 = vmul.f32 %v921, %v2094
        %v3255 = vmul.f32 %v836, %v1920
        %v3256 = vmul.f32 %v838, %v1922
        %v3257 = vmul.f32 %v925, %v2098
        %v3258 = vmul.f32 %v927, %v2100
        %v3259 = vadd.f32 %v3243, %v3247
        %v3260 = vadd.f32 %v3259, %v3251
        %v3261 = vadd.f32 %v3260, %v3255
        %v3262 = vrot.slane %v3261, 4
        %v3263 = vadd.f32 %v3261, %v3262
        %v3264 = vrot.slane %v3263, 2
        %v3265 = vadd.f32 %v3263, %v3264
        %v3266 = vrot.slane %v3265, 1
        %v3267 = vadd.f32 %v3265, %v3266
        %v3268 = vadd.f32 %v3244, %v3248
        %v3269 = vadd.f32 %v3268, %v3252
        %v3270 = vadd.f32 %v3269, %v3256
        %v3271 = vrot.slane %v3270, 4
        %v3272 = vadd.f32 %v3270, %v3271
        %v3273 = vrot.slane %v3272, 2
        %v3274 = vadd.f32 %v3272, %v3273
        %v3275 = vrot.slane %v3274, 1
        %v3276 = vadd.f32 %v3274, %v3275
        %v3277 = vadd.f32 %v3245, %v3249
        %v3278 = vadd.f32 %v3277, %v3253
        %v3279 = vadd.f32 %v3278, %v3257
        %v3280 = vrot.slane %v3279, 4
        %v3281 = vadd.f32 %v3279, %v3280
        %v3282 = vrot.slane %v3281, 2
        %v3283 = vadd.f32 %v3281, %v3282
        %v3284 = vrot.slane %v3283, 1
        %v3285 = vadd.f32 %v3283, %v3284
        %v3286 = vadd.f32 %v3246, %v3250
        %v3287 = vadd.f32 %v3286, %v3254
        %v3288 = vadd.f32 %v3287, %v3258
        %v3289 = vrot.slane %v3288, 4
        %v3290 = vadd.f32 %v3288, %v3289
        %v3291 = vrot.slane %v3290, 2
        %v3292 = vadd.f32 %v3290, %v3291
        %v3293 = vrot.slane %v3292, 1
        %v3294 = vadd.f32 %v3292, %v3293
        %v3299 = vcombine.low %v3267, %v3276
        %v3300 = vcombine.low %v3285, %v3294
        %v3302 = vunpack.c.l.s4 1966171168
        %v3303 = vunpack.c.0.s8 %v3302
        %v3304 = vlaneseq
        %v3305 = vshrl.u32 %v3304, 7
        %v3306 = vsub.s32 %v3303, %v3305
        %v3307 = vrot.slane %v3299, %v3306
        %v3309 = vunpack.c.l.s4 1966171168
        %v3310 = vunpack.c.0.s8 %v3309
        %v3311 = vlaneseq
        %v3312 = vshrl.u32 %v3311, 7
        %v3313 = vsub.s32 %v3310, %v3312
        %v3314 = vrot.slane %v3300, %v3313
        %v3315 = vcombine.low %v3307, %v3314
        %v3317 = vunpack.c.l.s4 1966171168
        %v3318 = vunpack.c.0.s8 %v3317
        %v3319 = vlaneseq
        %v3320 = vshrl.u32 %v3319, 7
        %v3321 = vsub.s32 %v3318, %v3320
        %v3322 = vrot.slane %v3315, %v3321
        %v3324 = vlaneseq
        %vm3325 = vcmp.ge.s32.totalorder %v3324, 0
        %vm3326 = vcmp.lt.s32.totalorder %v3324, 512
        %vm3327 = vmand %vm3325, %vm3326
        %3328 = vst.msk [vmem:[%s291] ss:$2 sm:$0xf] %vm3327, %v3322
        %v3329 = vmul.f32 %v818, %v3043
        %v3330 = vmul.f32 %v820, %v3045
        %v3331 = vmul.f32 %v907, %v3221
        %v3332 = vmul.f32 %v909, %v3223
        %v3333 = vmul.f32 %v824, %v3049
        %v3334 = vmul.f32 %v826, %v3051
        %v3335 = vmul.f32 %v913, %v3227
        %v3336 = vmul.f32 %v915, %v3229
        %v3337 = vmul.f32 %v830, %v3055
        %v3338 = vmul.f32 %v832, %v3057
        %v3339 = vmul.f32 %v919, %v3233
        %v3340 = vmul.f32 %v921, %v3235
        %v3341 = vmul.f32 %v836, %v3061
        %v3342 = vmul.f32 %v838, %v3063
        %v3343 = vmul.f32 %v925, %v3239
        %v3344 = vmul.f32 %v927, %v3241
        %v3345 = vadd.f32 %v3329, %v3333
        %v3346 = vadd.f32 %v3345, %v3337
        %v3347 = vadd.f32 %v3346, %v3341
        %v3348 = vrot.slane %v3347, 4
        %v3349 = vadd.f32 %v3347, %v3348
        %v3350 = vrot.slane %v3349, 2
        %v3351 = vadd.f32 %v3349, %v3350
        %v3352 = vrot.slane %v3351, 1
        %v3353 = vadd.f32 %v3351, %v3352
        %v3354 = vadd.f32 %v3330, %v3334
        %v3355 = vadd.f32 %v3354, %v3338
        %v3356 = vadd.f32 %v3355, %v3342
        %v3357 = vrot.slane %v3356, 4
        %v3358 = vadd.f32 %v3356, %v3357
        %v3359 = vrot.slane %v3358, 2
        %v3360 = vadd.f32 %v3358, %v3359
        %v3361 = vrot.slane %v3360, 1
        %v3362 = vadd.f32 %v3360, %v3361
        %v3363 = vadd.f32 %v3331, %v3335
        %v3364 = vadd.f32 %v3363, %v3339
        %v3365 = vadd.f32 %v3364, %v3343
        %v3366 = vrot.slane %v3365, 4
        %v3367 = vadd.f32 %v3365, %v3366
        %v3368 = vrot.slane %v3367, 2
        %v3369 = vadd.f32 %v3367, %v3368
        %v3370 = vrot.slane %v3369, 1
        %v3371 = vadd.f32 %v3369, %v3370
        %v3372 = vadd.f32 %v3332, %v3336
        %v3373 = vadd.f32 %v3372, %v3340
        %v3374 = vadd.f32 %v3373, %v3344
        %v3375 = vrot.slane %v3374, 4
        %v3376 = vadd.f32 %v3374, %v3375
        %v3377 = vrot.slane %v3376, 2
        %v3378 = vadd.f32 %v3376, %v3377
        %v3379 = vrot.slane %v3378, 1
        %v3380 = vadd.f32 %v3378, %v3379
        %v3385 = vcombine.low %v3353, %v3362
        %v3386 = vcombine.low %v3371, %v3380
        %v3388 = vunpack.c.l.s4 1966171168
        %v3389 = vunpack.c.0.s8 %v3388
        %v3390 = vlaneseq
        %v3391 = vshrl.u32 %v3390, 7
        %v3392 = vsub.s32 %v3389, %v3391
        %v3393 = vrot.slane %v3385, %v3392
        %v3395 = vunpack.c.l.s4 1966171168
        %v3396 = vunpack.c.0.s8 %v3395
        %v3397 = vlaneseq
        %v3398 = vshrl.u32 %v3397, 7
        %v3399 = vsub.s32 %v3396, %v3398
        %v3400 = vrot.slane %v3386, %v3399
        %v3401 = vcombine.low %v3393, %v3400
        %v3403 = vunpack.c.l.s4 1966171168
        %v3404 = vunpack.c.0.s8 %v3403
        %v3405 = vlaneseq
        %v3406 = vshrl.u32 %v3405, 7
        %v3407 = vsub.s32 %v3404, %v3406
        %v3408 = vrot.slane %v3401, %v3407
        %s3410 = scalar_lea.vmem %s291, 1
        %3411 = vst.msk [vmem:[%s3410] ss:$2 sm:$0xf] %vm3327, %v3408
        %s3412 = smul.u32 4, %s18
        %p3413 = scmp.lt.s32.totalorder %s3412, 7
        %s3414 = scalar_select %p3413, %s3412, 7
        %s3415 = smul.addr %s3414, 2
        %s3416 = scalar_lea.vmem %s5, %s3415
        // Predicated region
        $region49: #{mf_bpr_forward.1} parent=39 // pred_check
          %p3417 = pneg %p156
        $region50: #{mf_bpr_forward.1} parent=39 // pred_check_branch
          %3419 = sbr.rel (%p3417) target = $region52
        $region51: #{mf_bpr_forward.1} parent=39 // pred_region
          %s3420 = smul.u32 4, %s18
        $region52: #{mf_bpr_forward.1} parent=39 // pred_fallthru
          _
      $region40: #{mf_bpr_forward.1} parent=5 // pred_fallthru
        _
      %p3421 = scmp.le.s32.totalorder 2, %s13
      // Predicated region
      $region53: #{mf_bpr_forward.1} parent=5 // pred_check
        %p3422 = pneg %p3421
      $region54: #{mf_bpr_forward.1} parent=5 // pred_check_branch
        %3424 = sbr.rel (%p3422) target = $region56
      $region55: #{mf_bpr_forward.1} parent=5 // pred_region
        %s3425 = ssub.s32 %s13, 2
        // Predicated region
        $region57: #{mf_bpr_forward.1} parent=55 // pred_check
          %p3426 = pneg %p162
        $region58: #{mf_bpr_forward.1} parent=55 // pred_check_branch
          %3428 = sbr.rel (%p3426) target = $region60
        $region59: #{mf_bpr_forward.1} parent=55 // pred_region
          %s3429 = smul.u32 4, %s19
          %p3430 = scmp.lt.s32.totalorder %s3429, 7
          %s3431 = scalar_select %p3430, %s3429, 7
          %s3432 = smul.addr %s3431, 2
          %s3433 = scalar_lea.vmem %s5, %s3432
        $region60: #{mf_bpr_forward.1} parent=55 // pred_fallthru
          _
      $region56: #{mf_bpr_forward.1} parent=5 // pred_fallthru
        _
    $region6: #{mf_bpr_forward.1} parent=1 // loop_footer
      %s17 = sadd.s32 1, %s13
    $region7: #{mf_bpr_forward.1} parent=1 // loop_footer_branch
      %12 = sbr.rel target = $region3
    $region8: #{mf_bpr_forward.1} parent=1 // loop_exit
      _
    %3434 = vsyncpa [#allocation3], 1
    %s3435 = scalar_lea.sflag [#allocation3], 1
    %3436 = vsyncpa %s3435, 1
    %3437 = vsyncpa [#allocation5], 1

</llo_original>
